<compile_context>
chip_gen: v6e
topology: v6e:2x2x1
jax: 0.10.0
libtpu: 0.0.40
codegen_flags: <defaults>
</compile_context>

<pallas_src>
import functools

import jax
import jax.numpy as jnp
from jax import lax
from jax.experimental import pallas as pl
from jax.experimental.pallas import tpu as pltpu

LANE = 128


# ------------------------------ Pallas kernels ------------------------------ #

def _conv_pool_relu_kernel(p_ref, w_ref, b_ref, o_ref):
    """Fused conv + bias + 2x2 maxpool + ReLU.

    p_ref: [4, M, K]   im2col patches for the 4 positions of each pool window
    w_ref: [K, 128]    conv weights, out-channels zero-padded to 128 lanes
    b_ref: [1, 128]    bias, zero-padded
    o_ref: [M, 128]    lane-dense pooled/activated output
    """
    w = w_ref[...]
    acc = jnp.dot(p_ref[0], w, preferred_element_type=jnp.float32)
    for q in range(1, 4):
        acc = jnp.maximum(acc, jnp.dot(p_ref[q], w,
                                       preferred_element_type=jnp.float32))
    o_ref[...] = jnp.maximum(acc + b_ref[...], 0.0)


def _conv2_fc_kernel(p_ref, w2t_ref, b2_ref, wf1_ref, bf1_ref, wf2_ref, bf2_ref,
                     wf3_ref, bf3_ref, logits_ref, h_ref, *, tb, c2, sp):
    """conv2(+bias+pool+ReLU) in transposed layout, NCHW flatten, fc1/fc2/fc3.

    p_ref:   [4, K2, tb*sp]  transposed pooling-candidate patches
    w2t_ref: [128, K2]       conv2 weights, rows (=out channels) zero-padded
    b2_ref:  [128, 1]
    wf*_ref: FC weights, N (and K where needed) zero-padded to 128
    logits_ref: [tb, 128]    (wrapper slices to the real output_dim)
    h_ref:      [tb, c2*sp]  flattened activations in PyTorch NCHW order
    """
    w2t = w2t_ref[...]
    acc = jnp.dot(w2t, p_ref[0], preferred_element_type=jnp.float32)
    for q in range(1, 4):
        acc = jnp.maximum(acc, jnp.dot(w2t, p_ref[q],
                                       preferred_element_type=jnp.float32))
    a2t = jnp.maximum(acc + b2_ref[...], 0.0)        # [128, tb*sp]; rows >= c2 are 0

    # NCHW flatten (matches torch x.view(B, -1)): h[b, c*sp + s] = a2t[c, b*sp + s]
    rows = []
    for b in range(tb):
        segs = [a2t[c:c + 1, b * sp:(b + 1) * sp] for c in range(c2)]
        rows.append(jnp.concatenate(segs, axis=1))    # [1, c2*sp]
    h = jnp.concatenate(rows, axis=0)                 # [tb, c2*sp]
    h_ref[...] = h

    y = jnp.maximum(jnp.dot(h, wf1_ref[...], preferred_element_type=jnp.float32)
                    + bf1_ref[...], 0.0)
    y = jnp.maximum(jnp.dot(y, wf2_ref[...], preferred_element_type=jnp.float32)
                    + bf2_ref[...], 0.0)
    logits_ref[...] = (jnp.dot(y, wf3_ref[...], preferred_element_type=jnp.float32)
                       + bf3_ref[...])


# --------------------------- wrapper-side helpers --------------------------- #

def _pad_last(a, n):
    return jnp.pad(a, [(0, 0)] * (a.ndim - 1) + [(0, n - a.shape[-1])])


def _pad_first(a, n):
    return jnp.pad(a, [(0, n - a.shape[0])] + [(0, 0)] * (a.ndim - 1))


def _pool_candidate_windows(x_nhwc, k):
    """For each of the 4 positions of the 2x2 pool window, the im2col patches
    at the *pooled* output resolution.  Returns list of [B, PH, PW, k*k, C]."""
    B, H, W, C = x_nhwc.shape
    PH, PW = (H - k + 1) // 2, (W - k + 1) // 2
    cands = []
    for qh in range(2):
        for qw in range(2):
            taps = []
            for di in range(k):
                for dj in range(k):
                    win = lax.slice(
                        x_nhwc,
                        (0, qh + di, qw + dj, 0),
                        (B, qh + di + 2 * PH - 1, qw + dj + 2 * PW - 1, C),
                        (1, 2, 2, 1))                 # [B, PH, PW, C]
                    taps.append(win)
            cands.append(jnp.stack(taps, axis=3))     # [B, PH, PW, k*k, C]
    return cands, PH, PW


def _pool_candidate_patches(x_nhwc, k):
    """[4, B*PH*PW, k*k*C] -- rows ordered (b, ph, pw), cols (tap, c)."""
    cands, PH, PW = _pool_candidate_windows(x_nhwc, k)
    B, _, _, C = x_nhwc.shape
    return jnp.stack([c.reshape(B * PH * PW, k * k * C) for c in cands], axis=0)


def _pool_candidate_patches_T(x_nhwc, k):
    """[4, k*k*C, B*PH*PW] -- transposed patches (spatial on the lane axis)."""
    cands, PH, PW = _pool_candidate_windows(x_nhwc, k)
    B, _, _, C = x_nhwc.shape
    out = []
    for c in cands:
        out.append(jnp.transpose(c, (3, 4, 0, 1, 2)).reshape(k * k * C, B * PH * PW))
    return jnp.stack(out, axis=0)


def _batch_tiling(B):
    if B <= 8:
        return B, B
    tb = 8
    return tb, ((B + tb - 1) // tb) * tb


# ------------------------------- parameters --------------------------------- #

def init_params(key, input_channels=1, output_dim=10):
    ks = jax.random.split(key, 10)

    def u(k, shape, fan_in):
        bound = 1.0 / jnp.sqrt(fan_in)
        return jax.random.uniform(k, shape, jnp.float32, -bound, bound)

    return {
        "conv1_w": u(ks[0], (6, input_channels, 5, 5), input_channels * 25),
        "conv1_b": u(ks[1], (6,), input_channels * 25),
        "conv2_w": u(ks[2], (16, 6, 5, 5), 6 * 25),
        "conv2_b": u(ks[3], (16,), 6 * 25),
        "fc1_w": u(ks[4], (120, 16 * 4 * 4), 16 * 4 * 4),   # PyTorch [out, in]
        "fc1_b": u(ks[5], (120,), 16 * 4 * 4),
        "fc2_w": u(ks[6], (84, 120), 120),
        "fc2_b": u(ks[7], (84,), 120),
        "fc3_w": u(ks[8], (output_dim, 84), 84),
        "fc3_b": u(ks[9], (output_dim,), 84),
    }


def prepare_params(params):
    """One-time weight relayout: transposes + zero-padding to lane-dense shapes."""
    c1w = params["conv1_w"]                                     # [6, IC, 5, 5]
    ic = c1w.shape[1]
    w1 = jnp.transpose(c1w, (2, 3, 1, 0)).reshape(25 * ic, 6)   # rows (di,dj,c)
    c2w = params["conv2_w"]                                     # [16, 6, 5, 5]
    w2t = jnp.transpose(c2w, (0, 2, 3, 1)).reshape(16, 150)     # cols (di,dj,c)
    prepped = {
        "w1": _pad_last(w1, LANE),                                   # [25*IC, 128]
        "b1": _pad_last(params["conv1_b"].reshape(1, -1), LANE),     # [1, 128]
        "w2t": _pad_first(w2t, LANE),                                # [128, 150]
        "b2": _pad_first(params["conv2_b"].reshape(-1, 1), LANE),    # [128, 1]
        "wf1": _pad_last(params["fc1_w"].T, LANE),                   # [256, 128]
        "bf1": _pad_last(params["fc1_b"].reshape(1, -1), LANE),
        "wf2": _pad_last(_pad_first(params["fc2_w"].T, LANE), LANE),  # [128, 128]
        "bf2": _pad_last(params["fc2_b"].reshape(1, -1), LANE),
        "wf3": _pad_last(_pad_first(params["fc3_w"].T, LANE), LANE),  # [128, 128]
        "bf3": _pad_last(params["fc3_b"].reshape(1, -1), LANE),
    }
    return jax.tree_util.tree_map(lambda a: a.astype(jnp.float32), prepped)


# ------------------------------- LeNet forward ------------------------------ #

@functools.partial(jax.jit, static_argnames=("out_dim",))
def lenet_forward(prepped, x_nchw, out_dim=10):
    """Matches LeNet_MNIST.forward: returns (logits [B, out_dim], h [B, 256])."""
    B, IC, H, W = x_nchw.shape
    assert H == 28 and W == 28, "LeNet_MNIST fc_1 (16*4*4) implies 28x28 input"
    x = jnp.transpose(x_nchw, (0, 2, 3, 1)).astype(jnp.float32)     # NHWC

    tb, bp = _batch_tiling(B)
    if bp != B:
        x = jnp.pad(x, ((0, bp - B), (0, 0), (0, 0), (0, 0)))

    # --- stage 1: conv1 + bias + 2x2 maxpool + ReLU (single pallas_call) ----
    p1 = _pool_candidate_patches(x, 5)                  # [4, bp*144, 25*IC]
    k1 = p1.shape[-1]
    s1 = 12 * 12
    a1 = pl.pallas_call(
        _conv_pool_relu_kernel,
        out_shape=jax.ShapeDtypeStruct((bp * s1, LANE), jnp.float32),
        grid=(bp // tb,),
        in_specs=[
            pl.BlockSpec((4, tb * s1, k1), lambda i: (0, i, 0)),
            pl.BlockSpec((k1, LANE), lambda i: (0, 0)),
            pl.BlockSpec((1, LANE), lambda i: (0, 0)),
        ],
        out_specs=pl.BlockSpec((tb * s1, LANE), lambda i: (i, 0)),
        compiler_params=pltpu.CompilerParams(dimension_semantics=("parallel",)),
    )(p1, prepped["w1"], prepped["b1"])                 # [bp*144, 128]

    # --- stage 2: conv2 stage + NCHW flatten + fc1/fc2/fc3 (one pallas_call) -
    a1_4d = a1[:, :6].reshape(bp, 12, 12, 6)
    p2t = _pool_candidate_patches_T(a1_4d, 5)           # [4, 150, bp*16]
    k2 = p2t.shape[1]
    sp = 4 * 4
    kernel = functools.partial(_conv2_fc_kernel, tb=tb, c2=16, sp=sp)
    logits_p, h_p = pl.pallas_call(
        kernel,
        out_shape=(jax.ShapeDtypeStruct((bp, LANE), jnp.float32),
                   jax.ShapeDtypeStruct((bp, 16 * sp), jnp.float32)),
        grid=(bp // tb,),
        in_specs=[
            pl.BlockSpec((4, k2, tb * sp), lambda i: (0, 0, i)),
            pl.BlockSpec((LANE, k2), lambda i: (0, 0)),
            pl.BlockSpec((LANE, 1), lambda i: (0, 0)),
            pl.BlockSpec((256, LANE), lambda i: (0, 0)),
            pl.BlockSpec((1, LANE), lambda i: (0, 0)),
            pl.BlockSpec((LANE, LANE), lambda i: (0, 0)),
            pl.BlockSpec((1, LANE), lambda i: (0, 0)),
            pl.BlockSpec((LANE, LANE), lambda i: (0, 0)),
            pl.BlockSpec((1, LANE), lambda i: (0, 0)),
        ],
        out_specs=(pl.BlockSpec((tb, LANE), lambda i: (i, 0)),
                   pl.BlockSpec((tb, 16 * sp), lambda i: (i, 0))),
        compiler_params=pltpu.CompilerParams(dimension_semantics=("parallel",)),
    )(p2t, prepped["w2t"], prepped["b2"],
      prepped["wf1"], prepped["bf1"], prepped["wf2"], prepped["bf2"],
      prepped["wf3"], prepped["bf3"])

    return logits_p[:B, :out_dim], h_p[:B]


# ------------------------------- Pure-JAX ref -------------------------------- #

def lenet_forward_ref(params, x_nchw):
    hp = jax.lax.Precision.HIGHEST

    def conv(x, w, b):
        y = lax.conv_general_dilated(
            x, w, window_strides=(1, 1), padding="VALID",
            dimension_numbers=("NCHW", "OIHW", "NCHW"), precision=hp)
        return y + b[None, :, None, None]

    def pool_relu(x):
        B, C, H, W = x.shape
        y = x.reshape(B, C, H // 2, 2, W // 2, 2).max(axis=(3, 5))
        return jnp.maximum(y, 0.0)

    x = x_nchw.astype(jnp.float32)
    x = pool_relu(conv(x, params["conv1_w"], params["conv1_b"]))
    x = pool_relu(conv(x, params["conv2_w"], params["conv2_b"]))
    h = x.reshape(x.shape[0], -1)
    x = jnp.maximum(jnp.dot(h, params["fc1_w"].T, precision=hp) + params["fc1_b"], 0.0)
    x = jnp.maximum(jnp.dot(x, params["fc2_w"].T, precision=hp) + params["fc2_b"], 0.0)
    x = jnp.dot(x, params["fc3_w"].T, precision=hp) + params["fc3_b"]
    return x, h


# ----------------------------------- main ------------------------------------ #

if __name__ == "__main__":
    key = jax.random.PRNGKey(0)
    k_param, k_x = jax.random.split(key)

    params = init_params(k_param, input_channels=1, output_dim=10)
    prepped = prepare_params(params)

    # MNIST-shaped input: fc_1 (16*4*4) implies 28x28 spatial input.
    x = jax.random.normal(k_x, (2, 1, 28, 28), dtype=jnp.float32)

    logits, h = lenet_forward(prepped, x, out_dim=10)
    logits = jax.block_until_ready(logits)
    h = jax.block_until_ready(h)

    ref_logits, ref_h = lenet_forward_ref(params, x)
    assert logits.shape == (2, 10) and h.shape == (2, 256)
    assert jnp.max(jnp.abs(logits - ref_logits)) < 1e-2
    assert jnp.max(jnp.abs(h - ref_h)) < 1e-2

    print("KERNEL_OK")
</pallas_src>

<mosaic_0001>
module attributes {stable_mosaic.version = 11 : i64} {
  func.func @_conv_pool_relu_kernel(%arg0: i32, %arg1: memref<4x288x25xf32, #tpu.memory_space<vmem>>, %arg2: memref<25x128xf32, #tpu.memory_space<vmem>>, %arg3: memref<1x128xf32, #tpu.memory_space<vmem>>, %arg4: memref<288x128xf32, #tpu.memory_space<vmem>>) attributes {dimension_semantics = [#tpu.dimension_semantics<parallel>], iteration_bounds = array<i64: 1>, scalar_prefetch = 0 : i64, scratch_operands = 0 : i64, tpu.core_type = #tpu.core_type<tc>, window_params = [{transform_indices = @transform_0, window_bounds = array<i64: 4, 288, 25>}, {pipeline_mode = #tpu.pipeline_mode<synchronous>, transform_indices = @transform_1, window_bounds = array<i64: 25, 128>}, {pipeline_mode = #tpu.pipeline_mode<synchronous>, transform_indices = @transform_2, window_bounds = array<i64: 1, 128>}, {transform_indices = @transform_3, window_bounds = array<i64: 288, 128>}]} {
    %c0 = arith.constant 0 : index
    %c0_0 = arith.constant 0 : index
    %0 = vector.load %arg2[%c0, %c0_0] : memref<25x128xf32, #tpu.memory_space<vmem>>, vector<25x128xf32>
    %c0_1 = arith.constant 0 : index
    %c0_2 = arith.constant 0 : index
    %c0_3 = arith.constant 0 : index
    %1 = vector.load %arg1[%c0_1, %c0_2, %c0_3] : memref<4x288x25xf32, #tpu.memory_space<vmem>>, vector<1x288x25xf32>
    %2 = vector.shape_cast %1 : vector<1x288x25xf32> to vector<288x25xf32>
    %cst = arith.constant dense<0.000000e+00> : vector<288x128xf32>
    %3 = tpu.matmul %2, %0, %cst {dimension_numbers = #tpu.dot_dimension_numbers<[1], [0], [0], [1], [0, 0, 1, 1], [], []>} : vector<288x25xf32>, vector<25x128xf32>, vector<288x128xf32> -> vector<288x128xf32>
    %c1 = arith.constant 1 : index
    %c0_4 = arith.constant 0 : index
    %c0_5 = arith.constant 0 : index
    %4 = vector.load %arg1[%c1, %c0_4, %c0_5] : memref<4x288x25xf32, #tpu.memory_space<vmem>>, vector<1x288x25xf32>
    %5 = vector.shape_cast %4 : vector<1x288x25xf32> to vector<288x25xf32>
    %cst_6 = arith.constant dense<0.000000e+00> : vector<288x128xf32>
    %6 = tpu.matmul %5, %0, %cst_6 {dimension_numbers = #tpu.dot_dimension_numbers<[1], [0], [0], [1], [0, 0, 1, 1], [], []>} : vector<288x25xf32>, vector<25x128xf32>, vector<288x128xf32> -> vector<288x128xf32>
    %7 = arith.maximumf %3, %6 : vector<288x128xf32>
    %c2 = arith.constant 2 : index
    %c0_7 = arith.constant 0 : index
    %c0_8 = arith.constant 0 : index
    %8 = vector.load %arg1[%c2, %c0_7, %c0_8] : memref<4x288x25xf32, #tpu.memory_space<vmem>>, vector<1x288x25xf32>
    %9 = vector.shape_cast %8 : vector<1x288x25xf32> to vector<288x25xf32>
    %cst_9 = arith.constant dense<0.000000e+00> : vector<288x128xf32>
    %10 = tpu.matmul %9, %0, %cst_9 {dimension_numbers = #tpu.dot_dimension_numbers<[1], [0], [0], [1], [0, 0, 1, 1], [], []>} : vector<288x25xf32>, vector<25x128xf32>, vector<288x128xf32> -> vector<288x128xf32>
    %11 = arith.maximumf %7, %10 : vector<288x128xf32>
    %c3 = arith.constant 3 : index
    %c0_10 = arith.constant 0 : index
    %c0_11 = arith.constant 0 : index
    %12 = vector.load %arg1[%c3, %c0_10, %c0_11] : memref<4x288x25xf32, #tpu.memory_space<vmem>>, vector<1x288x25xf32>
    %13 = vector.shape_cast %12 : vector<1x288x25xf32> to vector<288x25xf32>
    %cst_12 = arith.constant dense<0.000000e+00> : vector<288x128xf32>
    %14 = tpu.matmul %13, %0, %cst_12 {dimension_numbers = #tpu.dot_dimension_numbers<[1], [0], [0], [1], [0, 0, 1, 1], [], []>} : vector<288x25xf32>, vector<25x128xf32>, vector<288x128xf32> -> vector<288x128xf32>
    %15 = arith.maximumf %11, %14 : vector<288x128xf32>
    %c0_13 = arith.constant 0 : index
    %c0_14 = arith.constant 0 : index
    %16 = vector.load %arg3[%c0_13, %c0_14] : memref<1x128xf32, #tpu.memory_space<vmem>>, vector<1x128xf32>
    %17 = vector.broadcast %16 : vector<1x128xf32> to vector<288x128xf32>
    %18 = arith.addf %15, %17 : vector<288x128xf32>
    %cst_15 = arith.constant 0.000000e+00 : f32
    %19 = vector.broadcast %cst_15 : f32 to vector<288x128xf32>
    %20 = arith.maximumf %18, %19 : vector<288x128xf32>
    %c0_16 = arith.constant 0 : index
    %c0_17 = arith.constant 0 : index
    %21 = vector.load %arg4[%c0_16, %c0_17] : memref<288x128xf32, #tpu.memory_space<vmem>>, vector<288x128xf32>
    tpu.vector_store %arg4[%c0_16, %c0_17], %20 {strides = array<i32>} : memref<288x128xf32, #tpu.memory_space<vmem>>, vector<288x128xf32>,
    return
  }
  func.func @transform_0(%arg0: i32) -> (i32, i32, i32) {
    %c0_i32 = arith.constant 0 : i32
    %c0_i32_0 = arith.constant 0 : i32
    %c0_i32_1 = arith.constant 0 : i32
    return %c0_i32, %arg0, %c0_i32_0 : i32, i32, i32
  }
  func.func @transform_1(%arg0: i32) -> (i32, i32) {
    %c0_i32 = arith.constant 0 : i32
    %c0_i32_0 = arith.constant 0 : i32
    %c0_i32_1 = arith.constant 0 : i32
    return %c0_i32, %c0_i32_0 : i32, i32
  }
  func.func @transform_2(%arg0: i32) -> (i32, i32) {
    %c0_i32 = arith.constant 0 : i32
    %c0_i32_0 = arith.constant 0 : i32
    %c0_i32_1 = arith.constant 0 : i32
    return %c0_i32, %c0_i32_0 : i32, i32
  }
  func.func @transform_3(%arg0: i32) -> (i32, i32) {
    %c0_i32 = arith.constant 0 : i32
    %c0_i32_0 = arith.constant 0 : i32
    return %arg0, %c0_i32 : i32, i32
  }
}

module attributes {stable_mosaic.version = 11 : i64} {
  func.func @_conv2_fc_kernel(%arg0: i32, %arg1: memref<4x150x32xf32, #tpu.memory_space<vmem>>, %arg2: memref<128x150xf32, #tpu.memory_space<vmem>>, %arg3: memref<128x1xf32, #tpu.memory_space<vmem>>, %arg4: memref<256x128xf32, #tpu.memory_space<vmem>>, %arg5: memref<1x128xf32, #tpu.memory_space<vmem>>, %arg6: memref<128x128xf32, #tpu.memory_space<vmem>>, %arg7: memref<1x128xf32, #tpu.memory_space<vmem>>, %arg8: memref<128x128xf32, #tpu.memory_space<vmem>>, %arg9: memref<1x128xf32, #tpu.memory_space<vmem>>, %arg10: memref<2x128xf32, #tpu.memory_space<vmem>>, %arg11: memref<2x256xf32, #tpu.memory_space<vmem>>) attributes {dimension_semantics = [#tpu.dimension_semantics<parallel>], iteration_bounds = array<i64: 1>, scalar_prefetch = 0 : i64, scratch_operands = 0 : i64, tpu.core_type = #tpu.core_type<tc>, window_params = [{transform_indices = @transform_0, window_bounds = array<i64: 4, 150, 32>}, {pipeline_mode = #tpu.pipeline_mode<synchronous>, transform_indices = @transform_1, window_bounds = array<i64: 128, 150>}, {pipeline_mode = #tpu.pipeline_mode<synchronous>, transform_indices = @transform_2, window_bounds = array<i64: 128, 1>}, {pipeline_mode = #tpu.pipeline_mode<synchronous>, transform_indices = @transform_3, window_bounds = array<i64: 256, 128>}, {pipeline_mode = #tpu.pipeline_mode<synchronous>, transform_indices = @transform_4, window_bounds = array<i64: 1, 128>}, {pipeline_mode = #tpu.pipeline_mode<synchronous>, transform_indices = @transform_5, window_bounds = array<i64: 128, 128>}, {pipeline_mode = #tpu.pipeline_mode<synchronous>, transform_indices = @transform_6, window_bounds = array<i64: 1, 128>}, {pipeline_mode = #tpu.pipeline_mode<synchronous>, transform_indices = @transform_7, window_bounds = array<i64: 128, 128>}, {pipeline_mode = #tpu.pipeline_mode<synchronous>, transform_indices = @transform_8, window_bounds = array<i64: 1, 128>}, {transform_indices = @transform_9, window_bounds = array<i64: 2, 128>}, {transform_indices = @transform_10, window_bounds = array<i64: 2, 256>}]} {
    %c0 = arith.constant 0 : index
    %c0_0 = arith.constant 0 : index
    %0 = vector.load %arg2[%c0, %c0_0] : memref<128x150xf32, #tpu.memory_space<vmem>>, vector<128x150xf32>
    %c0_1 = arith.constant 0 : index
    %c0_2 = arith.constant 0 : index
    %c0_3 = arith.constant 0 : index
    %1 = vector.load %arg1[%c0_1, %c0_2, %c0_3] : memref<4x150x32xf32, #tpu.memory_space<vmem>>, vector<1x150x32xf32>
    %2 = vector.shape_cast %1 : vector<1x150x32xf32> to vector<150x32xf32>
    %cst = arith.constant dense<0.000000e+00> : vector<128x32xf32>
    %3 = tpu.matmul %0, %2, %cst {dimension_numbers = #tpu.dot_dimension_numbers<[1], [0], [0], [1], [0, 0, 1, 1], [], []>} : vector<128x150xf32>, vector<150x32xf32>, vector<128x32xf32> -> vector<128x32xf32>
    %c1 = arith.constant 1 : index
    %c0_4 = arith.constant 0 : index
    %c0_5 = arith.constant 0 : index
    %4 = vector.load %arg1[%c1, %c0_4, %c0_5] : memref<4x150x32xf32, #tpu.memory_space<vmem>>, vector<1x150x32xf32>
    %5 = vector.shape_cast %4 : vector<1x150x32xf32> to vector<150x32xf32>
    %cst_6 = arith.constant dense<0.000000e+00> : vector<128x32xf32>
    %6 = tpu.matmul %0, %5, %cst_6 {dimension_numbers = #tpu.dot_dimension_numbers<[1], [0], [0], [1], [0, 0, 1, 1], [], []>} : vector<128x150xf32>, vector<150x32xf32>, vector<128x32xf32> -> vector<128x32xf32>
    %7 = arith.maximumf %3, %6 : vector<128x32xf32>
    %c2 = arith.constant 2 : index
    %c0_7 = arith.constant 0 : index
    %c0_8 = arith.constant 0 : index
    %8 = vector.load %arg1[%c2, %c0_7, %c0_8] : memref<4x150x32xf32, #tpu.memory_space<vmem>>, vector<1x150x32xf32>
    %9 = vector.shape_cast %8 : vector<1x150x32xf32> to vector<150x32xf32>
    %cst_9 = arith.constant dense<0.000000e+00> : vector<128x32xf32>
    %10 = tpu.matmul %0, %9, %cst_9 {dimension_numbers = #tpu.dot_dimension_numbers<[1], [0], [0], [1], [0, 0, 1, 1], [], []>} : vector<128x150xf32>, vector<150x32xf32>, vector<128x32xf32> -> vector<128x32xf32>
    %11 = arith.maximumf %7, %10 : vector<128x32xf32>
    %c3 = arith.constant 3 : index
    %c0_10 = arith.constant 0 : index
    %c0_11 = arith.constant 0 : index
    %12 = vector.load %arg1[%c3, %c0_10, %c0_11] : memref<4x150x32xf32, #tpu.memory_space<vmem>>, vector<1x150x32xf32>
    %13 = vector.shape_cast %12 : vector<1x150x32xf32> to vector<150x32xf32>
    %cst_12 = arith.constant dense<0.000000e+00> : vector<128x32xf32>
    %14 = tpu.matmul %0, %13, %cst_12 {dimension_numbers = #tpu.dot_dimension_numbers<[1], [0], [0], [1], [0, 0, 1, 1], [], []>} : vector<128x150xf32>, vector<150x32xf32>, vector<128x32xf32> -> vector<128x32xf32>
    %15 = arith.maximumf %11, %14 : vector<128x32xf32>
    %c0_13 = arith.constant 0 : index
    %c0_14 = arith.constant 0 : index
    %16 = vector.load %arg3[%c0_13, %c0_14] : memref<128x1xf32, #tpu.memory_space<vmem>>, vector<128x1xf32>
    %17 = vector.broadcast %16 : vector<128x1xf32> to vector<128x32xf32>
    %18 = arith.addf %15, %17 : vector<128x32xf32>
    %cst_15 = arith.constant 0.000000e+00 : f32
    %19 = vector.broadcast %cst_15 : f32 to vector<128x32xf32>
    %20 = arith.maximumf %18, %19 : vector<128x32xf32>
    %21 = vector.extract_strided_slice %20 {offsets = [0, 0], sizes = [1, 16], strides = [1, 1]} : vector<128x32xf32> to vector<1x16xf32>
    %22 = vector.extract_strided_slice %20 {offsets = [1, 0], sizes = [1, 16], strides = [1, 1]} : vector<128x32xf32> to vector<1x16xf32>
    %23 = vector.extract_strided_slice %20 {offsets = [2, 0], sizes = [1, 16], strides = [1, 1]} : vector<128x32xf32> to vector<1x16xf32>
    %24 = vector.extract_strided_slice %20 {offsets = [3, 0], sizes = [1, 16], strides = [1, 1]} : vector<128x32xf32> to vector<1x16xf32>
    %25 = vector.extract_strided_slice %20 {offsets = [4, 0], sizes = [1, 16], strides = [1, 1]} : vector<128x32xf32> to vector<1x16xf32>
    %26 = vector.extract_strided_slice %20 {offsets = [5, 0], sizes = [1, 16], strides = [1, 1]} : vector<128x32xf32> to vector<1x16xf32>
    %27 = vector.extract_strided_slice %20 {offsets = [6, 0], sizes = [1, 16], strides = [1, 1]} : vector<128x32xf32> to vector<1x16xf32>
    %28 = vector.extract_strided_slice %20 {offsets = [7, 0], sizes = [1, 16], strides = [1, 1]} : vector<128x32xf32> to vector<1x16xf32>
    %29 = vector.extract_strided_slice %20 {offsets = [8, 0], sizes = [1, 16], strides = [1, 1]} : vector<128x32xf32> to vector<1x16xf32>
    %30 = vector.extract_strided_slice %20 {offsets = [9, 0], sizes = [1, 16], strides = [1, 1]} : vector<128x32xf32> to vector<1x16xf32>
    %31 = vector.extract_strided_slice %20 {offsets = [10, 0], sizes = [1, 16], strides = [1, 1]} : vector<128x32xf32> to vector<1x16xf32>
    %32 = vector.extract_strided_slice %20 {offsets = [11, 0], sizes = [1, 16], strides = [1, 1]} : vector<128x32xf32> to vector<1x16xf32>
    %33 = vector.extract_strided_slice %20 {offsets = [12, 0], sizes = [1, 16], strides = [1, 1]} : vector<128x32xf32> to vector<1x16xf32>
    %34 = vector.extract_strided_slice %20 {offsets = [13, 0], sizes = [1, 16], strides = [1, 1]} : vector<128x32xf32> to vector<1x16xf32>
    %35 = vector.extract_strided_slice %20 {offsets = [14, 0], sizes = [1, 16], strides = [1, 1]} : vector<128x32xf32> to vector<1x16xf32>
    %36 = vector.extract_strided_slice %20 {offsets = [15, 0], sizes = [1, 16], strides = [1, 1]} : vector<128x32xf32> to vector<1x16xf32>
    %37 = tpu.concatenate %21, %22, %23, %24, %25, %26, %27, %28, %29, %30, %31, %32, %33, %34, %35, %36 in 1 : vector<1x16xf32>, vector<1x16xf32>, vector<1x16xf32>, vector<1x16xf32>, vector<1x16xf32>, vector<1x16xf32>, vector<1x16xf32>, vector<1x16xf32>, vector<1x16xf32>, vector<1x16xf32>, vector<1x16xf32>, vector<1x16xf32>, vector<1x16xf32>, vector<1x16xf32>, vector<1x16xf32>, vector<1x16xf32> -> vector<1x256xf32>
    %38 = vector.extract_strided_slice %20 {offsets = [0, 16], sizes = [1, 16], strides = [1, 1]} : vector<128x32xf32> to vector<1x16xf32>
    %39 = vector.extract_strided_slice %20 {offsets = [1, 16], sizes = [1, 16], strides = [1, 1]} : vector<128x32xf32> to vector<1x16xf32>
    %40 = vector.extract_strided_slice %20 {offsets = [2, 16], sizes = [1, 16], strides = [1, 1]} : vector<128x32xf32> to vector<1x16xf32>
    %41 = vector.extract_strided_slice %20 {offsets = [3, 16], sizes = [1, 16], strides = [1, 1]} : vector<128x32xf32> to vector<1x16xf32>
    %42 = vector.extract_strided_slice %20 {offsets = [4, 16], sizes = [1, 16], strides = [1, 1]} : vector<128x32xf32> to vector<1x16xf32>
    %43 = vector.extract_strided_slice %20 {offsets = [5, 16], sizes = [1, 16], strides = [1, 1]} : vector<128x32xf32> to vector<1x16xf32>
    %44 = vector.extract_strided_slice %20 {offsets = [6, 16], sizes = [1, 16], strides = [1, 1]} : vector<128x32xf32> to vector<1x16xf32>
    %45 = vector.extract_strided_slice %20 {offsets = [7, 16], sizes = [1, 16], strides = [1, 1]} : vector<128x32xf32> to vector<1x16xf32>
    %46 = vector.extract_strided_slice %20 {offsets = [8, 16], sizes = [1, 16], strides = [1, 1]} : vector<128x32xf32> to vector<1x16xf32>
    %47 = vector.extract_strided_slice %20 {offsets = [9, 16], sizes = [1, 16], strides = [1, 1]} : vector<128x32xf32> to vector<1x16xf32>
    %48 = vector.extract_strided_slice %20 {offsets = [10, 16], sizes = [1, 16], strides = [1, 1]} : vector<128x32xf32> to vector<1x16xf32>
    %49 = vector.extract_strided_slice %20 {offsets = [11, 16], sizes = [1, 16], strides = [1, 1]} : vector<128x32xf32> to vector<1x16xf32>
    %50 = vector.extract_strided_slice %20 {offsets = [12, 16], sizes = [1, 16], strides = [1, 1]} : vector<128x32xf32> to vector<1x16xf32>
    %51 = vector.extract_strided_slice %20 {offsets = [13, 16], sizes = [1, 16], strides = [1, 1]} : vector<128x32xf32> to vector<1x16xf32>
    %52 = vector.extract_strided_slice %20 {offsets = [14, 16], sizes = [1, 16], strides = [1, 1]} : vector<128x32xf32> to vector<1x16xf32>
    %53 = vector.extract_strided_slice %20 {offsets = [15, 16], sizes = [1, 16], strides = [1, 1]} : vector<128x32xf32> to vector<1x16xf32>
    %54 = tpu.concatenate %38, %39, %40, %41, %42, %43, %44, %45, %46, %47, %48, %49, %50, %51, %52, %53 in 1 : vector<1x16xf32>, vector<1x16xf32>, vector<1x16xf32>, vector<1x16xf32>, vector<1x16xf32>, vector<1x16xf32>, vector<1x16xf32>, vector<1x16xf32>, vector<1x16xf32>, vector<1x16xf32>, vector<1x16xf32>, vector<1x16xf32>, vector<1x16xf32>, vector<1x16xf32>, vector<1x16xf32>, vector<1x16xf32> -> vector<1x256xf32>
    %55 = tpu.concatenate %37, %54 in 0 : vector<1x256xf32>, vector<1x256xf32> -> vector<2x256xf32>
    %c0_16 = arith.constant 0 : index
    %c0_17 = arith.constant 0 : index
    %56 = vector.load %arg11[%c0_16, %c0_17] : memref<2x256xf32, #tpu.memory_space<vmem>>, vector<2x256xf32>
    tpu.vector_store %arg11[%c0_16, %c0_17], %55 {strides = array<i32>} : memref<2x256xf32, #tpu.memory_space<vmem>>, vector<2x256xf32>,
    %c0_18 = arith.constant 0 : index
    %c0_19 = arith.constant 0 : index
    %57 = vector.load %arg4[%c0_18, %c0_19] : memref<256x128xf32, #tpu.memory_space<vmem>>, vector<256x128xf32>
    %cst_20 = arith.constant dense<0.000000e+00> : vector<2x128xf32>
    %58 = tpu.matmul %55, %57, %cst_20 {dimension_numbers = #tpu.dot_dimension_numbers<[1], [0], [0], [1], [0, 0, 1, 1], [], []>} : vector<2x256xf32>, vector<256x128xf32>, vector<2x128xf32> -> vector<2x128xf32>
    %c0_21 = arith.constant 0 : index
    %c0_22 = arith.constant 0 : index
    %59 = vector.load %arg5[%c0_21, %c0_22] : memref<1x128xf32, #tpu.memory_space<vmem>>, vector<1x128xf32>
    %60 = vector.broadcast %59 : vector<1x128xf32> to vector<2x128xf32>
    %61 = arith.addf %58, %60 : vector<2x128xf32>
    %cst_23 = arith.constant 0.000000e+00 : f32
    %62 = vector.broadcast %cst_23 : f32 to vector<2x128xf32>
    %63 = arith.maximumf %61, %62 : vector<2x128xf32>
    %c0_24 = arith.constant 0 : index
    %c0_25 = arith.constant 0 : index
    %64 = vector.load %arg6[%c0_24, %c0_25] : memref<128x128xf32, #tpu.memory_space<vmem>>, vector<128x128xf32>
    %cst_26 = arith.constant dense<0.000000e+00> : vector<2x128xf32>
    %65 = tpu.matmul %63, %64, %cst_26 {dimension_numbers = #tpu.dot_dimension_numbers<[1], [0], [0], [1], [0, 0, 1, 1], [], []>} : vector<2x128xf32>, vector<128x128xf32>, vector<2x128xf32> -> vector<2x128xf32>
    %c0_27 = arith.constant 0 : index
    %c0_28 = arith.constant 0 : index
    %66 = vector.load %arg7[%c0_27, %c0_28] : memref<1x128xf32, #tpu.memory_space<vmem>>, vector<1x128xf32>
    %67 = vector.broadcast %66 : vector<1x128xf32> to vector<2x128xf32>
    %68 = arith.addf %65, %67 : vector<2x128xf32>
    %cst_29 = arith.constant 0.000000e+00 : f32
    %69 = vector.broadcast %cst_29 : f32 to vector<2x128xf32>
    %70 = arith.maximumf %68, %69 : vector<2x128xf32>
    %c0_30 = arith.constant 0 : index
    %c0_31 = arith.constant 0 : index
    %71 = vector.load %arg8[%c0_30, %c0_31] : memref<128x128xf32, #tpu.memory_space<vmem>>, vector<128x128xf32>
    %cst_32 = arith.constant dense<0.000000e+00> : vector<2x128xf32>
    %72 = tpu.matmul %70, %71, %cst_32 {dimension_numbers = #tpu.dot_dimension_numbers<[1], [0], [0], [1], [0, 0, 1, 1], [], []>} : vector<2x128xf32>, vector<128x128xf32>, vector<2x128xf32> -> vector<2x128xf32>
    %c0_33 = arith.constant 0 : index
    %c0_34 = arith.constant 0 : index
    %73 = vector.load %arg9[%c0_33, %c0_34] : memref<1x128xf32, #tpu.memory_space<vmem>>, vector<1x128xf32>
    %74 = vector.broadcast %73 : vector<1x128xf32> to vector<2x128xf32>
    %75 = arith.addf %72, %74 : vector<2x128xf32>
    %c0_35 = arith.constant 0 : index
    %c0_36 = arith.constant 0 : index
    %76 = vector.load %arg10[%c0_35, %c0_36] : memref<2x128xf32, #tpu.memory_space<vmem>>, vector<2x128xf32>
    tpu.vector_store %arg10[%c0_35, %c0_36], %75 {strides = array<i32>} : memref<2x128xf32, #tpu.memory_space<vmem>>, vector<2x128xf32>,
    return
  }
  func.func @transform_0(%arg0: i32) -> (i32, i32, i32) {
    %c0_i32 = arith.constant 0 : i32
    %c0_i32_0 = arith.constant 0 : i32
    %c0_i32_1 = arith.constant 0 : i32
    return %c0_i32, %c0_i32_0, %arg0 : i32, i32, i32
  }
  func.func @transform_1(%arg0: i32) -> (i32, i32) {
    %c0_i32 = arith.constant 0 : i32
    %c0_i32_0 = arith.constant 0 : i32
    %c0_i32_1 = arith.constant 0 : i32
    return %c0_i32, %c0_i32_0 : i32, i32
  }
  func.func @transform_2(%arg0: i32) -> (i32, i32) {
    %c0_i32 = arith.constant 0 : i32
    %c0_i32_0 = arith.constant 0 : i32
    %c0_i32_1 = arith.constant 0 : i32
    return %c0_i32, %c0_i32_0 : i32, i32
  }
  func.func @transform_3(%arg0: i32) -> (i32, i32) {
    %c0_i32 = arith.constant 0 : i32
    %c0_i32_0 = arith.constant 0 : i32
    %c0_i32_1 = arith.constant 0 : i32
    return %c0_i32, %c0_i32_0 : i32, i32
  }
  func.func @transform_4(%arg0: i32) -> (i32, i32) {
    %c0_i32 = arith.constant 0 : i32
    %c0_i32_0 = arith.constant 0 : i32
    %c0_i32_1 = arith.constant 0 : i32
    return %c0_i32, %c0_i32_0 : i32, i32
  }
  func.func @transform_5(%arg0: i32) -> (i32, i32) {
    %c0_i32 = arith.constant 0 : i32
    %c0_i32_0 = arith.constant 0 : i32
    %c0_i32_1 = arith.constant 0 : i32
    return %c0_i32, %c0_i32_0 : i32, i32
  }
  func.func @transform_6(%arg0: i32) -> (i32, i32) {
    %c0_i32 = arith.constant 0 : i32
    %c0_i32_0 = arith.constant 0 : i32
    %c0_i32_1 = arith.constant 0 : i32
    return %c0_i32, %c0_i32_0 : i32, i32
  }
  func.func @transform_7(%arg0: i32) -> (i32, i32) {
    %c0_i32 = arith.constant 0 : i32
    %c0_i32_0 = arith.constant 0 : i32
    %c0_i32_1 = arith.constant 0 : i32
    return %c0_i32, %c0_i32_0 : i32, i32
  }
  func.func @transform_8(%arg0: i32) -> (i32, i32) {
    %c0_i32 = arith.constant 0 : i32
    %c0_i32_0 = arith.constant 0 : i32
    %c0_i32_1 = arith.constant 0 : i32
    return %c0_i32, %c0_i32_0 : i32, i32
  }
  func.func @transform_9(%arg0: i32) -> (i32, i32) {
    %c0_i32 = arith.constant 0 : i32
    %c0_i32_0 = arith.constant 0 : i32
    return %arg0, %c0_i32 : i32, i32
  }
  func.func @transform_10(%arg0: i32) -> (i32, i32) {
    %c0_i32 = arith.constant 0 : i32
    %c0_i32_0 = arith.constant 0 : i32
    return %arg0, %c0_i32 : i32, i32
  }
}

</mosaic_0001>

<llo_original>
// kernel: lenet_forward.2
$region0: #{lenet_forward.2}
  #allocation0 [shape = 'u32[]', space=smem, size = 0x4, offset = 0x4, fixed_abs, tag = 'smem constant byte address 0x4 - core index']
  #allocation1 [shape = 'u32[144,128]{1,0:T(1,128)}', space=vmem, size = 0x12000, scoped, tag = 'internal scratch']
  %s0 = inlined_call_operand.vmem [shape: f32[4,288,25], index: 0, kind: input, shape index: {}]
  %s1 = inlined_call_operand.vmem [shape: f32[25,128], index: 1, kind: input, shape index: {}]
  %s2 = inlined_call_operand.vmem [shape: f32[1,128], index: 2, kind: input, shape index: {}]
  %s3 = inlined_call_operand.vmem [shape: f32[288,128], index: 3, kind: output, shape index: {}]
  %s4 = sld [smem:[#allocation0]]
  $region22: #{lenet_forward.2} parent=0
    _
  %s6 = ssub.s32 1, %s4
  %s7 = scalar_select 0, %s6, %s4
  // Predicated region
  $region2: #{lenet_forward.2} parent=0 // pred_check
    _
  $region3: #{lenet_forward.2} parent=0 // pred_check_branch
    %9 = sbr.rel (0) target = $region5
  $region4: #{lenet_forward.2} parent=0 // pred_region
    _
  $region5: #{lenet_forward.2} parent=0 // pred_fallthru
    _
  // Predicated region
  $region6: #{lenet_forward.2} parent=0 // pred_check
    _
  $region7: #{lenet_forward.2} parent=0 // pred_check_branch
    %11 = sbr.rel (0) target = $region9
  $region8: #{lenet_forward.2} parent=0 // pred_region
    _
  $region9: #{lenet_forward.2} parent=0 // pred_fallthru
    _
  // Predicated region
  $region10: #{lenet_forward.2} parent=0 // pred_check
    _
  $region11: #{lenet_forward.2} parent=0 // pred_check_branch
    %13 = sbr.rel (0) target = $region13
  $region12: #{lenet_forward.2} parent=0 // pred_region
    _
  $region13: #{lenet_forward.2} parent=0 // pred_fallthru
    _
  %v14 = vld [vmem:[%s1] sm:$0xff]
  %v15 = vld [vmem:[%s1 + $0x8] sm:$0xff]
  %v16 = vld [vmem:[%s1 + $0x10] sm:$0xff]
  %v17 = vld [vmem:[%s1 + $0x18] sm:$0x1]
  %v18 = vld [vmem:[%s0] sm:$0xff]
  %v19 = vld [vmem:[%s0 + $0x8] sm:$0xff]
  %v20 = vld [vmem:[%s0 + $0x10] sm:$0xff]
  %v21 = vld [vmem:[%s0 + $0x18] sm:$0xff]
  %v22 = vld [vmem:[%s0 + $0x20] sm:$0xff]
  %v23 = vld [vmem:[%s0 + $0x28] sm:$0xff]
  %v24 = vld [vmem:[%s0 + $0x30] sm:$0xff]
  %v25 = vld [vmem:[%s0 + $0x38] sm:$0xff]
  %v26 = vld [vmem:[%s0 + $0x40] sm:$0xff]
  %v27 = vld [vmem:[%s0 + $0x48] sm:$0xff]
  %v28 = vld [vmem:[%s0 + $0x50] sm:$0xff]
  %v29 = vld [vmem:[%s0 + $0x58] sm:$0xff]
  %v30 = vld [vmem:[%s0 + $0x60] sm:$0xff]
  %v31 = vld [vmem:[%s0 + $0x68] sm:$0xff]
  %v32 = vld [vmem:[%s0 + $0x70] sm:$0xff]
  %v33 = vld [vmem:[%s0 + $0x78] sm:$0xff]
  %v34 = vld [vmem:[%s0 + $0x80] sm:$0xff]
  %v35 = vld [vmem:[%s0 + $0x88] sm:$0xff]
  %v36 = vld [vmem:[%s0 + $0x90] sm:$0xff]
  %v37 = vld [vmem:[%s0 + $0x98] sm:$0xff]
  %v38 = vld [vmem:[%s0 + $0xa0] sm:$0xff]
  %v39 = vld [vmem:[%s0 + $0xa8] sm:$0xff]
  %v40 = vld [vmem:[%s0 + $0xb0] sm:$0xff]
  %v41 = vld [vmem:[%s0 + $0xb8] sm:$0xff]
  %v42 = vld [vmem:[%s0 + $0xc0] sm:$0xff]
  %v43 = vld [vmem:[%s0 + $0xc8] sm:$0xff]
  %v44 = vld [vmem:[%s0 + $0xd0] sm:$0xff]
  %v45 = vld [vmem:[%s0 + $0xd8] sm:$0xff]
  %v46 = vld [vmem:[%s0 + $0xe0] sm:$0xff]
  %v47 = vld [vmem:[%s0 + $0xe8] sm:$0xff]
  %v48 = vld [vmem:[%s0 + $0xf0] sm:$0xff]
  %v49 = vld [vmem:[%s0 + $0xf8] sm:$0xff]
  %v50 = vld [vmem:[%s0 + $0x100] sm:$0xff]
  %v51 = vld [vmem:[%s0 + $0x108] sm:$0xff]
  %v52 = vld [vmem:[%s0 + $0x110] sm:$0xff]
  %v53 = vld [vmem:[%s0 + $0x118] sm:$0xff]
  %vm54 = vcmask 203776
  %v56 = vsel %vm54, %v18, 0
  %v59 = vsel %vm54, %v19, 0
  %v62 = vsel %vm54, %v20, 0
  %v65 = vsel %vm54, %v21, 0
  %v68 = vsel %vm54, %v22, 0
  %v71 = vsel %vm54, %v23, 0
  %v74 = vsel %vm54, %v24, 0
  %v77 = vsel %vm54, %v25, 0
  %v80 = vsel %vm54, %v26, 0
  %v83 = vsel %vm54, %v27, 0
  %v86 = vsel %vm54, %v28, 0
  %v89 = vsel %vm54, %v29, 0
  %v92 = vsel %vm54, %v30, 0
  %v95 = vsel %vm54, %v31, 0
  %v98 = vsel %vm54, %v32, 0
  %v101 = vsel %vm54, %v33, 0
  %v104 = vsel %vm54, %v34, 0
  %v107 = vsel %vm54, %v35, 0
  %v110 = vsel %vm54, %v36, 0
  %v113 = vsel %vm54, %v37, 0
  %v116 = vsel %vm54, %v38, 0
  %v119 = vsel %vm54, %v39, 0
  %v122 = vsel %vm54, %v40, 0
  %v125 = vsel %vm54, %v41, 0
  %v128 = vsel %vm54, %v42, 0
  %v131 = vsel %vm54, %v43, 0
  %v134 = vsel %vm54, %v44, 0
  %v137 = vsel %vm54, %v45, 0
  %v140 = vsel %vm54, %v46, 0
  %v143 = vsel %vm54, %v47, 0
  %v146 = vsel %vm54, %v48, 0
  %v149 = vsel %vm54, %v49, 0
  %v152 = vsel %vm54, %v50, 0
  %v155 = vsel %vm54, %v51, 0
  %v158 = vsel %vm54, %v52, 0
  %v161 = vsel %vm54, %v53, 0
  %vm163 = vcmask 1040384
  %v165 = vsel %vm163, %v17, 0
  %167 = vmatprep.subr.mxu0 0.0
  %168 = vmatpush1.msra.mxu0 0.0
  %169 = vmatprep.subr.mxu0 0.0
  %170 = vmatpush1.msra.mxu0 0.0
  %171 = vmatprep.subr.mxu0 0.0
  %172 = vmatpush1.msra.mxu0 0.0
  %173 = vmatprep.subr.mxu0 0.0
  %174 = vmatpush1.msra.mxu0 0.0
  %175 = vmatprep.subr.mxu0 0.0
  %176 = vmatpush1.msra.mxu0 0.0
  %177 = vmatprep.subr.mxu0 0.0
  %178 = vmatpush1.msra.mxu0 0.0
  %179 = vmatprep.subr.mxu0 0.0
  %180 = vmatpush1.msra.mxu0 0.0
  %181 = vmatprep.subr.mxu0 0.0
  %182 = vmatpush1.msra.mxu0 0.0
  %183 = vmatprep.subr.mxu0 0.0
  %184 = vmatpush1.msra.mxu0 0.0
  %185 = vmatprep.subr.mxu0 0.0
  %186 = vmatpush1.msra.mxu0 0.0
  %187 = vmatprep.subr.mxu0 0.0
  %188 = vmatpush1.msra.mxu0 0.0
  %189 = vmatprep.subr.mxu0 0.0
  %190 = vmatpush1.msra.mxu0 0.0
  %191 = vmatprep.subr.mxu0 0.0
  %192 = vmatpush1.msra.mxu0 %v165
  %193 = vmatprep.subr.mxu0 0.0
  %194 = vmatpush1.msra.mxu0 %v16
  %195 = vmatprep.subr.mxu0 0.0
  %196 = vmatpush1.msra.mxu0 %v15
  %197 = vmatprep.subr.mxu0 0.0
  %198 = vmatpush1.msra.mxu0 %v14
  %199 = vmatprep.subr.mxu0 0.0
  %200 = vmatpush2.msra.mxu0 0.0
  %201 = vmatprep.subr.mxu0 0.0
  %202 = vmatpush2.msra.mxu0 0.0
  %203 = vmatprep.subr.mxu0 0.0
  %204 = vmatpush2.msra.mxu0 0.0
  %205 = vmatprep.subr.mxu0 0.0
  %206 = vmatpush2.msra.mxu0 0.0
  %207 = vmatprep.subr.mxu0 0.0
  %208 = vmatpush2.msra.mxu0 0.0
  %209 = vmatprep.subr.mxu0 0.0
  %210 = vmatpush2.msra.mxu0 0.0
  %211 = vmatprep.subr.mxu0 0.0
  %212 = vmatpush2.msra.mxu0 0.0
  %213 = vmatprep.subr.mxu0 0.0
  %214 = vmatpush2.msra.mxu0 0.0
  %215 = vmatprep.subr.mxu0 0.0
  %216 = vmatpush2.msra.mxu0 0.0
  %217 = vmatprep.subr.mxu0 0.0
  %218 = vmatpush2.msra.mxu0 0.0
  %219 = vmatprep.subr.mxu0 0.0
  %220 = vmatpush2.msra.mxu0 0.0
  %221 = vmatprep.subr.mxu0 0.0
  %222 = vmatpush2.msra.mxu0 0.0
  %223 = vmatprep.subr.mxu0 0.0
  %224 = vmatpush2.msra.mxu0 0.0
  %225 = vmatprep.subr.mxu0 0.0
  %226 = vmatpush2.msra.mxu0 0.0
  %227 = vmatprep.subr.mxu0 0.0
  %228 = vmatpush2.msra.mxu0 0.0
  %229 = vmatprep.subr.mxu0 0.0
  %230 = vmatpush2.msra.mxu0 0.0
  %231 = vmatprep.mubr.f32.mxu0 0.0
  %232 = vmatmul.mubr.f32.gmra.mxu0 %v56
  %v233 = vpop.f32.mrf.mxu0
  %v234 = vadd.f32 0.0, %v233
  %v235 = vpop.f32.mrf.mxu0
  %236 = vmatprep.mubr.f32.mxu0 0.0
  %237 = vmatmul.mubr.f32.gmra.mxu0 %v59
  %v238 = vpop.f32.mrf.mxu0
  %v239 = vadd.f32 0.0, %v238
  %v240 = vpop.f32.mrf.mxu0
  %241 = vmatprep.mubr.f32.mxu0 0.0
  %242 = vmatmul.mubr.f32.gmra.mxu0 %v62
  %v243 = vpop.f32.mrf.mxu0
  %v244 = vadd.f32 0.0, %v243
  %v245 = vpop.f32.mrf.mxu0
  %246 = vmatprep.mubr.f32.mxu0 0.0
  %247 = vmatmul.mubr.f32.gmra.mxu0 %v65
  %v248 = vpop.f32.mrf.mxu0
  %v249 = vadd.f32 0.0, %v248
  %v250 = vpop.f32.mrf.mxu0
  %251 = vmatprep.mubr.f32.mxu0 0.0
  %252 = vmatmul.mubr.f32.gmra.mxu0 %v68
  %v253 = vpop.f32.mrf.mxu0
  %v254 = vadd.f32 0.0, %v253
  %v255 = vpop.f32.mrf.mxu0
  %256 = vmatprep.mubr.f32.mxu0 0.0
  %257 = vmatmul.mubr.f32.gmra.mxu0 %v71
  %v258 = vpop.f32.mrf.mxu0
  %v259 = vadd.f32 0.0, %v258
  %v260 = vpop.f32.mrf.mxu0
  %261 = vmatprep.mubr.f32.mxu0 0.0
  %262 = vmatmul.mubr.f32.gmra.mxu0 %v74
  %v263 = vpop.f32.mrf.mxu0
  %v264 = vadd.f32 0.0, %v263
  %v265 = vpop.f32.mrf.mxu0
  %266 = vmatprep.mubr.f32.mxu0 0.0
  %267 = vmatmul.mubr.f32.gmra.mxu0 %v77
  %v268 = vpop.f32.mrf.mxu0
  %v269 = vadd.f32 0.0, %v268
  %v270 = vpop.f32.mrf.mxu0
  %271 = vmatprep.mubr.f32.mxu0 0.0
  %272 = vmatmul.mubr.f32.gmra.mxu0 %v80
  %v273 = vpop.f32.mrf.mxu0
  %v274 = vadd.f32 0.0, %v273
  %v275 = vpop.f32.mrf.mxu0
  %276 = vmatprep.mubr.f32.mxu0 0.0
  %277 = vmatmul.mubr.f32.gmra.mxu0 %v83
  %v278 = vpop.f32.mrf.mxu0
  %v279 = vadd.f32 0.0, %v278
  %v280 = vpop.f32.mrf.mxu0
  %281 = vmatprep.mubr.f32.mxu0 0.0
  %282 = vmatmul.mubr.f32.gmra.mxu0 %v86
  %v283 = vpop.f32.mrf.mxu0
  %v284 = vadd.f32 0.0, %v283
  %v285 = vpop.f32.mrf.mxu0
  %286 = vmatprep.mubr.f32.mxu0 0.0
  %287 = vmatmul.mubr.f32.gmra.mxu0 %v89
  %v288 = vpop.f32.mrf.mxu0
  %v289 = vadd.f32 0.0, %v288
  %v290 = vpop.f32.mrf.mxu0
  %291 = vmatprep.mubr.f32.mxu0 0.0
  %292 = vmatmul.mubr.f32.gmra.mxu0 %v92
  %v293 = vpop.f32.mrf.mxu0
  %v294 = vadd.f32 0.0, %v293
  %v295 = vpop.f32.mrf.mxu0
  %296 = vmatprep.mubr.f32.mxu0 0.0
  %297 = vmatmul.mubr.f32.gmra.mxu0 %v95
  %v298 = vpop.f32.mrf.mxu0
  %v299 = vadd.f32 0.0, %v298
  %v300 = vpop.f32.mrf.mxu0
  %301 = vmatprep.mubr.f32.mxu0 0.0
  %302 = vmatmul.mubr.f32.gmra.mxu0 %v98
  %v303 = vpop.f32.mrf.mxu0
  %v304 = vadd.f32 0.0, %v303
  %v305 = vpop.f32.mrf.mxu0
  %306 = vmatprep.mubr.f32.mxu0 0.0
  %307 = vmatmul.mubr.f32.gmra.mxu0 %v101
  %v308 = vpop.f32.mrf.mxu0
  %v309 = vadd.f32 0.0, %v308
  %v310 = vpop.f32.mrf.mxu0
  %311 = vmatprep.mubr.f32.mxu0 0.0
  %312 = vmatmul.mubr.f32.gmra.mxu0 %v104
  %v313 = vpop.f32.mrf.mxu0
  %v314 = vadd.f32 0.0, %v313
  %v315 = vpop.f32.mrf.mxu0
  %316 = vmatprep.mubr.f32.mxu0 0.0
  %317 = vmatmul.mubr.f32.gmra.mxu0 %v107
  %v318 = vpop.f32.mrf.mxu0
  %v319 = vadd.f32 0.0, %v318
  %v320 = vpop.f32.mrf.mxu0
  %321 = vmatprep.mubr.f32.mxu0 0.0
  %322 = vmatmul.mubr.f32.gmra.mxu0 %v110
  %v323 = vpop.f32.mrf.mxu0
  %v324 = vadd.f32 0.0, %v323
  %v325 = vpop.f32.mrf.mxu0
  %326 = vmatprep.mubr.f32.mxu0 0.0
  %327 = vmatmul.mubr.f32.gmra.mxu0 %v113
  %v328 = vpop.f32.mrf.mxu0
  %v329 = vadd.f32 0.0, %v328
  %v330 = vpop.f32.mrf.mxu0
  %331 = vmatprep.mubr.f32.mxu0 0.0
  %332 = vmatmul.mubr.f32.gmra.mxu0 %v116
  %v333 = vpop.f32.mrf.mxu0
  %v334 = vadd.f32 0.0, %v333
  %v335 = vpop.f32.mrf.mxu0
  %336 = vmatprep.mubr.f32.mxu0 0.0
  %337 = vmatmul.mubr.f32.gmra.mxu0 %v119
  %v338 = vpop.f32.mrf.mxu0
  %v339 = vadd.f32 0.0, %v338
  %v340 = vpop.f32.mrf.mxu0
  %341 = vmatprep.mubr.f32.mxu0 0.0
  %342 = vmatmul.mubr.f32.gmra.mxu0 %v122
  %v343 = vpop.f32.mrf.mxu0
  %v344 = vadd.f32 0.0, %v343
  %v345 = vpop.f32.mrf.mxu0
  %346 = vmatprep.mubr.f32.mxu0 0.0
  %347 = vmatmul.mubr.f32.gmra.mxu0 %v125
  %v348 = vpop.f32.mrf.mxu0
  %v349 = vadd.f32 0.0, %v348
  %v350 = vpop.f32.mrf.mxu0
  %351 = vmatprep.mubr.f32.mxu0 0.0
  %352 = vmatmul.mubr.f32.gmra.mxu0 %v128
  %v353 = vpop.f32.mrf.mxu0
  %v354 = vadd.f32 0.0, %v353
  %v355 = vpop.f32.mrf.mxu0
  %356 = vmatprep.mubr.f32.mxu0 0.0
  %357 = vmatmul.mubr.f32.gmra.mxu0 %v131
  %v358 = vpop.f32.mrf.mxu0
  %v359 = vadd.f32 0.0, %v358
  %v360 = vpop.f32.mrf.mxu0
  %361 = vmatprep.mubr.f32.mxu0 0.0
  %362 = vmatmul.mubr.f32.gmra.mxu0 %v134
  %v363 = vpop.f32.mrf.mxu0
  %v364 = vadd.f32 0.0, %v363
  %v365 = vpop.f32.mrf.mxu0
  %366 = vmatprep.mubr.f32.mxu0 0.0
  %367 = vmatmul.mubr.f32.gmra.mxu0 %v137
  %v368 = vpop.f32.mrf.mxu0
  %v369 = vadd.f32 0.0, %v368
  %v370 = vpop.f32.mrf.mxu0
  %371 = vmatprep.mubr.f32.mxu0 0.0
  %372 = vmatmul.mubr.f32.gmra.mxu0 %v140
  %v373 = vpop.f32.mrf.mxu0
  %v374 = vadd.f32 0.0, %v373
  %v375 = vpop.f32.mrf.mxu0
  %376 = vmatprep.mubr.f32.mxu0 0.0
  %377 = vmatmul.mubr.f32.gmra.mxu0 %v143
  %v378 = vpop.f32.mrf.mxu0
  %v379 = vadd.f32 0.0, %v378
  %v380 = vpop.f32.mrf.mxu0
  %381 = vmatprep.mubr.f32.mxu0 0.0
  %382 = vmatmul.mubr.f32.gmra.mxu0 %v146
  %v383 = vpop.f32.mrf.mxu0
  %v384 = vadd.f32 0.0, %v383
  %v385 = vpop.f32.mrf.mxu0
  %386 = vmatprep.mubr.f32.mxu0 0.0
  %387 = vmatmul.mubr.f32.gmra.mxu0 %v149
  %v388 = vpop.f32.mrf.mxu0
  %v389 = vadd.f32 0.0, %v388
  %v390 = vpop.f32.mrf.mxu0
  %391 = vmatprep.mubr.f32.mxu0 0.0
  %392 = vmatmul.mubr.f32.gmra.mxu0 %v152
  %v393 = vpop.f32.mrf.mxu0
  %v394 = vadd.f32 0.0, %v393
  %v395 = vpop.f32.mrf.mxu0
  %396 = vmatprep.mubr.f32.mxu0 0.0
  %397 = vmatmul.mubr.f32.gmra.mxu0 %v155
  %v398 = vpop.f32.mrf.mxu0
  %v399 = vadd.f32 0.0, %v398
  %v400 = vpop.f32.mrf.mxu0
  %401 = vmatprep.mubr.f32.mxu0 0.0
  %402 = vmatmul.mubr.f32.gmra.mxu0 %v158
  %v403 = vpop.f32.mrf.mxu0
  %v404 = vadd.f32 0.0, %v403
  %v405 = vpop.f32.mrf.mxu0
  %406 = vmatprep.mubr.f32.mxu0 0.0
  %407 = vmatmul.mubr.f32.gmra.mxu0 %v161
  %v408 = vpop.f32.mrf.mxu0
  %v409 = vadd.f32 0.0, %v408
  %v410 = vpop.f32.mrf.mxu0
  %411 = vdwg.mxu0
  %s412 = scalar_lea.vmem %s0, 288
  %v413 = vld [vmem:[%s412] sm:$0xff]
  %v414 = vld [vmem:[%s412 + $0x8] sm:$0xff]
  %v415 = vld [vmem:[%s412 + $0x10] sm:$0xff]
  %v416 = vld [vmem:[%s412 + $0x18] sm:$0xff]
  %v417 = vld [vmem:[%s412 + $0x20] sm:$0xff]
  %v418 = vld [vmem:[%s412 + $0x28] sm:$0xff]
  %v419 = vld [vmem:[%s412 + $0x30] sm:$0xff]
  %v420 = vld [vmem:[%s412 + $0x38] sm:$0xff]
  %v421 = vld [vmem:[%s412 + $0x40] sm:$0xff]
  %v422 = vld [vmem:[%s412 + $0x48] sm:$0xff]
  %v423 = vld [vmem:[%s412 + $0x50] sm:$0xff]
  %v424 = vld [vmem:[%s412 + $0x58] sm:$0xff]
  %v425 = vld [vmem:[%s412 + $0x60] sm:$0xff]
  %v426 = vld [vmem:[%s412 + $0x68] sm:$0xff]
  %v427 = vld [vmem:[%s412 + $0x70] sm:$0xff]
  %v428 = vld [vmem:[%s412 + $0x78] sm:$0xff]
  %v429 = vld [vmem:[%s412 + $0x80] sm:$0xff]
  %v430 = vld [vmem:[%s412 + $0x88] sm:$0xff]
  %v431 = vld [vmem:[%s412 + $0x90] sm:$0xff]
  %v432 = vld [vmem:[%s412 + $0x98] sm:$0xff]
  %v433 = vld [vmem:[%s412 + $0xa0] sm:$0xff]
  %v434 = vld [vmem:[%s412 + $0xa8] sm:$0xff]
  %v435 = vld [vmem:[%s412 + $0xb0] sm:$0xff]
  %v436 = vld [vmem:[%s412 + $0xb8] sm:$0xff]
  %v437 = vld [vmem:[%s412 + $0xc0] sm:$0xff]
  %v438 = vld [vmem:[%s412 + $0xc8] sm:$0xff]
  %v439 = vld [vmem:[%s412 + $0xd0] sm:$0xff]
  %v440 = vld [vmem:[%s412 + $0xd8] sm:$0xff]
  %v441 = vld [vmem:[%s412 + $0xe0] sm:$0xff]
  %v442 = vld [vmem:[%s412 + $0xe8] sm:$0xff]
  %v443 = vld [vmem:[%s412 + $0xf0] sm:$0xff]
  %v444 = vld [vmem:[%s412 + $0xf8] sm:$0xff]
  %v445 = vld [vmem:[%s412 + $0x100] sm:$0xff]
  %v446 = vld [vmem:[%s412 + $0x108] sm:$0xff]
  %v447 = vld [vmem:[%s412 + $0x110] sm:$0xff]
  %v448 = vld [vmem:[%s412 + $0x118] sm:$0xff]
  %v450 = vsel %vm54, %v413, 0
  %v453 = vsel %vm54, %v414, 0
  %v456 = vsel %vm54, %v415, 0
  %v459 = vsel %vm54, %v416, 0
  %v462 = vsel %vm54, %v417, 0
  %v465 = vsel %vm54, %v418, 0
  %v468 = vsel %vm54, %v419, 0
  %v471 = vsel %vm54, %v420, 0
  %v474 = vsel %vm54, %v421, 0
  %v477 = vsel %vm54, %v422, 0
  %v480 = vsel %vm54, %v423, 0
  %v483 = vsel %vm54, %v424, 0
  %v486 = vsel %vm54, %v425, 0
  %v489 = vsel %vm54, %v426, 0
  %v492 = vsel %vm54, %v427, 0
  %v495 = vsel %vm54, %v428, 0
  %v498 = vsel %vm54, %v429, 0
  %v501 = vsel %vm54, %v430, 0
  %v504 = vsel %vm54, %v431, 0
  %v507 = vsel %vm54, %v432, 0
  %v510 = vsel %vm54, %v433, 0
  %v513 = vsel %vm54, %v434, 0
  %v516 = vsel %vm54, %v435, 0
  %v519 = vsel %vm54, %v436, 0
  %v522 = vsel %vm54, %v437, 0
  %v525 = vsel %vm54, %v438, 0
  %v528 = vsel %vm54, %v439, 0
  %v531 = vsel %vm54, %v440, 0
  %v534 = vsel %vm54, %v441, 0
  %v537 = vsel %vm54, %v442, 0
  %v540 = vsel %vm54, %v443, 0
  %v543 = vsel %vm54, %v444, 0
  %v546 = vsel %vm54, %v445, 0
  %v549 = vsel %vm54, %v446, 0
  %v552 = vsel %vm54, %v447, 0
  %v555 = vsel %vm54, %v448, 0
  %557 = vmatprep.subr.mxu0 0.0
  %558 = vmatpush1.msra.mxu0 0.0
  %559 = vmatprep.subr.mxu0 0.0
  %560 = vmatpush1.msra.mxu0 0.0
  %561 = vmatprep.subr.mxu0 0.0
  %562 = vmatpush1.msra.mxu0 0.0
  %563 = vmatprep.subr.mxu0 0.0
  %564 = vmatpush1.msra.mxu0 0.0
  %565 = vmatprep.subr.mxu0 0.0
  %566 = vmatpush1.msra.mxu0 0.0
  %567 = vmatprep.subr.mxu0 0.0
  %568 = vmatpush1.msra.mxu0 0.0
  %569 = vmatprep.subr.mxu0 0.0
  %570 = vmatpush1.msra.mxu0 0.0
  %571 = vmatprep.subr.mxu0 0.0
  %572 = vmatpush1.msra.mxu0 0.0
  %573 = vmatprep.subr.mxu0 0.0
  %574 = vmatpush1.msra.mxu0 0.0
  %575 = vmatprep.subr.mxu0 0.0
  %576 = vmatpush1.msra.mxu0 0.0
  %577 = vmatprep.subr.mxu0 0.0
  %578 = vmatpush1.msra.mxu0 0.0
  %579 = vmatprep.subr.mxu0 0.0
  %580 = vmatpush1.msra.mxu0 0.0
  %581 = vmatprep.subr.mxu0 0.0
  %582 = vmatpush1.msra.mxu0 %v165
  %583 = vmatprep.subr.mxu0 0.0
  %584 = vmatpush1.msra.mxu0 %v16
  %585 = vmatprep.subr.mxu0 0.0
  %586 = vmatpush1.msra.mxu0 %v15
  %587 = vmatprep.subr.mxu0 0.0
  %588 = vmatpush1.msra.mxu0 %v14
  %589 = vmatprep.subr.mxu0 0.0
  %590 = vmatpush2.msra.mxu0 0.0
  %591 = vmatprep.subr.mxu0 0.0
  %592 = vmatpush2.msra.mxu0 0.0
  %593 = vmatprep.subr.mxu0 0.0
  %594 = vmatpush2.msra.mxu0 0.0
  %595 = vmatprep.subr.mxu0 0.0
  %596 = vmatpush2.msra.mxu0 0.0
  %597 = vmatprep.subr.mxu0 0.0
  %598 = vmatpush2.msra.mxu0 0.0
  %599 = vmatprep.subr.mxu0 0.0
  %600 = vmatpush2.msra.mxu0 0.0
  %601 = vmatprep.subr.mxu0 0.0
  %602 = vmatpush2.msra.mxu0 0.0
  %603 = vmatprep.subr.mxu0 0.0
  %604 = vmatpush2.msra.mxu0 0.0
  %605 = vmatprep.subr.mxu0 0.0
  %606 = vmatpush2.msra.mxu0 0.0
  %607 = vmatprep.subr.mxu0 0.0
  %608 = vmatpush2.msra.mxu0 0.0
  %609 = vmatprep.subr.mxu0 0.0
  %610 = vmatpush2.msra.mxu0 0.0
  %611 = vmatprep.subr.mxu0 0.0
  %612 = vmatpush2.msra.mxu0 0.0
  %613 = vmatprep.subr.mxu0 0.0
  %614 = vmatpush2.msra.mxu0 0.0
  %615 = vmatprep.subr.mxu0 0.0
  %616 = vmatpush2.msra.mxu0 0.0
  %617 = vmatprep.subr.mxu0 0.0
  %618 = vmatpush2.msra.mxu0 0.0
  %619 = vmatprep.subr.mxu0 0.0
  %620 = vmatpush2.msra.mxu0 0.0
  %621 = vmatprep.mubr.f32.mxu0 0.0
  %622 = vmatmul.mubr.f32.gmra.mxu0 %v450
  %v623 = vpop.f32.mrf.mxu0
  %v624 = vadd.f32 0.0, %v623
  %v625 = vpop.f32.mrf.mxu0
  %626 = vmatprep.mubr.f32.mxu0 0.0
  %627 = vmatmul.mubr.f32.gmra.mxu0 %v453
  %v628 = vpop.f32.mrf.mxu0
  %v629 = vadd.f32 0.0, %v628
  %v630 = vpop.f32.mrf.mxu0
  %631 = vmatprep.mubr.f32.mxu0 0.0
  %632 = vmatmul.mubr.f32.gmra.mxu0 %v456
  %v633 = vpop.f32.mrf.mxu0
  %v634 = vadd.f32 0.0, %v633
  %v635 = vpop.f32.mrf.mxu0
  %636 = vmatprep.mubr.f32.mxu0 0.0
  %637 = vmatmul.mubr.f32.gmra.mxu0 %v459
  %v638 = vpop.f32.mrf.mxu0
  %v639 = vadd.f32 0.0, %v638
  %v640 = vpop.f32.mrf.mxu0
  %641 = vmatprep.mubr.f32.mxu0 0.0
  %642 = vmatmul.mubr.f32.gmra.mxu0 %v462
  %v643 = vpop.f32.mrf.mxu0
  %v644 = vadd.f32 0.0, %v643
  %v645 = vpop.f32.mrf.mxu0
  %646 = vmatprep.mubr.f32.mxu0 0.0
  %647 = vmatmul.mubr.f32.gmra.mxu0 %v465
  %v648 = vpop.f32.mrf.mxu0
  %v649 = vadd.f32 0.0, %v648
  %v650 = vpop.f32.mrf.mxu0
  %651 = vmatprep.mubr.f32.mxu0 0.0
  %652 = vmatmul.mubr.f32.gmra.mxu0 %v468
  %v653 = vpop.f32.mrf.mxu0
  %v654 = vadd.f32 0.0, %v653
  %v655 = vpop.f32.mrf.mxu0
  %656 = vmatprep.mubr.f32.mxu0 0.0
  %657 = vmatmul.mubr.f32.gmra.mxu0 %v471
  %v658 = vpop.f32.mrf.mxu0
  %v659 = vadd.f32 0.0, %v658
  %v660 = vpop.f32.mrf.mxu0
  %661 = vmatprep.mubr.f32.mxu0 0.0
  %662 = vmatmul.mubr.f32.gmra.mxu0 %v474
  %v663 = vpop.f32.mrf.mxu0
  %v664 = vadd.f32 0.0, %v663
  %v665 = vpop.f32.mrf.mxu0
  %666 = vmatprep.mubr.f32.mxu0 0.0
  %667 = vmatmul.mubr.f32.gmra.mxu0 %v477
  %v668 = vpop.f32.mrf.mxu0
  %v669 = vadd.f32 0.0, %v668
  %v670 = vpop.f32.mrf.mxu0
  %671 = vmatprep.mubr.f32.mxu0 0.0
  %672 = vmatmul.mubr.f32.gmra.mxu0 %v480
  %v673 = vpop.f32.mrf.mxu0
  %v674 = vadd.f32 0.0, %v673
  %v675 = vpop.f32.mrf.mxu0
  %676 = vmatprep.mubr.f32.mxu0 0.0
  %677 = vmatmul.mubr.f32.gmra.mxu0 %v483
  %v678 = vpop.f32.mrf.mxu0
  %v679 = vadd.f32 0.0, %v678
  %v680 = vpop.f32.mrf.mxu0
  %681 = vmatprep.mubr.f32.mxu0 0.0
  %682 = vmatmul.mubr.f32.gmra.mxu0 %v486
  %v683 = vpop.f32.mrf.mxu0
  %v684 = vadd.f32 0.0, %v683
  %v685 = vpop.f32.mrf.mxu0
  %686 = vmatprep.mubr.f32.mxu0 0.0
  %687 = vmatmul.mubr.f32.gmra.mxu0 %v489
  %v688 = vpop.f32.mrf.mxu0
  %v689 = vadd.f32 0.0, %v688
  %v690 = vpop.f32.mrf.mxu0
  %691 = vmatprep.mubr.f32.mxu0 0.0
  %692 = vmatmul.mubr.f32.gmra.mxu0 %v492
  %v693 = vpop.f32.mrf.mxu0
  %v694 = vadd.f32 0.0, %v693
  %v695 = vpop.f32.mrf.mxu0
  %696 = vmatprep.mubr.f32.mxu0 0.0
  %697 = vmatmul.mubr.f32.gmra.mxu0 %v495
  %v698 = vpop.f32.mrf.mxu0
  %v699 = vadd.f32 0.0, %v698
  %v700 = vpop.f32.mrf.mxu0
  %701 = vmatprep.mubr.f32.mxu0 0.0
  %702 = vmatmul.mubr.f32.gmra.mxu0 %v498
  %v703 = vpop.f32.mrf.mxu0
  %v704 = vadd.f32 0.0, %v703
  %v705 = vpop.f32.mrf.mxu0
  %706 = vmatprep.mubr.f32.mxu0 0.0
  %707 = vmatmul.mubr.f32.gmra.mxu0 %v501
  %v708 = vpop.f32.mrf.mxu0
  %v709 = vadd.f32 0.0, %v708
  %v710 = vpop.f32.mrf.mxu0
  %711 = vmatprep.mubr.f32.mxu0 0.0
  %712 = vmatmul.mubr.f32.gmra.mxu0 %v504
  %v713 = vpop.f32.mrf.mxu0
  %v714 = vadd.f32 0.0, %v713
  %v715 = vpop.f32.mrf.mxu0
  %716 = vmatprep.mubr.f32.mxu0 0.0
  %717 = vmatmul.mubr.f32.gmra.mxu0 %v507
  %v718 = vpop.f32.mrf.mxu0
  %v719 = vadd.f32 0.0, %v718
  %v720 = vpop.f32.mrf.mxu0
  %721 = vmatprep.mubr.f32.mxu0 0.0
  %722 = vmatmul.mubr.f32.gmra.mxu0 %v510
  %v723 = vpop.f32.mrf.mxu0
  %v724 = vadd.f32 0.0, %v723
  %v725 = vpop.f32.mrf.mxu0
  %726 = vmatprep.mubr.f32.mxu0 0.0
  %727 = vmatmul.mubr.f32.gmra.mxu0 %v513
  %v728 = vpop.f32.mrf.mxu0
  %v729 = vadd.f32 0.0, %v728
  %v730 = vpop.f32.mrf.mxu0
  %731 = vmatprep.mubr.f32.mxu0 0.0
  %732 = vmatmul.mubr.f32.gmra.mxu0 %v516
  %v733 = vpop.f32.mrf.mxu0
  %v734 = vadd.f32 0.0, %v733
  %v735 = vpop.f32.mrf.mxu0
  %736 = vmatprep.mubr.f32.mxu0 0.0
  %737 = vmatmul.mubr.f32.gmra.mxu0 %v519
  %v738 = vpop.f32.mrf.mxu0
  %v739 = vadd.f32 0.0, %v738
  %v740 = vpop.f32.mrf.mxu0
  %741 = vmatprep.mubr.f32.mxu0 0.0
  %742 = vmatmul.mubr.f32.gmra.mxu0 %v522
  %v743 = vpop.f32.mrf.mxu0
  %v744 = vadd.f32 0.0, %v743
  %v745 = vpop.f32.mrf.mxu0
  %746 = vmatprep.mubr.f32.mxu0 0.0
  %747 = vmatmul.mubr.f32.gmra.mxu0 %v525
  %v748 = vpop.f32.mrf.mxu0
  %v749 = vadd.f32 0.0, %v748
  %v750 = vpop.f32.mrf.mxu0
  %751 = vmatprep.mubr.f32.mxu0 0.0
  %752 = vmatmul.mubr.f32.gmra.mxu0 %v528
  %v753 = vpop.f32.mrf.mxu0
  %v754 = vadd.f32 0.0, %v753
  %v755 = vpop.f32.mrf.mxu0
  %756 = vmatprep.mubr.f32.mxu0 0.0
  %757 = vmatmul.mubr.f32.gmra.mxu0 %v531
  %v758 = vpop.f32.mrf.mxu0
  %v759 = vadd.f32 0.0, %v758
  %v760 = vpop.f32.mrf.mxu0
  %761 = vmatprep.mubr.f32.mxu0 0.0
  %762 = vmatmul.mubr.f32.gmra.mxu0 %v534
  %v763 = vpop.f32.mrf.mxu0
  %v764 = vadd.f32 0.0, %v763
  %v765 = vpop.f32.mrf.mxu0
  %766 = vmatprep.mubr.f32.mxu0 0.0
  %767 = vmatmul.mubr.f32.gmra.mxu0 %v537
  %v768 = vpop.f32.mrf.mxu0
  %v769 = vadd.f32 0.0, %v768
  %v770 = vpop.f32.mrf.mxu0
  %771 = vmatprep.mubr.f32.mxu0 0.0
  %772 = vmatmul.mubr.f32.gmra.mxu0 %v540
  %v773 = vpop.f32.mrf.mxu0
  %v774 = vadd.f32 0.0, %v773
  %v775 = vpop.f32.mrf.mxu0
  %776 = vmatprep.mubr.f32.mxu0 0.0
  %777 = vmatmul.mubr.f32.gmra.mxu0 %v543
  %v778 = vpop.f32.mrf.mxu0
  %v779 = vadd.f32 0.0, %v778
  %v780 = vpop.f32.mrf.mxu0
  %781 = vmatprep.mubr.f32.mxu0 0.0
  %782 = vmatmul.mubr.f32.gmra.mxu0 %v546
  %v783 = vpop.f32.mrf.mxu0
  %v784 = vadd.f32 0.0, %v783
  %v785 = vpop.f32.mrf.mxu0
  %786 = vmatprep.mubr.f32.mxu0 0.0
  %787 = vmatmul.mubr.f32.gmra.mxu0 %v549
  %v788 = vpop.f32.mrf.mxu0
  %v789 = vadd.f32 0.0, %v788
  %v790 = vpop.f32.mrf.mxu0
  %791 = vmatprep.mubr.f32.mxu0 0.0
  %792 = vmatmul.mubr.f32.gmra.mxu0 %v552
  %v793 = vpop.f32.mrf.mxu0
  %v794 = vadd.f32 0.0, %v793
  %v795 = vpop.f32.mrf.mxu0
  %796 = vmatprep.mubr.f32.mxu0 0.0
  %797 = vmatmul.mubr.f32.gmra.mxu0 %v555
  %v798 = vpop.f32.mrf.mxu0
  %v799 = vadd.f32 0.0, %v798
  %v800 = vpop.f32.mrf.mxu0
  %801 = vdwg.mxu0
  %v802 = vmax.f32 %v234, %v624
  %v803 = vmax.f32 %v239, %v629
  %v804 = vmax.f32 %v244, %v634
  %v805 = vmax.f32 %v249, %v639
  %v806 = vmax.f32 %v254, %v644
  %v807 = vmax.f32 %v259, %v649
  %v808 = vmax.f32 %v264, %v654
  %v809 = vmax.f32 %v269, %v659
  %v810 = vmax.f32 %v274, %v664
  %v811 = vmax.f32 %v279, %v669
  %v812 = vmax.f32 %v284, %v674
  %v813 = vmax.f32 %v289, %v679
  %v814 = vmax.f32 %v294, %v684
  %v815 = vmax.f32 %v299, %v689
  %v816 = vmax.f32 %v304, %v694
  %v817 = vmax.f32 %v309, %v699
  %v818 = vmax.f32 %v314, %v704
  %v819 = vmax.f32 %v319, %v709
  %v820 = vmax.f32 %v324, %v714
  %v821 = vmax.f32 %v329, %v719
  %v822 = vmax.f32 %v334, %v724
  %v823 = vmax.f32 %v339, %v729
  %v824 = vmax.f32 %v344, %v734
  %v825 = vmax.f32 %v349, %v739
  %v826 = vmax.f32 %v354, %v744
  %v827 = vmax.f32 %v359, %v749
  %v828 = vmax.f32 %v364, %v754
  %v829 = vmax.f32 %v369, %v759
  %v830 = vmax.f32 %v374, %v764
  %v831 = vmax.f32 %v379, %v769
  %v832 = vmax.f32 %v384, %v774
  %v833 = vmax.f32 %v389, %v779
  %v834 = vmax.f32 %v394, %v784
  %v835 = vmax.f32 %v399, %v789
  %v836 = vmax.f32 %v404, %v794
  %v837 = vmax.f32 %v409, %v799
  %s838 = scalar_lea.vmem %s0, 576
  %v839 = vld [vmem:[%s838] sm:$0xff]
  %v840 = vld [vmem:[%s838 + $0x8] sm:$0xff]
  %v841 = vld [vmem:[%s838 + $0x10] sm:$0xff]
  %v842 = vld [vmem:[%s838 + $0x18] sm:$0xff]
  %v843 = vld [vmem:[%s838 + $0x20] sm:$0xff]
  %v844 = vld [vmem:[%s838 + $0x28] sm:$0xff]
  %v845 = vld [vmem:[%s838 + $0x30] sm:$0xff]
  %v846 = vld [vmem:[%s838 + $0x38] sm:$0xff]
  %v847 = vld [vmem:[%s838 + $0x40] sm:$0xff]
  %v848 = vld [vmem:[%s838 + $0x48] sm:$0xff]
  %v849 = vld [vmem:[%s838 + $0x50] sm:$0xff]
  %v850 = vld [vmem:[%s838 + $0x58] sm:$0xff]
  %v851 = vld [vmem:[%s838 + $0x60] sm:$0xff]
  %v852 = vld [vmem:[%s838 + $0x68] sm:$0xff]
  %v853 = vld [vmem:[%s838 + $0x70] sm:$0xff]
  %v854 = vld [vmem:[%s838 + $0x78] sm:$0xff]
  %v855 = vld [vmem:[%s838 + $0x80] sm:$0xff]
  %v856 = vld [vmem:[%s838 + $0x88] sm:$0xff]
  %v857 = vld [vmem:[%s838 + $0x90] sm:$0xff]
  %v858 = vld [vmem:[%s838 + $0x98] sm:$0xff]
  %v859 = vld [vmem:[%s838 + $0xa0] sm:$0xff]
  %v860 = vld [vmem:[%s838 + $0xa8] sm:$0xff]
  %v861 = vld [vmem:[%s838 + $0xb0] sm:$0xff]
  %v862 = vld [vmem:[%s838 + $0xb8] sm:$0xff]
  %v863 = vld [vmem:[%s838 + $0xc0] sm:$0xff]
  %v864 = vld [vmem:[%s838 + $0xc8] sm:$0xff]
  %v865 = vld [vmem:[%s838 + $0xd0] sm:$0xff]
  %v866 = vld [vmem:[%s838 + $0xd8] sm:$0xff]
  %v867 = vld [vmem:[%s838 + $0xe0] sm:$0xff]
  %v868 = vld [vmem:[%s838 + $0xe8] sm:$0xff]
  %v869 = vld [vmem:[%s838 + $0xf0] sm:$0xff]
  %v870 = vld [vmem:[%s838 + $0xf8] sm:$0xff]
  %v871 = vld [vmem:[%s838 + $0x100] sm:$0xff]
  %v872 = vld [vmem:[%s838 + $0x108] sm:$0xff]
  %v873 = vld [vmem:[%s838 + $0x110] sm:$0xff]
  %v874 = vld [vmem:[%s838 + $0x118] sm:$0xff]
  %v876 = vsel %vm54, %v839, 0
  %v879 = vsel %vm54, %v840, 0
  %v882 = vsel %vm54, %v841, 0
  %v885 = vsel %vm54, %v842, 0
  %v888 = vsel %vm54, %v843, 0
  %v891 = vsel %vm54, %v844, 0
  %v894 = vsel %vm54, %v845, 0
  %v897 = vsel %vm54, %v846, 0
  %v900 = vsel %vm54, %v847, 0
  %v903 = vsel %vm54, %v848, 0
  %v906 = vsel %vm54, %v849, 0
  %v909 = vsel %vm54, %v850, 0
  %v912 = vsel %vm54, %v851, 0
  %v915 = vsel %vm54, %v852, 0
  %v918 = vsel %vm54, %v853, 0
  %v921 = vsel %vm54, %v854, 0
  %v924 = vsel %vm54, %v855, 0
  %v927 = vsel %vm54, %v856, 0
  %v930 = vsel %vm54, %v857, 0
  %v933 = vsel %vm54, %v858, 0
  %v936 = vsel %vm54, %v859, 0
  %v939 = vsel %vm54, %v860, 0
  %v942 = vsel %vm54, %v861, 0
  %v945 = vsel %vm54, %v862, 0
  %v948 = vsel %vm54, %v863, 0
  %v951 = vsel %vm54, %v864, 0
  %v954 = vsel %vm54, %v865, 0
  %v957 = vsel %vm54, %v866, 0
  %v960 = vsel %vm54, %v867, 0
  %v963 = vsel %vm54, %v868, 0
  %v966 = vsel %vm54, %v869, 0
  %v969 = vsel %vm54, %v870, 0
  %v972 = vsel %vm54, %v871, 0
  %v975 = vsel %vm54, %v872, 0
  %v978 = vsel %vm54, %v873, 0
  %v981 = vsel %vm54, %v874, 0
  %983 = vmatprep.subr.mxu0 0.0
  %984 = vmatpush1.msra.mxu0 0.0
  %985 = vmatprep.subr.mxu0 0.0
  %986 = vmatpush1.msra.mxu0 0.0
  %987 = vmatprep.subr.mxu0 0.0
  %988 = vmatpush1.msra.mxu0 0.0
  %989 = vmatprep.subr.mxu0 0.0
  %990 = vmatpush1.msra.mxu0 0.0
  %991 = vmatprep.subr.mxu0 0.0
  %992 = vmatpush1.msra.mxu0 0.0
  %993 = vmatprep.subr.mxu0 0.0
  %994 = vmatpush1.msra.mxu0 0.0
  %995 = vmatprep.subr.mxu0 0.0
  %996 = vmatpush1.msra.mxu0 0.0
  %997 = vmatprep.subr.mxu0 0.0
  %998 = vmatpush1.msra.mxu0 0.0
  %999 = vmatprep.subr.mxu0 0.0
  %1000 = vmatpush1.msra.mxu0 0.0
  %1001 = vmatprep.subr.mxu0 0.0
  %1002 = vmatpush1.msra.mxu0 0.0
  %1003 = vmatprep.subr.mxu0 0.0
  %1004 = vmatpush1.msra.mxu0 0.0
  %1005 = vmatprep.subr.mxu0 0.0
  %1006 = vmatpush1.msra.mxu0 0.0
  %1007 = vmatprep.subr.mxu0 0.0
  %1008 = vmatpush1.msra.mxu0 %v165
  %1009 = vmatprep.subr.mxu0 0.0
  %1010 = vmatpush1.msra.mxu0 %v16
  %1011 = vmatprep.subr.mxu0 0.0
  %1012 = vmatpush1.msra.mxu0 %v15
  %1013 = vmatprep.subr.mxu0 0.0
  %1014 = vmatpush1.msra.mxu0 %v14
  %1015 = vmatprep.subr.mxu0 0.0
  %1016 = vmatpush2.msra.mxu0 0.0
  %1017 = vmatprep.subr.mxu0 0.0
  %1018 = vmatpush2.msra.mxu0 0.0
  %1019 = vmatprep.subr.mxu0 0.0
  %1020 = vmatpush2.msra.mxu0 0.0
  %1021 = vmatprep.subr.mxu0 0.0
  %1022 = vmatpush2.msra.mxu0 0.0
  %1023 = vmatprep.subr.mxu0 0.0
  %1024 = vmatpush2.msra.mxu0 0.0
  %1025 = vmatprep.subr.mxu0 0.0
  %1026 = vmatpush2.msra.mxu0 0.0
  %1027 = vmatprep.subr.mxu0 0.0
  %1028 = vmatpush2.msra.mxu0 0.0
  %1029 = vmatprep.subr.mxu0 0.0
  %1030 = vmatpush2.msra.mxu0 0.0
  %1031 = vmatprep.subr.mxu0 0.0
  %1032 = vmatpush2.msra.mxu0 0.0
  %1033 = vmatprep.subr.mxu0 0.0
  %1034 = vmatpush2.msra.mxu0 0.0
  %1035 = vmatprep.subr.mxu0 0.0
  %1036 = vmatpush2.msra.mxu0 0.0
  %1037 = vmatprep.subr.mxu0 0.0
  %1038 = vmatpush2.msra.mxu0 0.0
  %1039 = vmatprep.subr.mxu0 0.0
  %1040 = vmatpush2.msra.mxu0 0.0
  %1041 = vmatprep.subr.mxu0 0.0
  %1042 = vmatpush2.msra.mxu0 0.0
  %1043 = vmatprep.subr.mxu0 0.0
  %1044 = vmatpush2.msra.mxu0 0.0
  %1045 = vmatprep.subr.mxu0 0.0
  %1046 = vmatpush2.msra.mxu0 0.0
  %1047 = vmatprep.mubr.f32.mxu0 0.0
  %1048 = vmatmul.mubr.f32.gmra.mxu0 %v876
  %v1049 = vpop.f32.mrf.mxu0
  %v1050 = vadd.f32 0.0, %v1049
  %v1051 = vpop.f32.mrf.mxu0
  %1052 = vmatprep.mubr.f32.mxu0 0.0
  %1053 = vmatmul.mubr.f32.gmra.mxu0 %v879
  %v1054 = vpop.f32.mrf.mxu0
  %v1055 = vadd.f32 0.0, %v1054
  %v1056 = vpop.f32.mrf.mxu0
  %1057 = vmatprep.mubr.f32.mxu0 0.0
  %1058 = vmatmul.mubr.f32.gmra.mxu0 %v882
  %v1059 = vpop.f32.mrf.mxu0
  %v1060 = vadd.f32 0.0, %v1059
  %v1061 = vpop.f32.mrf.mxu0
  %1062 = vmatprep.mubr.f32.mxu0 0.0
  %1063 = vmatmul.mubr.f32.gmra.mxu0 %v885
  %v1064 = vpop.f32.mrf.mxu0
  %v1065 = vadd.f32 0.0, %v1064
  %v1066 = vpop.f32.mrf.mxu0
  %1067 = vmatprep.mubr.f32.mxu0 0.0
  %1068 = vmatmul.mubr.f32.gmra.mxu0 %v888
  %v1069 = vpop.f32.mrf.mxu0
  %v1070 = vadd.f32 0.0, %v1069
  %v1071 = vpop.f32.mrf.mxu0
  %1072 = vmatprep.mubr.f32.mxu0 0.0
  %1073 = vmatmul.mubr.f32.gmra.mxu0 %v891
  %v1074 = vpop.f32.mrf.mxu0
  %v1075 = vadd.f32 0.0, %v1074
  %v1076 = vpop.f32.mrf.mxu0
  %1077 = vmatprep.mubr.f32.mxu0 0.0
  %1078 = vmatmul.mubr.f32.gmra.mxu0 %v894
  %v1079 = vpop.f32.mrf.mxu0
  %v1080 = vadd.f32 0.0, %v1079
  %v1081 = vpop.f32.mrf.mxu0
  %1082 = vmatprep.mubr.f32.mxu0 0.0
  %1083 = vmatmul.mubr.f32.gmra.mxu0 %v897
  %v1084 = vpop.f32.mrf.mxu0
  %v1085 = vadd.f32 0.0, %v1084
  %v1086 = vpop.f32.mrf.mxu0
  %1087 = vmatprep.mubr.f32.mxu0 0.0
  %1088 = vmatmul.mubr.f32.gmra.mxu0 %v900
  %v1089 = vpop.f32.mrf.mxu0
  %v1090 = vadd.f32 0.0, %v1089
  %v1091 = vpop.f32.mrf.mxu0
  %1092 = vmatprep.mubr.f32.mxu0 0.0
  %1093 = vmatmul.mubr.f32.gmra.mxu0 %v903
  %v1094 = vpop.f32.mrf.mxu0
  %v1095 = vadd.f32 0.0, %v1094
  %v1096 = vpop.f32.mrf.mxu0
  %1097 = vmatprep.mubr.f32.mxu0 0.0
  %1098 = vmatmul.mubr.f32.gmra.mxu0 %v906
  %v1099 = vpop.f32.mrf.mxu0
  %v1100 = vadd.f32 0.0, %v1099
  %v1101 = vpop.f32.mrf.mxu0
  %1102 = vmatprep.mubr.f32.mxu0 0.0
  %1103 = vmatmul.mubr.f32.gmra.mxu0 %v909
  %v1104 = vpop.f32.mrf.mxu0
  %v1105 = vadd.f32 0.0, %v1104
  %v1106 = vpop.f32.mrf.mxu0
  %1107 = vmatprep.mubr.f32.mxu0 0.0
  %1108 = vmatmul.mubr.f32.gmra.mxu0 %v912
  %v1109 = vpop.f32.mrf.mxu0
  %v1110 = vadd.f32 0.0, %v1109
  %v1111 = vpop.f32.mrf.mxu0
  %1112 = vmatprep.mubr.f32.mxu0 0.0
  %1113 = vmatmul.mubr.f32.gmra.mxu0 %v915
  %v1114 = vpop.f32.mrf.mxu0
  %v1115 = vadd.f32 0.0, %v1114
  %v1116 = vpop.f32.mrf.mxu0
  %1117 = vmatprep.mubr.f32.mxu0 0.0
  %1118 = vmatmul.mubr.f32.gmra.mxu0 %v918
  %v1119 = vpop.f32.mrf.mxu0
  %v1120 = vadd.f32 0.0, %v1119
  %v1121 = vpop.f32.mrf.mxu0
  %1122 = vmatprep.mubr.f32.mxu0 0.0
  %1123 = vmatmul.mubr.f32.gmra.mxu0 %v921
  %v1124 = vpop.f32.mrf.mxu0
  %v1125 = vadd.f32 0.0, %v1124
  %v1126 = vpop.f32.mrf.mxu0
  %1127 = vmatprep.mubr.f32.mxu0 0.0
  %1128 = vmatmul.mubr.f32.gmra.mxu0 %v924
  %v1129 = vpop.f32.mrf.mxu0
  %v1130 = vadd.f32 0.0, %v1129
  %v1131 = vpop.f32.mrf.mxu0
  %1132 = vmatprep.mubr.f32.mxu0 0.0
  %1133 = vmatmul.mubr.f32.gmra.mxu0 %v927
  %v1134 = vpop.f32.mrf.mxu0
  %v1135 = vadd.f32 0.0, %v1134
  %v1136 = vpop.f32.mrf.mxu0
  %1137 = vmatprep.mubr.f32.mxu0 0.0
  %1138 = vmatmul.mubr.f32.gmra.mxu0 %v930
  %v1139 = vpop.f32.mrf.mxu0
  %v1140 = vadd.f32 0.0, %v1139
  %v1141 = vpop.f32.mrf.mxu0
  %1142 = vmatprep.mubr.f32.mxu0 0.0
  %1143 = vmatmul.mubr.f32.gmra.mxu0 %v933
  %v1144 = vpop.f32.mrf.mxu0
  %v1145 = vadd.f32 0.0, %v1144
  %v1146 = vpop.f32.mrf.mxu0
  %1147 = vmatprep.mubr.f32.mxu0 0.0
  %1148 = vmatmul.mubr.f32.gmra.mxu0 %v936
  %v1149 = vpop.f32.mrf.mxu0
  %v1150 = vadd.f32 0.0, %v1149
  %v1151 = vpop.f32.mrf.mxu0
  %1152 = vmatprep.mubr.f32.mxu0 0.0
  %1153 = vmatmul.mubr.f32.gmra.mxu0 %v939
  %v1154 = vpop.f32.mrf.mxu0
  %v1155 = vadd.f32 0.0, %v1154
  %v1156 = vpop.f32.mrf.mxu0
  %1157 = vmatprep.mubr.f32.mxu0 0.0
  %1158 = vmatmul.mubr.f32.gmra.mxu0 %v942
  %v1159 = vpop.f32.mrf.mxu0
  %v1160 = vadd.f32 0.0, %v1159
  %v1161 = vpop.f32.mrf.mxu0
  %1162 = vmatprep.mubr.f32.mxu0 0.0
  %1163 = vmatmul.mubr.f32.gmra.mxu0 %v945
  %v1164 = vpop.f32.mrf.mxu0
  %v1165 = vadd.f32 0.0, %v1164
  %v1166 = vpop.f32.mrf.mxu0
  %1167 = vmatprep.mubr.f32.mxu0 0.0
  %1168 = vmatmul.mubr.f32.gmra.mxu0 %v948
  %v1169 = vpop.f32.mrf.mxu0
  %v1170 = vadd.f32 0.0, %v1169
  %v1171 = vpop.f32.mrf.mxu0
  %1172 = vmatprep.mubr.f32.mxu0 0.0
  %1173 = vmatmul.mubr.f32.gmra.mxu0 %v951
  %v1174 = vpop.f32.mrf.mxu0
  %v1175 = vadd.f32 0.0, %v1174
  %v1176 = vpop.f32.mrf.mxu0
  %1177 = vmatprep.mubr.f32.mxu0 0.0
  %1178 = vmatmul.mubr.f32.gmra.mxu0 %v954
  %v1179 = vpop.f32.mrf.mxu0
  %v1180 = vadd.f32 0.0, %v1179
  %v1181 = vpop.f32.mrf.mxu0
  %1182 = vmatprep.mubr.f32.mxu0 0.0
  %1183 = vmatmul.mubr.f32.gmra.mxu0 %v957
  %v1184 = vpop.f32.mrf.mxu0
  %v1185 = vadd.f32 0.0, %v1184
  %v1186 = vpop.f32.mrf.mxu0
  %1187 = vmatprep.mubr.f32.mxu0 0.0
  %1188 = vmatmul.mubr.f32.gmra.mxu0 %v960
  %v1189 = vpop.f32.mrf.mxu0
  %v1190 = vadd.f32 0.0, %v1189
  %v1191 = vpop.f32.mrf.mxu0
  %1192 = vmatprep.mubr.f32.mxu0 0.0
  %1193 = vmatmul.mubr.f32.gmra.mxu0 %v963
  %v1194 = vpop.f32.mrf.mxu0
  %v1195 = vadd.f32 0.0, %v1194
  %v1196 = vpop.f32.mrf.mxu0
  %1197 = vmatprep.mubr.f32.mxu0 0.0
  %1198 = vmatmul.mubr.f32.gmra.mxu0 %v966
  %v1199 = vpop.f32.mrf.mxu0
  %v1200 = vadd.f32 0.0, %v1199
  %v1201 = vpop.f32.mrf.mxu0
  %1202 = vmatprep.mubr.f32.mxu0 0.0
  %1203 = vmatmul.mubr.f32.gmra.mxu0 %v969
  %v1204 = vpop.f32.mrf.mxu0
  %v1205 = vadd.f32 0.0, %v1204
  %v1206 = vpop.f32.mrf.mxu0
  %1207 = vmatprep.mubr.f32.mxu0 0.0
  %1208 = vmatmul.mubr.f32.gmra.mxu0 %v972
  %v1209 = vpop.f32.mrf.mxu0
  %v1210 = vadd.f32 0.0, %v1209
  %v1211 = vpop.f32.mrf.mxu0
  %1212 = vmatprep.mubr.f32.mxu0 0.0
  %1213 = vmatmul.mubr.f32.gmra.mxu0 %v975
  %v1214 = vpop.f32.mrf.mxu0
  %v1215 = vadd.f32 0.0, %v1214
  %v1216 = vpop.f32.mrf.mxu0
  %1217 = vmatprep.mubr.f32.mxu0 0.0
  %1218 = vmatmul.mubr.f32.gmra.mxu0 %v978
  %v1219 = vpop.f32.mrf.mxu0
  %v1220 = vadd.f32 0.0, %v1219
  %v1221 = vpop.f32.mrf.mxu0
  %1222 = vmatprep.mubr.f32.mxu0 0.0
  %1223 = vmatmul.mubr.f32.gmra.mxu0 %v981
  %v1224 = vpop.f32.mrf.mxu0
  %v1225 = vadd.f32 0.0, %v1224
  %v1226 = vpop.f32.mrf.mxu0
  %1227 = vdwg.mxu0
  %v1228 = vmax.f32 %v802, %v1050
  %v1229 = vmax.f32 %v803, %v1055
  %v1230 = vmax.f32 %v804, %v1060
  %v1231 = vmax.f32 %v805, %v1065
  %v1232 = vmax.f32 %v806, %v1070
  %v1233 = vmax.f32 %v807, %v1075
  %v1234 = vmax.f32 %v808, %v1080
  %v1235 = vmax.f32 %v809, %v1085
  %v1236 = vmax.f32 %v810, %v1090
  %v1237 = vmax.f32 %v811, %v1095
  %v1238 = vmax.f32 %v812, %v1100
  %v1239 = vmax.f32 %v813, %v1105
  %v1240 = vmax.f32 %v814, %v1110
  %v1241 = vmax.f32 %v815, %v1115
  %v1242 = vmax.f32 %v816, %v1120
  %v1243 = vmax.f32 %v817, %v1125
  %v1244 = vmax.f32 %v818, %v1130
  %v1245 = vmax.f32 %v819, %v1135
  %v1246 = vmax.f32 %v820, %v1140
  %v1247 = vmax.f32 %v821, %v1145
  %v1248 = vmax.f32 %v822, %v1150
  %v1249 = vmax.f32 %v823, %v1155
  %v1250 = vmax.f32 %v824, %v1160
  %v1251 = vmax.f32 %v825, %v1165
  %v1252 = vmax.f32 %v826, %v1170
  %v1253 = vmax.f32 %v827, %v1175
  %v1254 = vmax.f32 %v828, %v1180
  %v1255 = vmax.f32 %v829, %v1185
  %v1256 = vmax.f32 %v830, %v1190
  %v1257 = vmax.f32 %v831, %v1195
  %v1258 = vmax.f32 %v832, %v1200
  %v1259 = vmax.f32 %v833, %v1205
  %v1260 = vmax.f32 %v834, %v1210
  %v1261 = vmax.f32 %v835, %v1215
  %v1262 = vmax.f32 %v836, %v1220
  %v1263 = vmax.f32 %v837, %v1225
  %s1264 = scalar_lea.vmem %s0, 864
  %v1265 = vld [vmem:[%s1264] sm:$0xff]
  %v1266 = vld [vmem:[%s1264 + $0x8] sm:$0xff]
  %v1267 = vld [vmem:[%s1264 + $0x10] sm:$0xff]
  %v1268 = vld [vmem:[%s1264 + $0x18] sm:$0xff]
  %v1269 = vld [vmem:[%s1264 + $0x20] sm:$0xff]
  %v1270 = vld [vmem:[%s1264 + $0x28] sm:$0xff]
  %v1271 = vld [vmem:[%s1264 + $0x30] sm:$0xff]
  %v1272 = vld [vmem:[%s1264 + $0x38] sm:$0xff]
  %v1273 = vld [vmem:[%s1264 + $0x40] sm:$0xff]
  %v1274 = vld [vmem:[%s1264 + $0x48] sm:$0xff]
  %v1275 = vld [vmem:[%s1264 + $0x50] sm:$0xff]
  %v1276 = vld [vmem:[%s1264 + $0x58] sm:$0xff]
  %v1277 = vld [vmem:[%s1264 + $0x60] sm:$0xff]
  %v1278 = vld [vmem:[%s1264 + $0x68] sm:$0xff]
  %v1279 = vld [vmem:[%s1264 + $0x70] sm:$0xff]
  %v1280 = vld [vmem:[%s1264 + $0x78] sm:$0xff]
  %v1281 = vld [vmem:[%s1264 + $0x80] sm:$0xff]
  %v1282 = vld [vmem:[%s1264 + $0x88] sm:$0xff]
  %v1283 = vld [vmem:[%s1264 + $0x90] sm:$0xff]
  %v1284 = vld [vmem:[%s1264 + $0x98] sm:$0xff]
  %v1285 = vld [vmem:[%s1264 + $0xa0] sm:$0xff]
  %v1286 = vld [vmem:[%s1264 + $0xa8] sm:$0xff]
  %v1287 = vld [vmem:[%s1264 + $0xb0] sm:$0xff]
  %v1288 = vld [vmem:[%s1264 + $0xb8] sm:$0xff]
  %v1289 = vld [vmem:[%s1264 + $0xc0] sm:$0xff]
  %v1290 = vld [vmem:[%s1264 + $0xc8] sm:$0xff]
  %v1291 = vld [vmem:[%s1264 + $0xd0] sm:$0xff]
  %v1292 = vld [vmem:[%s1264 + $0xd8] sm:$0xff]
  %v1293 = vld [vmem:[%s1264 + $0xe0] sm:$0xff]
  %v1294 = vld [vmem:[%s1264 + $0xe8] sm:$0xff]
  %v1295 = vld [vmem:[%s1264 + $0xf0] sm:$0xff]
  %v1296 = vld [vmem:[%s1264 + $0xf8] sm:$0xff]
  %v1297 = vld [vmem:[%s1264 + $0x100] sm:$0xff]
  %v1298 = vld [vmem:[%s1264 + $0x108] sm:$0xff]
  %v1299 = vld [vmem:[%s1264 + $0x110] sm:$0xff]
  %v1300 = vld [vmem:[%s1264 + $0x118] sm:$0xff]
  %v1302 = vsel %vm54, %v1265, 0
  %v1305 = vsel %vm54, %v1266, 0
  %v1308 = vsel %vm54, %v1267, 0
  %v1311 = vsel %vm54, %v1268, 0
  %v1314 = vsel %vm54, %v1269, 0
  %v1317 = vsel %vm54, %v1270, 0
  %v1320 = vsel %vm54, %v1271, 0
  %v1323 = vsel %vm54, %v1272, 0
  %v1326 = vsel %vm54, %v1273, 0
  %v1329 = vsel %vm54, %v1274, 0
  %v1332 = vsel %vm54, %v1275, 0
  %v1335 = vsel %vm54, %v1276, 0
  %v1338 = vsel %vm54, %v1277, 0
  %v1341 = vsel %vm54, %v1278, 0
  %v1344 = vsel %vm54, %v1279, 0
  %v1347 = vsel %vm54, %v1280, 0
  %v1350 = vsel %vm54, %v1281, 0
  %v1353 = vsel %vm54, %v1282, 0
  %v1356 = vsel %vm54, %v1283, 0
  %v1359 = vsel %vm54, %v1284, 0
  %v1362 = vsel %vm54, %v1285, 0
  %v1365 = vsel %vm54, %v1286, 0
  %v1368 = vsel %vm54, %v1287, 0
  %v1371 = vsel %vm54, %v1288, 0
  %v1374 = vsel %vm54, %v1289, 0
  %v1377 = vsel %vm54, %v1290, 0
  %v1380 = vsel %vm54, %v1291, 0
  %v1383 = vsel %vm54, %v1292, 0
  %v1386 = vsel %vm54, %v1293, 0
  %v1389 = vsel %vm54, %v1294, 0
  %v1392 = vsel %vm54, %v1295, 0
  %v1395 = vsel %vm54, %v1296, 0
  %v1398 = vsel %vm54, %v1297, 0
  %v1401 = vsel %vm54, %v1298, 0
  %v1404 = vsel %vm54, %v1299, 0
  %v1407 = vsel %vm54, %v1300, 0
  %1409 = vmatprep.subr.mxu0 0.0
  %1410 = vmatpush1.msra.mxu0 0.0
  %1411 = vmatprep.subr.mxu0 0.0
  %1412 = vmatpush1.msra.mxu0 0.0
  %1413 = vmatprep.subr.mxu0 0.0
  %1414 = vmatpush1.msra.mxu0 0.0
  %1415 = vmatprep.subr.mxu0 0.0
  %1416 = vmatpush1.msra.mxu0 0.0
  %1417 = vmatprep.subr.mxu0 0.0
  %1418 = vmatpush1.msra.mxu0 0.0
  %1419 = vmatprep.subr.mxu0 0.0
  %1420 = vmatpush1.msra.mxu0 0.0
  %1421 = vmatprep.subr.mxu0 0.0
  %1422 = vmatpush1.msra.mxu0 0.0
  %1423 = vmatprep.subr.mxu0 0.0
  %1424 = vmatpush1.msra.mxu0 0.0
  %1425 = vmatprep.subr.mxu0 0.0
  %1426 = vmatpush1.msra.mxu0 0.0
  %1427 = vmatprep.subr.mxu0 0.0
  %1428 = vmatpush1.msra.mxu0 0.0
  %1429 = vmatprep.subr.mxu0 0.0
  %1430 = vmatpush1.msra.mxu0 0.0
  %1431 = vmatprep.subr.mxu0 0.0
  %1432 = vmatpush1.msra.mxu0 0.0
  %1433 = vmatprep.subr.mxu0 0.0
  %1434 = vmatpush1.msra.mxu0 %v165
  %1435 = vmatprep.subr.mxu0 0.0
  %1436 = vmatpush1.msra.mxu0 %v16
  %1437 = vmatprep.subr.mxu0 0.0
  %1438 = vmatpush1.msra.mxu0 %v15
  %1439 = vmatprep.subr.mxu0 0.0
  %1440 = vmatpush1.msra.mxu0 %v14
  %1441 = vmatprep.subr.mxu0 0.0
  %1442 = vmatpush2.msra.mxu0 0.0
  %1443 = vmatprep.subr.mxu0 0.0
  %1444 = vmatpush2.msra.mxu0 0.0
  %1445 = vmatprep.subr.mxu0 0.0
  %1446 = vmatpush2.msra.mxu0 0.0
  %1447 = vmatprep.subr.mxu0 0.0
  %1448 = vmatpush2.msra.mxu0 0.0
  %1449 = vmatprep.subr.mxu0 0.0
  %1450 = vmatpush2.msra.mxu0 0.0
  %1451 = vmatprep.subr.mxu0 0.0
  %1452 = vmatpush2.msra.mxu0 0.0
  %1453 = vmatprep.subr.mxu0 0.0
  %1454 = vmatpush2.msra.mxu0 0.0
  %1455 = vmatprep.subr.mxu0 0.0
  %1456 = vmatpush2.msra.mxu0 0.0
  %1457 = vmatprep.subr.mxu0 0.0
  %1458 = vmatpush2.msra.mxu0 0.0
  %1459 = vmatprep.subr.mxu0 0.0
  %1460 = vmatpush2.msra.mxu0 0.0
  %1461 = vmatprep.subr.mxu0 0.0
  %1462 = vmatpush2.msra.mxu0 0.0
  %1463 = vmatprep.subr.mxu0 0.0
  %1464 = vmatpush2.msra.mxu0 0.0
  %1465 = vmatprep.subr.mxu0 0.0
  %1466 = vmatpush2.msra.mxu0 0.0
  %1467 = vmatprep.subr.mxu0 0.0
  %1468 = vmatpush2.msra.mxu0 0.0
  %1469 = vmatprep.subr.mxu0 0.0
  %1470 = vmatpush2.msra.mxu0 0.0
  %1471 = vmatprep.subr.mxu0 0.0
  %1472 = vmatpush2.msra.mxu0 0.0
  %1473 = vmatprep.mubr.f32.mxu0 0.0
  %1474 = vmatmul.mubr.f32.gmra.mxu0 %v1302
  %v1475 = vpop.f32.mrf.mxu0
  %v1476 = vadd.f32 0.0, %v1475
  %v1477 = vpop.f32.mrf.mxu0
  %1478 = vmatprep.mubr.f32.mxu0 0.0
  %1479 = vmatmul.mubr.f32.gmra.mxu0 %v1305
  %v1480 = vpop.f32.mrf.mxu0
  %v1481 = vadd.f32 0.0, %v1480
  %v1482 = vpop.f32.mrf.mxu0
  %1483 = vmatprep.mubr.f32.mxu0 0.0
  %1484 = vmatmul.mubr.f32.gmra.mxu0 %v1308
  %v1485 = vpop.f32.mrf.mxu0
  %v1486 = vadd.f32 0.0, %v1485
  %v1487 = vpop.f32.mrf.mxu0
  %1488 = vmatprep.mubr.f32.mxu0 0.0
  %1489 = vmatmul.mubr.f32.gmra.mxu0 %v1311
  %v1490 = vpop.f32.mrf.mxu0
  %v1491 = vadd.f32 0.0, %v1490
  %v1492 = vpop.f32.mrf.mxu0
  %1493 = vmatprep.mubr.f32.mxu0 0.0
  %1494 = vmatmul.mubr.f32.gmra.mxu0 %v1314
  %v1495 = vpop.f32.mrf.mxu0
  %v1496 = vadd.f32 0.0, %v1495
  %v1497 = vpop.f32.mrf.mxu0
  %1498 = vmatprep.mubr.f32.mxu0 0.0
  %1499 = vmatmul.mubr.f32.gmra.mxu0 %v1317
  %v1500 = vpop.f32.mrf.mxu0
  %v1501 = vadd.f32 0.0, %v1500
  %v1502 = vpop.f32.mrf.mxu0
  %1503 = vmatprep.mubr.f32.mxu0 0.0
  %1504 = vmatmul.mubr.f32.gmra.mxu0 %v1320
  %v1505 = vpop.f32.mrf.mxu0
  %v1506 = vadd.f32 0.0, %v1505
  %v1507 = vpop.f32.mrf.mxu0
  %1508 = vmatprep.mubr.f32.mxu0 0.0
  %1509 = vmatmul.mubr.f32.gmra.mxu0 %v1323
  %v1510 = vpop.f32.mrf.mxu0
  %v1511 = vadd.f32 0.0, %v1510
  %v1512 = vpop.f32.mrf.mxu0
  %1513 = vmatprep.mubr.f32.mxu0 0.0
  %1514 = vmatmul.mubr.f32.gmra.mxu0 %v1326
  %v1515 = vpop.f32.mrf.mxu0
  %v1516 = vadd.f32 0.0, %v1515
  %v1517 = vpop.f32.mrf.mxu0
  %1518 = vmatprep.mubr.f32.mxu0 0.0
  %1519 = vmatmul.mubr.f32.gmra.mxu0 %v1329
  %v1520 = vpop.f32.mrf.mxu0
  %v1521 = vadd.f32 0.0, %v1520
  %v1522 = vpop.f32.mrf.mxu0
  %1523 = vmatprep.mubr.f32.mxu0 0.0
  %1524 = vmatmul.mubr.f32.gmra.mxu0 %v1332
  %v1525 = vpop.f32.mrf.mxu0
  %v1526 = vadd.f32 0.0, %v1525
  %v1527 = vpop.f32.mrf.mxu0
  %1528 = vmatprep.mubr.f32.mxu0 0.0
  %1529 = vmatmul.mubr.f32.gmra.mxu0 %v1335
  %v1530 = vpop.f32.mrf.mxu0
  %v1531 = vadd.f32 0.0, %v1530
  %v1532 = vpop.f32.mrf.mxu0
  %1533 = vmatprep.mubr.f32.mxu0 0.0
  %1534 = vmatmul.mubr.f32.gmra.mxu0 %v1338
  %v1535 = vpop.f32.mrf.mxu0
  %v1536 = vadd.f32 0.0, %v1535
  %v1537 = vpop.f32.mrf.mxu0
  %1538 = vmatprep.mubr.f32.mxu0 0.0
  %1539 = vmatmul.mubr.f32.gmra.mxu0 %v1341
  %v1540 = vpop.f32.mrf.mxu0
  %v1541 = vadd.f32 0.0, %v1540
  %v1542 = vpop.f32.mrf.mxu0
  %1543 = vmatprep.mubr.f32.mxu0 0.0
  %1544 = vmatmul.mubr.f32.gmra.mxu0 %v1344
  %v1545 = vpop.f32.mrf.mxu0
  %v1546 = vadd.f32 0.0, %v1545
  %v1547 = vpop.f32.mrf.mxu0
  %1548 = vmatprep.mubr.f32.mxu0 0.0
  %1549 = vmatmul.mubr.f32.gmra.mxu0 %v1347
  %v1550 = vpop.f32.mrf.mxu0
  %v1551 = vadd.f32 0.0, %v1550
  %v1552 = vpop.f32.mrf.mxu0
  %1553 = vmatprep.mubr.f32.mxu0 0.0
  %1554 = vmatmul.mubr.f32.gmra.mxu0 %v1350
  %v1555 = vpop.f32.mrf.mxu0
  %v1556 = vadd.f32 0.0, %v1555
  %v1557 = vpop.f32.mrf.mxu0
  %1558 = vmatprep.mubr.f32.mxu0 0.0
  %1559 = vmatmul.mubr.f32.gmra.mxu0 %v1353
  %v1560 = vpop.f32.mrf.mxu0
  %v1561 = vadd.f32 0.0, %v1560
  %v1562 = vpop.f32.mrf.mxu0
  %1563 = vmatprep.mubr.f32.mxu0 0.0
  %1564 = vmatmul.mubr.f32.gmra.mxu0 %v1356
  %v1565 = vpop.f32.mrf.mxu0
  %v1566 = vadd.f32 0.0, %v1565
  %v1567 = vpop.f32.mrf.mxu0
  %1568 = vmatprep.mubr.f32.mxu0 0.0
  %1569 = vmatmul.mubr.f32.gmra.mxu0 %v1359
  %v1570 = vpop.f32.mrf.mxu0
  %v1571 = vadd.f32 0.0, %v1570
  %v1572 = vpop.f32.mrf.mxu0
  %1573 = vmatprep.mubr.f32.mxu0 0.0
  %1574 = vmatmul.mubr.f32.gmra.mxu0 %v1362
  %v1575 = vpop.f32.mrf.mxu0
  %v1576 = vadd.f32 0.0, %v1575
  %v1577 = vpop.f32.mrf.mxu0
  %1578 = vmatprep.mubr.f32.mxu0 0.0
  %1579 = vmatmul.mubr.f32.gmra.mxu0 %v1365
  %v1580 = vpop.f32.mrf.mxu0
  %v1581 = vadd.f32 0.0, %v1580
  %v1582 = vpop.f32.mrf.mxu0
  %1583 = vmatprep.mubr.f32.mxu0 0.0
  %1584 = vmatmul.mubr.f32.gmra.mxu0 %v1368
  %v1585 = vpop.f32.mrf.mxu0
  %v1586 = vadd.f32 0.0, %v1585
  %v1587 = vpop.f32.mrf.mxu0
  %1588 = vmatprep.mubr.f32.mxu0 0.0
  %1589 = vmatmul.mubr.f32.gmra.mxu0 %v1371
  %v1590 = vpop.f32.mrf.mxu0
  %v1591 = vadd.f32 0.0, %v1590
  %v1592 = vpop.f32.mrf.mxu0
  %1593 = vmatprep.mubr.f32.mxu0 0.0
  %1594 = vmatmul.mubr.f32.gmra.mxu0 %v1374
  %v1595 = vpop.f32.mrf.mxu0
  %v1596 = vadd.f32 0.0, %v1595
  %v1597 = vpop.f32.mrf.mxu0
  %1598 = vmatprep.mubr.f32.mxu0 0.0
  %1599 = vmatmul.mubr.f32.gmra.mxu0 %v1377
  %v1600 = vpop.f32.mrf.mxu0
  %v1601 = vadd.f32 0.0, %v1600
  %v1602 = vpop.f32.mrf.mxu0
  %1603 = vmatprep.mubr.f32.mxu0 0.0
  %1604 = vmatmul.mubr.f32.gmra.mxu0 %v1380
  %v1605 = vpop.f32.mrf.mxu0
  %v1606 = vadd.f32 0.0, %v1605
  %v1607 = vpop.f32.mrf.mxu0
  %1608 = vmatprep.mubr.f32.mxu0 0.0
  %1609 = vmatmul.mubr.f32.gmra.mxu0 %v1383
  %v1610 = vpop.f32.mrf.mxu0
  %v1611 = vadd.f32 0.0, %v1610
  %v1612 = vpop.f32.mrf.mxu0
  %1613 = vmatprep.mubr.f32.mxu0 0.0
  %1614 = vmatmul.mubr.f32.gmra.mxu0 %v1386
  %v1615 = vpop.f32.mrf.mxu0
  %v1616 = vadd.f32 0.0, %v1615
  %v1617 = vpop.f32.mrf.mxu0
  %1618 = vmatprep.mubr.f32.mxu0 0.0
  %1619 = vmatmul.mubr.f32.gmra.mxu0 %v1389
  %v1620 = vpop.f32.mrf.mxu0
  %v1621 = vadd.f32 0.0, %v1620
  %v1622 = vpop.f32.mrf.mxu0
  %1623 = vmatprep.mubr.f32.mxu0 0.0
  %1624 = vmatmul.mubr.f32.gmra.mxu0 %v1392
  %v1625 = vpop.f32.mrf.mxu0
  %v1626 = vadd.f32 0.0, %v1625
  %v1627 = vpop.f32.mrf.mxu0
  %1628 = vmatprep.mubr.f32.mxu0 0.0
  %1629 = vmatmul.mubr.f32.gmra.mxu0 %v1395
  %v1630 = vpop.f32.mrf.mxu0
  %v1631 = vadd.f32 0.0, %v1630
  %v1632 = vpop.f32.mrf.mxu0
  %1633 = vmatprep.mubr.f32.mxu0 0.0
  %1634 = vmatmul.mubr.f32.gmra.mxu0 %v1398
  %v1635 = vpop.f32.mrf.mxu0
  %v1636 = vadd.f32 0.0, %v1635
  %v1637 = vpop.f32.mrf.mxu0
  %1638 = vmatprep.mubr.f32.mxu0 0.0
  %1639 = vmatmul.mubr.f32.gmra.mxu0 %v1401
  %v1640 = vpop.f32.mrf.mxu0
  %v1641 = vadd.f32 0.0, %v1640
  %v1642 = vpop.f32.mrf.mxu0
  %1643 = vmatprep.mubr.f32.mxu0 0.0
  %1644 = vmatmul.mubr.f32.gmra.mxu0 %v1404
  %v1645 = vpop.f32.mrf.mxu0
  %v1646 = vadd.f32 0.0, %v1645
  %v1647 = vpop.f32.mrf.mxu0
  %1648 = vmatprep.mubr.f32.mxu0 0.0
  %1649 = vmatmul.mubr.f32.gmra.mxu0 %v1407
  %v1650 = vpop.f32.mrf.mxu0
  %v1651 = vadd.f32 0.0, %v1650
  %v1652 = vpop.f32.mrf.mxu0
  %1653 = vdwg.mxu0
  %v1654 = vmax.f32 %v1228, %v1476
  %v1655 = vmax.f32 %v1229, %v1481
  %v1656 = vmax.f32 %v1230, %v1486
  %v1657 = vmax.f32 %v1231, %v1491
  %v1658 = vmax.f32 %v1232, %v1496
  %v1659 = vmax.f32 %v1233, %v1501
  %v1660 = vmax.f32 %v1234, %v1506
  %v1661 = vmax.f32 %v1235, %v1511
  %v1662 = vmax.f32 %v1236, %v1516
  %v1663 = vmax.f32 %v1237, %v1521
  %v1664 = vmax.f32 %v1238, %v1526
  %v1665 = vmax.f32 %v1239, %v1531
  %v1666 = vmax.f32 %v1240, %v1536
  %v1667 = vmax.f32 %v1241, %v1541
  %v1668 = vmax.f32 %v1242, %v1546
  %v1669 = vmax.f32 %v1243, %v1551
  %v1670 = vmax.f32 %v1244, %v1556
  %v1671 = vmax.f32 %v1245, %v1561
  %v1672 = vmax.f32 %v1246, %v1566
  %v1673 = vmax.f32 %v1247, %v1571
  %v1674 = vmax.f32 %v1248, %v1576
  %v1675 = vmax.f32 %v1249, %v1581
  %v1676 = vmax.f32 %v1250, %v1586
  %v1677 = vmax.f32 %v1251, %v1591
  %v1678 = vmax.f32 %v1252, %v1596
  %v1679 = vmax.f32 %v1253, %v1601
  %v1680 = vmax.f32 %v1254, %v1606
  %v1681 = vmax.f32 %v1255, %v1611
  %v1682 = vmax.f32 %v1256, %v1616
  %v1683 = vmax.f32 %v1257, %v1621
  %v1684 = vmax.f32 %v1258, %v1626
  %v1685 = vmax.f32 %v1259, %v1631
  %v1686 = vmax.f32 %v1260, %v1636
  %v1687 = vmax.f32 %v1261, %v1641
  %v1688 = vmax.f32 %v1262, %v1646
  %v1689 = vmax.f32 %v1263, %v1651
  %v1690 = vld [vmem:[%s2] sm:$0x1]
  %v1692 = vlaneseq
  %v1693 = vshrl.u32 %v1692, 7
  %v1694 = vsub.s32 0, %v1693
  %v1695 = vrot.slane %v1690, %v1694
  %v1697 = vadd.f32 %v1654, %v1695
  %v1698 = vadd.f32 %v1655, %v1695
  %v1699 = vadd.f32 %v1656, %v1695
  %v1700 = vadd.f32 %v1657, %v1695
  %v1701 = vadd.f32 %v1658, %v1695
  %v1702 = vadd.f32 %v1659, %v1695
  %v1703 = vadd.f32 %v1660, %v1695
  %v1704 = vadd.f32 %v1661, %v1695
  %v1705 = vadd.f32 %v1662, %v1695
  %v1706 = vadd.f32 %v1663, %v1695
  %v1707 = vadd.f32 %v1664, %v1695
  %v1708 = vadd.f32 %v1665, %v1695
  %v1709 = vadd.f32 %v1666, %v1695
  %v1710 = vadd.f32 %v1667, %v1695
  %v1711 = vadd.f32 %v1668, %v1695
  %v1712 = vadd.f32 %v1669, %v1695
  %v1713 = vadd.f32 %v1670, %v1695
  %v1714 = vadd.f32 %v1671, %v1695
  %v1715 = vadd.f32 %v1672, %v1695
  %v1716 = vadd.f32 %v1673, %v1695
  %v1717 = vadd.f32 %v1674, %v1695
  %v1718 = vadd.f32 %v1675, %v1695
  %v1719 = vadd.f32 %v1676, %v1695
  %v1720 = vadd.f32 %v1677, %v1695
  %v1721 = vadd.f32 %v1678, %v1695
  %v1722 = vadd.f32 %v1679, %v1695
  %v1723 = vadd.f32 %v1680, %v1695
  %v1724 = vadd.f32 %v1681, %v1695
  %v1725 = vadd.f32 %v1682, %v1695
  %v1726 = vadd.f32 %v1683, %v1695
  %v1727 = vadd.f32 %v1684, %v1695
  %v1728 = vadd.f32 %v1685, %v1695
  %v1729 = vadd.f32 %v1686, %v1695
  %v1730 = vadd.f32 %v1687, %v1695
  %v1731 = vadd.f32 %v1688, %v1695
  %v1732 = vadd.f32 %v1689, %v1695
  %v1733 = vmax.f32 %v1697, 0.0
  %v1734 = vmax.f32 %v1698, 0.0
  %v1735 = vmax.f32 %v1699, 0.0
  %v1736 = vmax.f32 %v1700, 0.0
  %v1737 = vmax.f32 %v1701, 0.0
  %v1738 = vmax.f32 %v1702, 0.0
  %v1739 = vmax.f32 %v1703, 0.0
  %v1740 = vmax.f32 %v1704, 0.0
  %v1741 = vmax.f32 %v1705, 0.0
  %v1742 = vmax.f32 %v1706, 0.0
  %v1743 = vmax.f32 %v1707, 0.0
  %v1744 = vmax.f32 %v1708, 0.0
  %v1745 = vmax.f32 %v1709, 0.0
  %v1746 = vmax.f32 %v1710, 0.0
  %v1747 = vmax.f32 %v1711, 0.0
  %v1748 = vmax.f32 %v1712, 0.0
  %v1749 = vmax.f32 %v1713, 0.0
  %v1750 = vmax.f32 %v1714, 0.0
  %v1751 = vmax.f32 %v1715, 0.0
  %v1752 = vmax.f32 %v1716, 0.0
  %v1753 = vmax.f32 %v1717, 0.0
  %v1754 = vmax.f32 %v1718, 0.0
  %v1755 = vmax.f32 %v1719, 0.0
  %v1756 = vmax.f32 %v1720, 0.0
  %v1757 = vmax.f32 %v1721, 0.0
  %v1758 = vmax.f32 %v1722, 0.0
  %v1759 = vmax.f32 %v1723, 0.0
  %v1760 = vmax.f32 %v1724, 0.0
  %v1761 = vmax.f32 %v1725, 0.0
  %v1762 = vmax.f32 %v1726, 0.0
  %v1763 = vmax.f32 %v1727, 0.0
  %v1764 = vmax.f32 %v1728, 0.0
  %v1765 = vmax.f32 %v1729, 0.0
  %v1766 = vmax.f32 %v1730, 0.0
  %v1767 = vmax.f32 %v1731, 0.0
  %v1768 = vmax.f32 %v1732, 0.0
  %1769 = vst [vmem:[%s3] sm:$0xff] %v1733
  %1770 = vst [vmem:[%s3 + $0x8] sm:$0xff] %v1734
  %1771 = vst [vmem:[%s3 + $0x10] sm:$0xff] %v1735
  %1772 = vst [vmem:[%s3 + $0x18] sm:$0xff] %v1736
  %1773 = vst [vmem:[%s3 + $0x20] sm:$0xff] %v1737
  %1774 = vst [vmem:[%s3 + $0x28] sm:$0xff] %v1738
  %1775 = vst [vmem:[%s3 + $0x30] sm:$0xff] %v1739
  %1776 = vst [vmem:[%s3 + $0x38] sm:$0xff] %v1740
  %1777 = vst [vmem:[%s3 + $0x40] sm:$0xff] %v1741
  %1778 = vst [vmem:[%s3 + $0x48] sm:$0xff] %v1742
  %1779 = vst [vmem:[%s3 + $0x50] sm:$0xff] %v1743
  %1780 = vst [vmem:[%s3 + $0x58] sm:$0xff] %v1744
  %1781 = vst [vmem:[%s3 + $0x60] sm:$0xff] %v1745
  %1782 = vst [vmem:[%s3 + $0x68] sm:$0xff] %v1746
  %1783 = vst [vmem:[%s3 + $0x70] sm:$0xff] %v1747
  %1784 = vst [vmem:[%s3 + $0x78] sm:$0xff] %v1748
  %1785 = vst [vmem:[%s3 + $0x80] sm:$0xff] %v1749
  %1786 = vst [vmem:[%s3 + $0x88] sm:$0xff] %v1750
  %1787 = vst [vmem:[%s3 + $0x90] sm:$0xff] %v1751
  %1788 = vst [vmem:[%s3 + $0x98] sm:$0xff] %v1752
  %1789 = vst [vmem:[%s3 + $0xa0] sm:$0xff] %v1753
  %1790 = vst [vmem:[%s3 + $0xa8] sm:$0xff] %v1754
  %1791 = vst [vmem:[%s3 + $0xb0] sm:$0xff] %v1755
  %1792 = vst [vmem:[%s3 + $0xb8] sm:$0xff] %v1756
  %1793 = vst [vmem:[%s3 + $0xc0] sm:$0xff] %v1757
  %1794 = vst [vmem:[%s3 + $0xc8] sm:$0xff] %v1758
  %1795 = vst [vmem:[%s3 + $0xd0] sm:$0xff] %v1759
  %1796 = vst [vmem:[%s3 + $0xd8] sm:$0xff] %v1760
  %1797 = vst [vmem:[%s3 + $0xe0] sm:$0xff] %v1761
  %1798 = vst [vmem:[%s3 + $0xe8] sm:$0xff] %v1762
  %1799 = vst [vmem:[%s3 + $0xf0] sm:$0xff] %v1763
  %1800 = vst [vmem:[%s3 + $0xf8] sm:$0xff] %v1764
  %1801 = vst [vmem:[%s3 + $0x100] sm:$0xff] %v1765
  %1802 = vst [vmem:[%s3 + $0x108] sm:$0xff] %v1766
  %1803 = vst [vmem:[%s3 + $0x110] sm:$0xff] %v1767
  %1804 = vst [vmem:[%s3 + $0x118] sm:$0xff] %v1768
  // Predicated region
  $region14: #{lenet_forward.2} parent=0 // pred_check
    _
  $region15: #{lenet_forward.2} parent=0 // pred_check_branch
    %1806 = sbr.rel (0) target = $region17
  $region16: #{lenet_forward.2} parent=0 // pred_region
    _
  $region17: #{lenet_forward.2} parent=0 // pred_fallthru
    _
  // Predicated region
  $region18: #{lenet_forward.2} parent=0 // pred_check
    _
  $region19: #{lenet_forward.2} parent=0 // pred_check_branch
    %1808 = sbr.rel (0) target = $region21
  $region20: #{lenet_forward.2} parent=0 // pred_region
    _
  $region21: #{lenet_forward.2} parent=0 // pred_fallthru
    _

// kernel: lenet_forward.3
$region0: #{lenet_forward.3}
  #allocation0 [shape = 'u32[]', space=smem, size = 0x4, offset = 0x4, fixed_abs, tag = 'smem constant byte address 0x4 - core index']
  #allocation1 [shape = 'u32[144,128]{1,0:T(1,128)}', space=vmem, size = 0x12000, scoped, tag = 'internal scratch']
  %s0 = inlined_call_operand.vmem [shape: f32[4,150,32], index: 0, kind: input, shape index: {}]
  %s1 = inlined_call_operand.vmem [shape: f32[128,150], index: 1, kind: input, shape index: {}]
  %s2 = inlined_call_operand.vmem [shape: f32[128,1], index: 2, kind: input, shape index: {}]
  %s3 = inlined_call_operand.vmem [shape: f32[256,128], index: 3, kind: input, shape index: {}]
  %s4 = inlined_call_operand.vmem [shape: f32[1,128], index: 4, kind: input, shape index: {}]
  %s5 = inlined_call_operand.vmem [shape: f32[128,128], index: 5, kind: input, shape index: {}]
  %s6 = inlined_call_operand.vmem [shape: f32[1,128], index: 6, kind: input, shape index: {}]
  %s7 = inlined_call_operand.vmem [shape: f32[128,128], index: 7, kind: input, shape index: {}]
  %s8 = inlined_call_operand.vmem [shape: f32[1,128], index: 8, kind: input, shape index: {}]
  %s9 = inlined_call_operand.hbm [shape: f32[2,128], index: 9, kind: output, shape index: {0}]
  %s10 = inlined_call_operand.hbm [shape: f32[2,256], index: 10, kind: output, shape index: {1}]
  %11 = xla_tuple %s9, %s10
  %s12 = sld [smem:[#allocation0]]
  $region54: #{lenet_forward.3} parent=0
    _
  %s14 = ssub.s32 1, %s12
  %s15 = scalar_select 0, %s14, %s12
  $region1: #{lenet_forward.3} parent=0
    #allocation2 [shape = 'u8[1024]{0}', space=vmem, size = 0x400, scoped, tag = 'output window, operand 0, single buffered']
    #allocation3 [shape = 's32[1]{0}', space=sflag, size = 0x4, scoped, tag = 'scoped memory for lenet_forward.3']
    #allocation4 [shape = 'u8[2048]{0}', space=vmem, size = 0x800, scoped, tag = 'output window, operand 1, single buffered']
    #allocation5 [shape = 's32[1]{0}', space=sflag, size = 0x4, scoped, tag = 'scoped memory for lenet_forward.3']
    %16 = vsyncpa [#allocation3], 0
    %17 = vsyncpa [#allocation5], 0
    // Predicated region
    $region2: #{lenet_forward.3} parent=1 // pred_check
      _
    $region3: #{lenet_forward.3} parent=1 // pred_check_branch
      %19 = sbr.rel (0) target = $region5
    $region4: #{lenet_forward.3} parent=1 // pred_region
      _
    $region5: #{lenet_forward.3} parent=1 // pred_fallthru
      _
    // Predicated region
    $region6: #{lenet_forward.3} parent=1 // pred_check
      _
    $region7: #{lenet_forward.3} parent=1 // pred_check_branch
      %21 = sbr.rel (0) target = $region9
    $region8: #{lenet_forward.3} parent=1 // pred_region
      _
    $region9: #{lenet_forward.3} parent=1 // pred_fallthru
      _
    // Predicated region
    $region10: #{lenet_forward.3} parent=1 // pred_check
      _
    $region11: #{lenet_forward.3} parent=1 // pred_check_branch
      %23 = sbr.rel (0) target = $region13
    $region12: #{lenet_forward.3} parent=1 // pred_region
      _
    $region13: #{lenet_forward.3} parent=1 // pred_fallthru
      _
    // Predicated region
    $region14: #{lenet_forward.3} parent=1 // pred_check
      _
    $region15: #{lenet_forward.3} parent=1 // pred_check_branch
      %25 = sbr.rel (0) target = $region17
    $region16: #{lenet_forward.3} parent=1 // pred_region
      _
    $region17: #{lenet_forward.3} parent=1 // pred_fallthru
      _
    // Predicated region
    $region18: #{lenet_forward.3} parent=1 // pred_check
      _
    $region19: #{lenet_forward.3} parent=1 // pred_check_branch
      %27 = sbr.rel (0) target = $region21
    $region20: #{lenet_forward.3} parent=1 // pred_region
      _
    $region21: #{lenet_forward.3} parent=1 // pred_fallthru
      _
    // Predicated region
    $region22: #{lenet_forward.3} parent=1 // pred_check
      _
    $region23: #{lenet_forward.3} parent=1 // pred_check_branch
      %29 = sbr.rel (0) target = $region25
    $region24: #{lenet_forward.3} parent=1 // pred_region
      _
    $region25: #{lenet_forward.3} parent=1 // pred_fallthru
      _
    // Predicated region
    $region26: #{lenet_forward.3} parent=1 // pred_check
      _
    $region27: #{lenet_forward.3} parent=1 // pred_check_branch
      %31 = sbr.rel (0) target = $region29
    $region28: #{lenet_forward.3} parent=1 // pred_region
      _
    $region29: #{lenet_forward.3} parent=1 // pred_fallthru
      _
    // Predicated region
    $region30: #{lenet_forward.3} parent=1 // pred_check
      _
    $region31: #{lenet_forward.3} parent=1 // pred_check_branch
      %33 = sbr.rel (0) target = $region33
    $region32: #{lenet_forward.3} parent=1 // pred_region
      _
    $region33: #{lenet_forward.3} parent=1 // pred_fallthru
      _
    // Predicated region
    $region34: #{lenet_forward.3} parent=1 // pred_check
      _
    $region35: #{lenet_forward.3} parent=1 // pred_check_branch
      %35 = sbr.rel (0) target = $region37
    $region36: #{lenet_forward.3} parent=1 // pred_region
      _
    $region37: #{lenet_forward.3} parent=1 // pred_fallthru
      _
    %v36 = vld [vmem:[%s1] sm:$0xff]
    %v37 = vld [vmem:[%s1 + $0x8] sm:$0xff]
    %v38 = vld [vmem:[%s1 + $0x10] sm:$0xff]
    %v39 = vld [vmem:[%s1 + $0x18] sm:$0xff]
    %v40 = vld [vmem:[%s1 + $0x20] sm:$0xff]
    %v41 = vld [vmem:[%s1 + $0x28] sm:$0xff]
    %v42 = vld [vmem:[%s1 + $0x30] sm:$0xff]
    %v43 = vld [vmem:[%s1 + $0x38] sm:$0xff]
    %v44 = vld [vmem:[%s1 + $0x40] sm:$0xff]
    %v45 = vld [vmem:[%s1 + $0x48] sm:$0xff]
    %v46 = vld [vmem:[%s1 + $0x50] sm:$0xff]
    %v47 = vld [vmem:[%s1 + $0x58] sm:$0xff]
    %v48 = vld [vmem:[%s1 + $0x60] sm:$0xff]
    %v49 = vld [vmem:[%s1 + $0x68] sm:$0xff]
    %v50 = vld [vmem:[%s1 + $0x70] sm:$0xff]
    %v51 = vld [vmem:[%s1 + $0x78] sm:$0xff]
    %v52 = vld [vmem:[%s1 + $0x80] sm:$0xff]
    %v53 = vld [vmem:[%s1 + $0x88] sm:$0xff]
    %v54 = vld [vmem:[%s1 + $0x90] sm:$0xff]
    %v55 = vld [vmem:[%s1 + $0x98] sm:$0xff]
    %v56 = vld [vmem:[%s1 + $0xa0] sm:$0xff]
    %v57 = vld [vmem:[%s1 + $0xa8] sm:$0xff]
    %v58 = vld [vmem:[%s1 + $0xb0] sm:$0xff]
    %v59 = vld [vmem:[%s1 + $0xb8] sm:$0xff]
    %v60 = vld [vmem:[%s1 + $0xc0] sm:$0xff]
    %v61 = vld [vmem:[%s1 + $0xc8] sm:$0xff]
    %v62 = vld [vmem:[%s1 + $0xd0] sm:$0xff]
    %v63 = vld [vmem:[%s1 + $0xd8] sm:$0xff]
    %v64 = vld [vmem:[%s1 + $0xe0] sm:$0xff]
    %v65 = vld [vmem:[%s1 + $0xe8] sm:$0xff]
    %v66 = vld [vmem:[%s1 + $0xf0] sm:$0xff]
    %v67 = vld [vmem:[%s1 + $0xf8] sm:$0xff]
    %v68 = vld [vmem:[%s0] sm:$0xff]
    %v69 = vld [vmem:[%s0 + $0x8] sm:$0xff]
    %v70 = vld [vmem:[%s0 + $0x10] sm:$0xff]
    %v71 = vld [vmem:[%s0 + $0x18] sm:$0xff]
    %v72 = vld [vmem:[%s0 + $0x20] sm:$0xff]
    %v73 = vld [vmem:[%s0 + $0x28] sm:$0xff]
    %v74 = vld [vmem:[%s0 + $0x30] sm:$0xff]
    %v75 = vld [vmem:[%s0 + $0x38] sm:$0xff]
    %v76 = vld [vmem:[%s0 + $0x40] sm:$0xff]
    %v77 = vld [vmem:[%s0 + $0x48] sm:$0xff]
    %v78 = vld [vmem:[%s0 + $0x50] sm:$0xff]
    %v79 = vld [vmem:[%s0 + $0x58] sm:$0xff]
    %v80 = vld [vmem:[%s0 + $0x60] sm:$0xff]
    %v81 = vld [vmem:[%s0 + $0x68] sm:$0xff]
    %v82 = vld [vmem:[%s0 + $0x70] sm:$0xff]
    %v83 = vld [vmem:[%s0 + $0x78] sm:$0xff]
    %v84 = vld [vmem:[%s0 + $0x80] sm:$0xff]
    %v85 = vld [vmem:[%s0 + $0x88] sm:$0xff]
    %v86 = vld [vmem:[%s0 + $0x90] sm:$0x3f]
    %vm87 = vcmask 179200
    %v89 = vsel %vm87, %v37, 0
    %v92 = vsel %vm87, %v39, 0
    %v95 = vsel %vm87, %v41, 0
    %v98 = vsel %vm87, %v43, 0
    %v101 = vsel %vm87, %v45, 0
    %v104 = vsel %vm87, %v47, 0
    %v107 = vsel %vm87, %v49, 0
    %v110 = vsel %vm87, %v51, 0
    %v113 = vsel %vm87, %v53, 0
    %v116 = vsel %vm87, %v55, 0
    %v119 = vsel %vm87, %v57, 0
    %v122 = vsel %vm87, %v59, 0
    %v125 = vsel %vm87, %v61, 0
    %v128 = vsel %vm87, %v63, 0
    %v131 = vsel %vm87, %v65, 0
    %v134 = vsel %vm87, %v67, 0
    %vm136 = vcmask 1045504
    %v138 = vsel %vm136, %v86, 0
    %140 = vmatprep.subr.mxu0 0.0
    %141 = vmatpush1.msra.mxu0 %v83
    %142 = vmatprep.subr.mxu0 0.0
    %143 = vmatpush1.msra.mxu0 %v82
    %144 = vmatprep.subr.mxu0 0.0
    %145 = vmatpush1.msra.mxu0 %v81
    %146 = vmatprep.subr.mxu0 0.0
    %147 = vmatpush1.msra.mxu0 %v80
    %148 = vmatprep.subr.mxu0 0.0
    %149 = vmatpush1.msra.mxu0 %v79
    %150 = vmatprep.subr.mxu0 0.0
    %151 = vmatpush1.msra.mxu0 %v78
    %152 = vmatprep.subr.mxu0 0.0
    %153 = vmatpush1.msra.mxu0 %v77
    %154 = vmatprep.subr.mxu0 0.0
    %155 = vmatpush1.msra.mxu0 %v76
    %156 = vmatprep.subr.mxu0 0.0
    %157 = vmatpush1.msra.mxu0 %v75
    %158 = vmatprep.subr.mxu0 0.0
    %159 = vmatpush1.msra.mxu0 %v74
    %160 = vmatprep.subr.mxu0 0.0
    %161 = vmatpush1.msra.mxu0 %v73
    %162 = vmatprep.subr.mxu0 0.0
    %163 = vmatpush1.msra.mxu0 %v72
    %164 = vmatprep.subr.mxu0 0.0
    %165 = vmatpush1.msra.mxu0 %v71
    %166 = vmatprep.subr.mxu0 0.0
    %167 = vmatpush1.msra.mxu0 %v70
    %168 = vmatprep.subr.mxu0 0.0
    %169 = vmatpush1.msra.mxu0 %v69
    %170 = vmatprep.subr.mxu0 0.0
    %171 = vmatpush1.msra.mxu0 %v68
    %172 = vmatprep.subr.mxu0 0.0
    %173 = vmatpush2.msra.mxu0 0.0
    %174 = vmatprep.subr.mxu0 0.0
    %175 = vmatpush2.msra.mxu0 0.0
    %176 = vmatprep.subr.mxu0 0.0
    %177 = vmatpush2.msra.mxu0 0.0
    %178 = vmatprep.subr.mxu0 0.0
    %179 = vmatpush2.msra.mxu0 0.0
    %180 = vmatprep.subr.mxu0 0.0
    %181 = vmatpush2.msra.mxu0 0.0
    %182 = vmatprep.subr.mxu0 0.0
    %183 = vmatpush2.msra.mxu0 0.0
    %184 = vmatprep.subr.mxu0 0.0
    %185 = vmatpush2.msra.mxu0 0.0
    %186 = vmatprep.subr.mxu0 0.0
    %187 = vmatpush2.msra.mxu0 0.0
    %188 = vmatprep.subr.mxu0 0.0
    %189 = vmatpush2.msra.mxu0 0.0
    %190 = vmatprep.subr.mxu0 0.0
    %191 = vmatpush2.msra.mxu0 0.0
    %192 = vmatprep.subr.mxu0 0.0
    %193 = vmatpush2.msra.mxu0 0.0
    %194 = vmatprep.subr.mxu0 0.0
    %195 = vmatpush2.msra.mxu0 0.0
    %196 = vmatprep.subr.mxu0 0.0
    %197 = vmatpush2.msra.mxu0 0.0
    %198 = vmatprep.subr.mxu0 0.0
    %199 = vmatpush2.msra.mxu0 %v138
    %200 = vmatprep.subr.mxu0 0.0
    %201 = vmatpush2.msra.mxu0 %v85
    %202 = vmatprep.subr.mxu0 0.0
    %203 = vmatpush2.msra.mxu0 %v84
    %204 = vmatprep.mubr.f32.mxu0 %v89
    %205 = vmatmul.mubr.f32.gmra.mxu0 %v36
    %v206 = vpop.f32.mrf.mxu0
    %v207 = vadd.f32 0.0, %v206
    %v208 = vpop.f32.mrf.mxu0
    %209 = vmatprep.mubr.f32.mxu0 %v92
    %210 = vmatmul.mubr.f32.gmra.mxu0 %v38
    %v211 = vpop.f32.mrf.mxu0
    %v212 = vadd.f32 0.0, %v211
    %v213 = vpop.f32.mrf.mxu0
    %214 = vmatprep.mubr.f32.mxu0 %v95
    %215 = vmatmul.mubr.f32.gmra.mxu0 %v40
    %v216 = vpop.f32.mrf.mxu0
    %v217 = vpop.f32.mrf.mxu0
    %218 = vmatprep.mubr.f32.mxu0 %v98
    %219 = vmatmul.mubr.f32.gmra.mxu0 %v42
    %v220 = vpop.f32.mrf.mxu0
    %v221 = vpop.f32.mrf.mxu0
    %222 = vmatprep.mubr.f32.mxu0 %v101
    %223 = vmatmul.mubr.f32.gmra.mxu0 %v44
    %v224 = vpop.f32.mrf.mxu0
    %v225 = vpop.f32.mrf.mxu0
    %226 = vmatprep.mubr.f32.mxu0 %v104
    %227 = vmatmul.mubr.f32.gmra.mxu0 %v46
    %v228 = vpop.f32.mrf.mxu0
    %v229 = vpop.f32.mrf.mxu0
    %230 = vmatprep.mubr.f32.mxu0 %v107
    %231 = vmatmul.mubr.f32.gmra.mxu0 %v48
    %v232 = vpop.f32.mrf.mxu0
    %v233 = vpop.f32.mrf.mxu0
    %234 = vmatprep.mubr.f32.mxu0 %v110
    %235 = vmatmul.mubr.f32.gmra.mxu0 %v50
    %v236 = vpop.f32.mrf.mxu0
    %v237 = vpop.f32.mrf.mxu0
    %238 = vmatprep.mubr.f32.mxu0 %v113
    %239 = vmatmul.mubr.f32.gmra.mxu0 %v52
    %v240 = vpop.f32.mrf.mxu0
    %v241 = vpop.f32.mrf.mxu0
    %242 = vmatprep.mubr.f32.mxu0 %v116
    %243 = vmatmul.mubr.f32.gmra.mxu0 %v54
    %v244 = vpop.f32.mrf.mxu0
    %v245 = vpop.f32.mrf.mxu0
    %246 = vmatprep.mubr.f32.mxu0 %v119
    %247 = vmatmul.mubr.f32.gmra.mxu0 %v56
    %v248 = vpop.f32.mrf.mxu0
    %v249 = vpop.f32.mrf.mxu0
    %250 = vmatprep.mubr.f32.mxu0 %v122
    %251 = vmatmul.mubr.f32.gmra.mxu0 %v58
    %v252 = vpop.f32.mrf.mxu0
    %v253 = vpop.f32.mrf.mxu0
    %254 = vmatprep.mubr.f32.mxu0 %v125
    %255 = vmatmul.mubr.f32.gmra.mxu0 %v60
    %v256 = vpop.f32.mrf.mxu0
    %v257 = vpop.f32.mrf.mxu0
    %258 = vmatprep.mubr.f32.mxu0 %v128
    %259 = vmatmul.mubr.f32.gmra.mxu0 %v62
    %v260 = vpop.f32.mrf.mxu0
    %v261 = vpop.f32.mrf.mxu0
    %262 = vmatprep.mubr.f32.mxu0 %v131
    %263 = vmatmul.mubr.f32.gmra.mxu0 %v64
    %v264 = vpop.f32.mrf.mxu0
    %v265 = vpop.f32.mrf.mxu0
    %266 = vmatprep.mubr.f32.mxu0 %v134
    %267 = vmatmul.mubr.f32.gmra.mxu0 %v66
    %v268 = vpop.f32.mrf.mxu0
    %v269 = vpop.f32.mrf.mxu0
    %270 = vdwg.mxu0
    %s271 = scalar_lea.vmem %s0, 152
    %v272 = vld [vmem:[%s271] sm:$0xff]
    %v273 = vld [vmem:[%s271 + $0x8] sm:$0xff]
    %v274 = vld [vmem:[%s271 + $0x10] sm:$0xff]
    %v275 = vld [vmem:[%s271 + $0x18] sm:$0xff]
    %v276 = vld [vmem:[%s271 + $0x20] sm:$0xff]
    %v277 = vld [vmem:[%s271 + $0x28] sm:$0xff]
    %v278 = vld [vmem:[%s271 + $0x30] sm:$0xff]
    %v279 = vld [vmem:[%s271 + $0x38] sm:$0xff]
    %v280 = vld [vmem:[%s271 + $0x40] sm:$0xff]
    %v281 = vld [vmem:[%s271 + $0x48] sm:$0xff]
    %v282 = vld [vmem:[%s271 + $0x50] sm:$0xff]
    %v283 = vld [vmem:[%s271 + $0x58] sm:$0xff]
    %v284 = vld [vmem:[%s271 + $0x60] sm:$0xff]
    %v285 = vld [vmem:[%s271 + $0x68] sm:$0xff]
    %v286 = vld [vmem:[%s271 + $0x70] sm:$0xff]
    %v287 = vld [vmem:[%s271 + $0x78] sm:$0xff]
    %v288 = vld [vmem:[%s271 + $0x80] sm:$0xff]
    %v289 = vld [vmem:[%s271 + $0x88] sm:$0xff]
    %v290 = vld [vmem:[%s271 + $0x90] sm:$0x3f]
    %v292 = vsel %vm136, %v290, 0
    %294 = vmatprep.subr.mxu0 0.0
    %295 = vmatpush1.msra.mxu0 %v287
    %296 = vmatprep.subr.mxu0 0.0
    %297 = vmatpush1.msra.mxu0 %v286
    %298 = vmatprep.subr.mxu0 0.0
    %299 = vmatpush1.msra.mxu0 %v285
    %300 = vmatprep.subr.mxu0 0.0
    %301 = vmatpush1.msra.mxu0 %v284
    %302 = vmatprep.subr.mxu0 0.0
    %303 = vmatpush1.msra.mxu0 %v283
    %304 = vmatprep.subr.mxu0 0.0
    %305 = vmatpush1.msra.mxu0 %v282
    %306 = vmatprep.subr.mxu0 0.0
    %307 = vmatpush1.msra.mxu0 %v281
    %308 = vmatprep.subr.mxu0 0.0
    %309 = vmatpush1.msra.mxu0 %v280
    %310 = vmatprep.subr.mxu0 0.0
    %311 = vmatpush1.msra.mxu0 %v279
    %312 = vmatprep.subr.mxu0 0.0
    %313 = vmatpush1.msra.mxu0 %v278
    %314 = vmatprep.subr.mxu0 0.0
    %315 = vmatpush1.msra.mxu0 %v277
    %316 = vmatprep.subr.mxu0 0.0
    %317 = vmatpush1.msra.mxu0 %v276
    %318 = vmatprep.subr.mxu0 0.0
    %319 = vmatpush1.msra.mxu0 %v275
    %320 = vmatprep.subr.mxu0 0.0
    %321 = vmatpush1.msra.mxu0 %v274
    %322 = vmatprep.subr.mxu0 0.0
    %323 = vmatpush1.msra.mxu0 %v273
    %324 = vmatprep.subr.mxu0 0.0
    %325 = vmatpush1.msra.mxu0 %v272
    %326 = vmatprep.subr.mxu0 0.0
    %327 = vmatpush2.msra.mxu0 0.0
    %328 = vmatprep.subr.mxu0 0.0
    %329 = vmatpush2.msra.mxu0 0.0
    %330 = vmatprep.subr.mxu0 0.0
    %331 = vmatpush2.msra.mxu0 0.0
    %332 = vmatprep.subr.mxu0 0.0
    %333 = vmatpush2.msra.mxu0 0.0
    %334 = vmatprep.subr.mxu0 0.0
    %335 = vmatpush2.msra.mxu0 0.0
    %336 = vmatprep.subr.mxu0 0.0
    %337 = vmatpush2.msra.mxu0 0.0
    %338 = vmatprep.subr.mxu0 0.0
    %339 = vmatpush2.msra.mxu0 0.0
    %340 = vmatprep.subr.mxu0 0.0
    %341 = vmatpush2.msra.mxu0 0.0
    %342 = vmatprep.subr.mxu0 0.0
    %343 = vmatpush2.msra.mxu0 0.0
    %344 = vmatprep.subr.mxu0 0.0
    %345 = vmatpush2.msra.mxu0 0.0
    %346 = vmatprep.subr.mxu0 0.0
    %347 = vmatpush2.msra.mxu0 0.0
    %348 = vmatprep.subr.mxu0 0.0
    %349 = vmatpush2.msra.mxu0 0.0
    %350 = vmatprep.subr.mxu0 0.0
    %351 = vmatpush2.msra.mxu0 0.0
    %352 = vmatprep.subr.mxu0 0.0
    %353 = vmatpush2.msra.mxu0 %v292
    %354 = vmatprep.subr.mxu0 0.0
    %355 = vmatpush2.msra.mxu0 %v289
    %356 = vmatprep.subr.mxu0 0.0
    %357 = vmatpush2.msra.mxu0 %v288
    %358 = vmatprep.mubr.f32.mxu0 %v89
    %359 = vmatmul.mubr.f32.gmra.mxu0 %v36
    %v360 = vpop.f32.mrf.mxu0
    %v361 = vadd.f32 0.0, %v360
    %v362 = vpop.f32.mrf.mxu0
    %363 = vmatprep.mubr.f32.mxu0 %v92
    %364 = vmatmul.mubr.f32.gmra.mxu0 %v38
    %v365 = vpop.f32.mrf.mxu0
    %v366 = vadd.f32 0.0, %v365
    %v367 = vpop.f32.mrf.mxu0
    %368 = vmatprep.mubr.f32.mxu0 %v95
    %369 = vmatmul.mubr.f32.gmra.mxu0 %v40
    %v370 = vpop.f32.mrf.mxu0
    %v371 = vpop.f32.mrf.mxu0
    %372 = vmatprep.mubr.f32.mxu0 %v98
    %373 = vmatmul.mubr.f32.gmra.mxu0 %v42
    %v374 = vpop.f32.mrf.mxu0
    %v375 = vpop.f32.mrf.mxu0
    %376 = vmatprep.mubr.f32.mxu0 %v101
    %377 = vmatmul.mubr.f32.gmra.mxu0 %v44
    %v378 = vpop.f32.mrf.mxu0
    %v379 = vpop.f32.mrf.mxu0
    %380 = vmatprep.mubr.f32.mxu0 %v104
    %381 = vmatmul.mubr.f32.gmra.mxu0 %v46
    %v382 = vpop.f32.mrf.mxu0
    %v383 = vpop.f32.mrf.mxu0
    %384 = vmatprep.mubr.f32.mxu0 %v107
    %385 = vmatmul.mubr.f32.gmra.mxu0 %v48
    %v386 = vpop.f32.mrf.mxu0
    %v387 = vpop.f32.mrf.mxu0
    %388 = vmatprep.mubr.f32.mxu0 %v110
    %389 = vmatmul.mubr.f32.gmra.mxu0 %v50
    %v390 = vpop.f32.mrf.mxu0
    %v391 = vpop.f32.mrf.mxu0
    %392 = vmatprep.mubr.f32.mxu0 %v113
    %393 = vmatmul.mubr.f32.gmra.mxu0 %v52
    %v394 = vpop.f32.mrf.mxu0
    %v395 = vpop.f32.mrf.mxu0
    %396 = vmatprep.mubr.f32.mxu0 %v116
    %397 = vmatmul.mubr.f32.gmra.mxu0 %v54
    %v398 = vpop.f32.mrf.mxu0
    %v399 = vpop.f32.mrf.mxu0
    %400 = vmatprep.mubr.f32.mxu0 %v119
    %401 = vmatmul.mubr.f32.gmra.mxu0 %v56
    %v402 = vpop.f32.mrf.mxu0
    %v403 = vpop.f32.mrf.mxu0
    %404 = vmatprep.mubr.f32.mxu0 %v122
    %405 = vmatmul.mubr.f32.gmra.mxu0 %v58
    %v406 = vpop.f32.mrf.mxu0
    %v407 = vpop.f32.mrf.mxu0
    %408 = vmatprep.mubr.f32.mxu0 %v125
    %409 = vmatmul.mubr.f32.gmra.mxu0 %v60
    %v410 = vpop.f32.mrf.mxu0
    %v411 = vpop.f32.mrf.mxu0
    %412 = vmatprep.mubr.f32.mxu0 %v128
    %413 = vmatmul.mubr.f32.gmra.mxu0 %v62
    %v414 = vpop.f32.mrf.mxu0
    %v415 = vpop.f32.mrf.mxu0
    %416 = vmatprep.mubr.f32.mxu0 %v131
    %417 = vmatmul.mubr.f32.gmra.mxu0 %v64
    %v418 = vpop.f32.mrf.mxu0
    %v419 = vpop.f32.mrf.mxu0
    %420 = vmatprep.mubr.f32.mxu0 %v134
    %421 = vmatmul.mubr.f32.gmra.mxu0 %v66
    %v422 = vpop.f32.mrf.mxu0
    %v423 = vpop.f32.mrf.mxu0
    %424 = vdwg.mxu0
    %v425 = vmax.f32 %v207, %v361
    %v426 = vmax.f32 %v212, %v366
    %s427 = scalar_lea.vmem %s0, 304
    %v428 = vld [vmem:[%s427] sm:$0xff]
    %v429 = vld [vmem:[%s427 + $0x8] sm:$0xff]
    %v430 = vld [vmem:[%s427 + $0x10] sm:$0xff]
    %v431 = vld [vmem:[%s427 + $0x18] sm:$0xff]
    %v432 = vld [vmem:[%s427 + $0x20] sm:$0xff]
    %v433 = vld [vmem:[%s427 + $0x28] sm:$0xff]
    %v434 = vld [vmem:[%s427 + $0x30] sm:$0xff]
    %v435 = vld [vmem:[%s427 + $0x38] sm:$0xff]
    %v436 = vld [vmem:[%s427 + $0x40] sm:$0xff]
    %v437 = vld [vmem:[%s427 + $0x48] sm:$0xff]
    %v438 = vld [vmem:[%s427 + $0x50] sm:$0xff]
    %v439 = vld [vmem:[%s427 + $0x58] sm:$0xff]
    %v440 = vld [vmem:[%s427 + $0x60] sm:$0xff]
    %v441 = vld [vmem:[%s427 + $0x68] sm:$0xff]
    %v442 = vld [vmem:[%s427 + $0x70] sm:$0xff]
    %v443 = vld [vmem:[%s427 + $0x78] sm:$0xff]
    %v444 = vld [vmem:[%s427 + $0x80] sm:$0xff]
    %v445 = vld [vmem:[%s427 + $0x88] sm:$0xff]
    %v446 = vld [vmem:[%s427 + $0x90] sm:$0x3f]
    %v448 = vsel %vm136, %v446, 0
    %450 = vmatprep.subr.mxu0 0.0
    %451 = vmatpush1.msra.mxu0 %v443
    %452 = vmatprep.subr.mxu0 0.0
    %453 = vmatpush1.msra.mxu0 %v442
    %454 = vmatprep.subr.mxu0 0.0
    %455 = vmatpush1.msra.mxu0 %v441
    %456 = vmatprep.subr.mxu0 0.0
    %457 = vmatpush1.msra.mxu0 %v440
    %458 = vmatprep.subr.mxu0 0.0
    %459 = vmatpush1.msra.mxu0 %v439
    %460 = vmatprep.subr.mxu0 0.0
    %461 = vmatpush1.msra.mxu0 %v438
    %462 = vmatprep.subr.mxu0 0.0
    %463 = vmatpush1.msra.mxu0 %v437
    %464 = vmatprep.subr.mxu0 0.0
    %465 = vmatpush1.msra.mxu0 %v436
    %466 = vmatprep.subr.mxu0 0.0
    %467 = vmatpush1.msra.mxu0 %v435
    %468 = vmatprep.subr.mxu0 0.0
    %469 = vmatpush1.msra.mxu0 %v434
    %470 = vmatprep.subr.mxu0 0.0
    %471 = vmatpush1.msra.mxu0 %v433
    %472 = vmatprep.subr.mxu0 0.0
    %473 = vmatpush1.msra.mxu0 %v432
    %474 = vmatprep.subr.mxu0 0.0
    %475 = vmatpush1.msra.mxu0 %v431
    %476 = vmatprep.subr.mxu0 0.0
    %477 = vmatpush1.msra.mxu0 %v430
    %478 = vmatprep.subr.mxu0 0.0
    %479 = vmatpush1.msra.mxu0 %v429
    %480 = vmatprep.subr.mxu0 0.0
    %481 = vmatpush1.msra.mxu0 %v428
    %482 = vmatprep.subr.mxu0 0.0
    %483 = vmatpush2.msra.mxu0 0.0
    %484 = vmatprep.subr.mxu0 0.0
    %485 = vmatpush2.msra.mxu0 0.0
    %486 = vmatprep.subr.mxu0 0.0
    %487 = vmatpush2.msra.mxu0 0.0
    %488 = vmatprep.subr.mxu0 0.0
    %489 = vmatpush2.msra.mxu0 0.0
    %490 = vmatprep.subr.mxu0 0.0
    %491 = vmatpush2.msra.mxu0 0.0
    %492 = vmatprep.subr.mxu0 0.0
    %493 = vmatpush2.msra.mxu0 0.0
    %494 = vmatprep.subr.mxu0 0.0
    %495 = vmatpush2.msra.mxu0 0.0
    %496 = vmatprep.subr.mxu0 0.0
    %497 = vmatpush2.msra.mxu0 0.0
    %498 = vmatprep.subr.mxu0 0.0
    %499 = vmatpush2.msra.mxu0 0.0
    %500 = vmatprep.subr.mxu0 0.0
    %501 = vmatpush2.msra.mxu0 0.0
    %502 = vmatprep.subr.mxu0 0.0
    %503 = vmatpush2.msra.mxu0 0.0
    %504 = vmatprep.subr.mxu0 0.0
    %505 = vmatpush2.msra.mxu0 0.0
    %506 = vmatprep.subr.mxu0 0.0
    %507 = vmatpush2.msra.mxu0 0.0
    %508 = vmatprep.subr.mxu0 0.0
    %509 = vmatpush2.msra.mxu0 %v448
    %510 = vmatprep.subr.mxu0 0.0
    %511 = vmatpush2.msra.mxu0 %v445
    %512 = vmatprep.subr.mxu0 0.0
    %513 = vmatpush2.msra.mxu0 %v444
    %514 = vmatprep.mubr.f32.mxu0 %v89
    %515 = vmatmul.mubr.f32.gmra.mxu0 %v36
    %v516 = vpop.f32.mrf.mxu0
    %v517 = vadd.f32 0.0, %v516
    %v518 = vpop.f32.mrf.mxu0
    %519 = vmatprep.mubr.f32.mxu0 %v92
    %520 = vmatmul.mubr.f32.gmra.mxu0 %v38
    %v521 = vpop.f32.mrf.mxu0
    %v522 = vadd.f32 0.0, %v521
    %v523 = vpop.f32.mrf.mxu0
    %524 = vmatprep.mubr.f32.mxu0 %v95
    %525 = vmatmul.mubr.f32.gmra.mxu0 %v40
    %v526 = vpop.f32.mrf.mxu0
    %v527 = vpop.f32.mrf.mxu0
    %528 = vmatprep.mubr.f32.mxu0 %v98
    %529 = vmatmul.mubr.f32.gmra.mxu0 %v42
    %v530 = vpop.f32.mrf.mxu0
    %v531 = vpop.f32.mrf.mxu0
    %532 = vmatprep.mubr.f32.mxu0 %v101
    %533 = vmatmul.mubr.f32.gmra.mxu0 %v44
    %v534 = vpop.f32.mrf.mxu0
    %v535 = vpop.f32.mrf.mxu0
    %536 = vmatprep.mubr.f32.mxu0 %v104
    %537 = vmatmul.mubr.f32.gmra.mxu0 %v46
    %v538 = vpop.f32.mrf.mxu0
    %v539 = vpop.f32.mrf.mxu0
    %540 = vmatprep.mubr.f32.mxu0 %v107
    %541 = vmatmul.mubr.f32.gmra.mxu0 %v48
    %v542 = vpop.f32.mrf.mxu0
    %v543 = vpop.f32.mrf.mxu0
    %544 = vmatprep.mubr.f32.mxu0 %v110
    %545 = vmatmul.mubr.f32.gmra.mxu0 %v50
    %v546 = vpop.f32.mrf.mxu0
    %v547 = vpop.f32.mrf.mxu0
    %548 = vmatprep.mubr.f32.mxu0 %v113
    %549 = vmatmul.mubr.f32.gmra.mxu0 %v52
    %v550 = vpop.f32.mrf.mxu0
    %v551 = vpop.f32.mrf.mxu0
    %552 = vmatprep.mubr.f32.mxu0 %v116
    %553 = vmatmul.mubr.f32.gmra.mxu0 %v54
    %v554 = vpop.f32.mrf.mxu0
    %v555 = vpop.f32.mrf.mxu0
    %556 = vmatprep.mubr.f32.mxu0 %v119
    %557 = vmatmul.mubr.f32.gmra.mxu0 %v56
    %v558 = vpop.f32.mrf.mxu0
    %v559 = vpop.f32.mrf.mxu0
    %560 = vmatprep.mubr.f32.mxu0 %v122
    %561 = vmatmul.mubr.f32.gmra.mxu0 %v58
    %v562 = vpop.f32.mrf.mxu0
    %v563 = vpop.f32.mrf.mxu0
    %564 = vmatprep.mubr.f32.mxu0 %v125
    %565 = vmatmul.mubr.f32.gmra.mxu0 %v60
    %v566 = vpop.f32.mrf.mxu0
    %v567 = vpop.f32.mrf.mxu0
    %568 = vmatprep.mubr.f32.mxu0 %v128
    %569 = vmatmul.mubr.f32.gmra.mxu0 %v62
    %v570 = vpop.f32.mrf.mxu0
    %v571 = vpop.f32.mrf.mxu0
    %572 = vmatprep.mubr.f32.mxu0 %v131
    %573 = vmatmul.mubr.f32.gmra.mxu0 %v64
    %v574 = vpop.f32.mrf.mxu0
    %v575 = vpop.f32.mrf.mxu0
    %576 = vmatprep.mubr.f32.mxu0 %v134
    %577 = vmatmul.mubr.f32.gmra.mxu0 %v66
    %v578 = vpop.f32.mrf.mxu0
    %v579 = vpop.f32.mrf.mxu0
    %580 = vdwg.mxu0
    %v581 = vmax.f32 %v425, %v517
    %v582 = vmax.f32 %v426, %v522
    %s583 = scalar_lea.vmem %s0, 456
    %v584 = vld [vmem:[%s583] sm:$0xff]
    %v585 = vld [vmem:[%s583 + $0x8] sm:$0xff]
    %v586 = vld [vmem:[%s583 + $0x10] sm:$0xff]
    %v587 = vld [vmem:[%s583 + $0x18] sm:$0xff]
    %v588 = vld [vmem:[%s583 + $0x20] sm:$0xff]
    %v589 = vld [vmem:[%s583 + $0x28] sm:$0xff]
    %v590 = vld [vmem:[%s583 + $0x30] sm:$0xff]
    %v591 = vld [vmem:[%s583 + $0x38] sm:$0xff]
    %v592 = vld [vmem:[%s583 + $0x40] sm:$0xff]
    %v593 = vld [vmem:[%s583 + $0x48] sm:$0xff]
    %v594 = vld [vmem:[%s583 + $0x50] sm:$0xff]
    %v595 = vld [vmem:[%s583 + $0x58] sm:$0xff]
    %v596 = vld [vmem:[%s583 + $0x60] sm:$0xff]
    %v597 = vld [vmem:[%s583 + $0x68] sm:$0xff]
    %v598 = vld [vmem:[%s583 + $0x70] sm:$0xff]
    %v599 = vld [vmem:[%s583 + $0x78] sm:$0xff]
    %v600 = vld [vmem:[%s583 + $0x80] sm:$0xff]
    %v601 = vld [vmem:[%s583 + $0x88] sm:$0xff]
    %v602 = vld [vmem:[%s583 + $0x90] sm:$0x3f]
    %v604 = vsel %vm136, %v602, 0
    %606 = vmatprep.subr.mxu0 0.0
    %607 = vmatpush1.msra.mxu0 %v599
    %608 = vmatprep.subr.mxu0 0.0
    %609 = vmatpush1.msra.mxu0 %v598
    %610 = vmatprep.subr.mxu0 0.0
    %611 = vmatpush1.msra.mxu0 %v597
    %612 = vmatprep.subr.mxu0 0.0
    %613 = vmatpush1.msra.mxu0 %v596
    %614 = vmatprep.subr.mxu0 0.0
    %615 = vmatpush1.msra.mxu0 %v595
    %616 = vmatprep.subr.mxu0 0.0
    %617 = vmatpush1.msra.mxu0 %v594
    %618 = vmatprep.subr.mxu0 0.0
    %619 = vmatpush1.msra.mxu0 %v593
    %620 = vmatprep.subr.mxu0 0.0
    %621 = vmatpush1.msra.mxu0 %v592
    %622 = vmatprep.subr.mxu0 0.0
    %623 = vmatpush1.msra.mxu0 %v591
    %624 = vmatprep.subr.mxu0 0.0
    %625 = vmatpush1.msra.mxu0 %v590
    %626 = vmatprep.subr.mxu0 0.0
    %627 = vmatpush1.msra.mxu0 %v589
    %628 = vmatprep.subr.mxu0 0.0
    %629 = vmatpush1.msra.mxu0 %v588
    %630 = vmatprep.subr.mxu0 0.0
    %631 = vmatpush1.msra.mxu0 %v587
    %632 = vmatprep.subr.mxu0 0.0
    %633 = vmatpush1.msra.mxu0 %v586
    %634 = vmatprep.subr.mxu0 0.0
    %635 = vmatpush1.msra.mxu0 %v585
    %636 = vmatprep.subr.mxu0 0.0
    %637 = vmatpush1.msra.mxu0 %v584
    %638 = vmatprep.subr.mxu0 0.0
    %639 = vmatpush2.msra.mxu0 0.0
    %640 = vmatprep.subr.mxu0 0.0
    %641 = vmatpush2.msra.mxu0 0.0
    %642 = vmatprep.subr.mxu0 0.0
    %643 = vmatpush2.msra.mxu0 0.0
    %644 = vmatprep.subr.mxu0 0.0
    %645 = vmatpush2.msra.mxu0 0.0
    %646 = vmatprep.subr.mxu0 0.0
    %647 = vmatpush2.msra.mxu0 0.0
    %648 = vmatprep.subr.mxu0 0.0
    %649 = vmatpush2.msra.mxu0 0.0
    %650 = vmatprep.subr.mxu0 0.0
    %651 = vmatpush2.msra.mxu0 0.0
    %652 = vmatprep.subr.mxu0 0.0
    %653 = vmatpush2.msra.mxu0 0.0
    %654 = vmatprep.subr.mxu0 0.0
    %655 = vmatpush2.msra.mxu0 0.0
    %656 = vmatprep.subr.mxu0 0.0
    %657 = vmatpush2.msra.mxu0 0.0
    %658 = vmatprep.subr.mxu0 0.0
    %659 = vmatpush2.msra.mxu0 0.0
    %660 = vmatprep.subr.mxu0 0.0
    %661 = vmatpush2.msra.mxu0 0.0
    %662 = vmatprep.subr.mxu0 0.0
    %663 = vmatpush2.msra.mxu0 0.0
    %664 = vmatprep.subr.mxu0 0.0
    %665 = vmatpush2.msra.mxu0 %v604
    %666 = vmatprep.subr.mxu0 0.0
    %667 = vmatpush2.msra.mxu0 %v601
    %668 = vmatprep.subr.mxu0 0.0
    %669 = vmatpush2.msra.mxu0 %v600
    %670 = vmatprep.mubr.f32.mxu0 %v89
    %671 = vmatmul.mubr.f32.gmra.mxu0 %v36
    %v672 = vpop.f32.mrf.mxu0
    %v673 = vadd.f32 0.0, %v672
    %v674 = vpop.f32.mrf.mxu0
    %675 = vmatprep.mubr.f32.mxu0 %v92
    %676 = vmatmul.mubr.f32.gmra.mxu0 %v38
    %v677 = vpop.f32.mrf.mxu0
    %v678 = vadd.f32 0.0, %v677
    %v679 = vpop.f32.mrf.mxu0
    %680 = vmatprep.mubr.f32.mxu0 %v95
    %681 = vmatmul.mubr.f32.gmra.mxu0 %v40
    %v682 = vpop.f32.mrf.mxu0
    %v683 = vpop.f32.mrf.mxu0
    %684 = vmatprep.mubr.f32.mxu0 %v98
    %685 = vmatmul.mubr.f32.gmra.mxu0 %v42
    %v686 = vpop.f32.mrf.mxu0
    %v687 = vpop.f32.mrf.mxu0
    %688 = vmatprep.mubr.f32.mxu0 %v101
    %689 = vmatmul.mubr.f32.gmra.mxu0 %v44
    %v690 = vpop.f32.mrf.mxu0
    %v691 = vpop.f32.mrf.mxu0
    %692 = vmatprep.mubr.f32.mxu0 %v104
    %693 = vmatmul.mubr.f32.gmra.mxu0 %v46
    %v694 = vpop.f32.mrf.mxu0
    %v695 = vpop.f32.mrf.mxu0
    %696 = vmatprep.mubr.f32.mxu0 %v107
    %697 = vmatmul.mubr.f32.gmra.mxu0 %v48
    %v698 = vpop.f32.mrf.mxu0
    %v699 = vpop.f32.mrf.mxu0
    %700 = vmatprep.mubr.f32.mxu0 %v110
    %701 = vmatmul.mubr.f32.gmra.mxu0 %v50
    %v702 = vpop.f32.mrf.mxu0
    %v703 = vpop.f32.mrf.mxu0
    %704 = vmatprep.mubr.f32.mxu0 %v113
    %705 = vmatmul.mubr.f32.gmra.mxu0 %v52
    %v706 = vpop.f32.mrf.mxu0
    %v707 = vpop.f32.mrf.mxu0
    %708 = vmatprep.mubr.f32.mxu0 %v116
    %709 = vmatmul.mubr.f32.gmra.mxu0 %v54
    %v710 = vpop.f32.mrf.mxu0
    %v711 = vpop.f32.mrf.mxu0
    %712 = vmatprep.mubr.f32.mxu0 %v119
    %713 = vmatmul.mubr.f32.gmra.mxu0 %v56
    %v714 = vpop.f32.mrf.mxu0
    %v715 = vpop.f32.mrf.mxu0
    %716 = vmatprep.mubr.f32.mxu0 %v122
    %717 = vmatmul.mubr.f32.gmra.mxu0 %v58
    %v718 = vpop.f32.mrf.mxu0
    %v719 = vpop.f32.mrf.mxu0
    %720 = vmatprep.mubr.f32.mxu0 %v125
    %721 = vmatmul.mubr.f32.gmra.mxu0 %v60
    %v722 = vpop.f32.mrf.mxu0
    %v723 = vpop.f32.mrf.mxu0
    %724 = vmatprep.mubr.f32.mxu0 %v128
    %725 = vmatmul.mubr.f32.gmra.mxu0 %v62
    %v726 = vpop.f32.mrf.mxu0
    %v727 = vpop.f32.mrf.mxu0
    %728 = vmatprep.mubr.f32.mxu0 %v131
    %729 = vmatmul.mubr.f32.gmra.mxu0 %v64
    %v730 = vpop.f32.mrf.mxu0
    %v731 = vpop.f32.mrf.mxu0
    %732 = vmatprep.mubr.f32.mxu0 %v134
    %733 = vmatmul.mubr.f32.gmra.mxu0 %v66
    %v734 = vpop.f32.mrf.mxu0
    %v735 = vpop.f32.mrf.mxu0
    %736 = vdwg.mxu0
    %v737 = vmax.f32 %v581, %v673
    %v738 = vmax.f32 %v582, %v678
    %v739 = vld [vmem:[%s2] sm:$0xff]
    %v740 = vld [vmem:[%s2 + $0x8] sm:$0xff]
    %742 = vset.pattern.permute.xlu0 0
    %743 = vperm.xlu0 %742, %v739
    %v744 = vpop.permute.xlu0 %743
    %747 = vset.pattern.permute.xlu0 0
    %748 = vperm.xlu0 %747, %v740
    %v749 = vpop.permute.xlu0 %748
    %v751 = vadd.f32 %v737, %v744
    %v752 = vadd.f32 %v738, %v749
    %v753 = vmax.f32 %v751, 0.0
    %v754 = vmax.f32 %v752, 0.0
    %v756 = vrot.slane %v753, 1
    %757 = vrot.lane.b32.xlu0 %v756, 16
    %v758 = vpop.permute.xlu0 %757
    %v760 = vrot.slane %v753, 2
    %761 = vrot.lane.b32.xlu0 %v760, 32
    %v762 = vpop.permute.xlu0 %761
    %v764 = vrot.slane %v753, 3
    %765 = vrot.lane.b32.xlu0 %v764, 48
    %v766 = vpop.permute.xlu0 %765
    %v768 = vrot.slane %v753, 4
    %769 = vrot.lane.b32.xlu0 %v768, 64
    %v770 = vpop.permute.xlu0 %769
    %v772 = vrot.slane %v753, 5
    %773 = vrot.lane.b32.xlu0 %v772, 80
    %v774 = vpop.permute.xlu0 %773
    %v776 = vrot.slane %v753, 6
    %777 = vrot.lane.b32.xlu0 %v776, 96
    %v778 = vpop.permute.xlu0 %777
    %v780 = vrot.slane %v753, 7
    %781 = vrot.lane.b32.xlu0 %v780, 112
    %v782 = vpop.permute.xlu0 %781
    %v785 = vrot.slane %v754, 1
    %786 = vrot.lane.b32.xlu0 %v785, 16
    %v787 = vpop.permute.xlu0 %786
    %v789 = vrot.slane %v754, 2
    %790 = vrot.lane.b32.xlu0 %v789, 32
    %v791 = vpop.permute.xlu0 %790
    %v793 = vrot.slane %v754, 3
    %794 = vrot.lane.b32.xlu0 %v793, 48
    %v795 = vpop.permute.xlu0 %794
    %v797 = vrot.slane %v754, 4
    %798 = vrot.lane.b32.xlu0 %v797, 64
    %v799 = vpop.permute.xlu0 %798
    %v801 = vrot.slane %v754, 5
    %802 = vrot.lane.b32.xlu0 %v801, 80
    %v803 = vpop.permute.xlu0 %802
    %v805 = vrot.slane %v754, 6
    %806 = vrot.lane.b32.xlu0 %v805, 96
    %v807 = vpop.permute.xlu0 %806
    %v809 = vrot.slane %v754, 7
    %810 = vrot.lane.b32.xlu0 %v809, 112
    %v811 = vpop.permute.xlu0 %810
    %vm813 = vcmask 130048
    %v814 = vsel %vm813, %v753, %v758
    %vm815 = vcmask 261120
    %v816 = vsel %vm815, %v814, %v762
    %vm817 = vcmask 392192
    %v818 = vsel %vm817, %v816, %v766
    %vm819 = vcmask 523264
    %v820 = vsel %vm819, %v818, %v770
    %vm821 = vcmask 654336
    %v822 = vsel %vm821, %v820, %v774
    %vm823 = vcmask 785408
    %v824 = vsel %vm823, %v822, %v778
    %vm825 = vcmask 916480
    %v826 = vsel %vm825, %v824, %v782
    %v827 = vsel %vm813, %v754, %v787
    %v828 = vsel %vm815, %v827, %v791
    %v829 = vsel %vm817, %v828, %v795
    %v830 = vsel %vm819, %v829, %v799
    %v831 = vsel %vm821, %v830, %v803
    %v832 = vsel %vm823, %v831, %v807
    %v833 = vsel %vm825, %v832, %v811
    %834 = vrot.lane.b32.xlu0 %v753, 112
    %v835 = vpop.permute.xlu0 %834
    %838 = vrot.lane.b32.xlu0 %v760, 16
    %v839 = vpop.permute.xlu0 %838
    %841 = vrot.lane.b32.xlu0 %v764, 32
    %v842 = vpop.permute.xlu0 %841
    %844 = vrot.lane.b32.xlu0 %v768, 48
    %v845 = vpop.permute.xlu0 %844
    %847 = vrot.lane.b32.xlu0 %v772, 64
    %v848 = vpop.permute.xlu0 %847
    %850 = vrot.lane.b32.xlu0 %v776, 80
    %v851 = vpop.permute.xlu0 %850
    %853 = vrot.lane.b32.xlu0 %v780, 96
    %v854 = vpop.permute.xlu0 %853
    %856 = vrot.lane.b32.xlu0 %v754, 112
    %v857 = vpop.permute.xlu0 %856
    %860 = vrot.lane.b32.xlu0 %v789, 16
    %v861 = vpop.permute.xlu0 %860
    %863 = vrot.lane.b32.xlu0 %v793, 32
    %v864 = vpop.permute.xlu0 %863
    %866 = vrot.lane.b32.xlu0 %v797, 48
    %v867 = vpop.permute.xlu0 %866
    %869 = vrot.lane.b32.xlu0 %v801, 64
    %v870 = vpop.permute.xlu0 %869
    %872 = vrot.lane.b32.xlu0 %v805, 80
    %v873 = vpop.permute.xlu0 %872
    %875 = vrot.lane.b32.xlu0 %v809, 96
    %v876 = vpop.permute.xlu0 %875
    %v878 = vsel %vm813, %v835, %v756
    %v879 = vsel %vm815, %v878, %v839
    %v880 = vsel %vm817, %v879, %v842
    %v881 = vsel %vm819, %v880, %v845
    %v882 = vsel %vm821, %v881, %v848
    %v883 = vsel %vm823, %v882, %v851
    %v884 = vsel %vm825, %v883, %v854
    %v885 = vsel %vm813, %v857, %v785
    %v886 = vsel %vm815, %v885, %v861
    %v887 = vsel %vm817, %v886, %v864
    %v888 = vsel %vm819, %v887, %v867
    %v889 = vsel %vm821, %v888, %v870
    %v890 = vsel %vm823, %v889, %v873
    %v891 = vsel %vm825, %v890, %v876
    %v894 = vrot.slane %v884, 7
    %v895 = vrot.slane %v891, 7
    %vm898 = vcmask 1040384
    %v899 = vsel %vm898, %v826, %v894
    %v900 = vsel %vm898, %v833, %v895
    %v903 = vcombine.low %v899, %v900
    %v905 = vunpack.c.l.s4 1983009808
    %v906 = vunpack.c.0.s8 %v905
    %v907 = vlaneseq
    %v908 = vshrl.u32 %v907, 7
    %v909 = vsub.s32 %v906, %v908
    %v910 = vrot.slane %v903, %v909
    %912 = vst [vmem:[#allocation4] sm:$0xf] %v910
    %v913 = vld [vmem:[%s3] sm:$0xff]
    %v914 = vld [vmem:[%s3 + $0x8] sm:$0xff]
    %v915 = vld [vmem:[%s3 + $0x10] sm:$0xff]
    %v916 = vld [vmem:[%s3 + $0x18] sm:$0xff]
    %v917 = vld [vmem:[%s3 + $0x20] sm:$0xff]
    %v918 = vld [vmem:[%s3 + $0x28] sm:$0xff]
    %v919 = vld [vmem:[%s3 + $0x30] sm:$0xff]
    %v920 = vld [vmem:[%s3 + $0x38] sm:$0xff]
    %v921 = vld [vmem:[%s3 + $0x40] sm:$0xff]
    %v922 = vld [vmem:[%s3 + $0x48] sm:$0xff]
    %v923 = vld [vmem:[%s3 + $0x50] sm:$0xff]
    %v924 = vld [vmem:[%s3 + $0x58] sm:$0xff]
    %v925 = vld [vmem:[%s3 + $0x60] sm:$0xff]
    %v926 = vld [vmem:[%s3 + $0x68] sm:$0xff]
    %v927 = vld [vmem:[%s3 + $0x70] sm:$0xff]
    %v928 = vld [vmem:[%s3 + $0x78] sm:$0xff]
    %v929 = vld [vmem:[%s3 + $0x80] sm:$0xff]
    %v930 = vld [vmem:[%s3 + $0x88] sm:$0xff]
    %v931 = vld [vmem:[%s3 + $0x90] sm:$0xff]
    %v932 = vld [vmem:[%s3 + $0x98] sm:$0xff]
    %v933 = vld [vmem:[%s3 + $0xa0] sm:$0xff]
    %v934 = vld [vmem:[%s3 + $0xa8] sm:$0xff]
    %v935 = vld [vmem:[%s3 + $0xb0] sm:$0xff]
    %v936 = vld [vmem:[%s3 + $0xb8] sm:$0xff]
    %v937 = vld [vmem:[%s3 + $0xc0] sm:$0xff]
    %v938 = vld [vmem:[%s3 + $0xc8] sm:$0xff]
    %v939 = vld [vmem:[%s3 + $0xd0] sm:$0xff]
    %v940 = vld [vmem:[%s3 + $0xd8] sm:$0xff]
    %v941 = vld [vmem:[%s3 + $0xe0] sm:$0xff]
    %v942 = vld [vmem:[%s3 + $0xe8] sm:$0xff]
    %v943 = vld [vmem:[%s3 + $0xf0] sm:$0xff]
    %v944 = vld [vmem:[%s3 + $0xf8] sm:$0xff]
    %v945 = vld [vmem:[%s4] sm:$0x1]
    %v947 = vlaneseq
    %v948 = vshrl.u32 %v947, 7
    %v949 = vsub.s32 0, %v948
    %v950 = vrot.slane %v945, %v949
    %952 = vmatprep.subr.mxu0 0.0
    %953 = vmatpush1.msra.mxu0 %v928
    %954 = vmatprep.subr.mxu0 0.0
    %955 = vmatpush1.msra.mxu0 %v927
    %956 = vmatprep.subr.mxu0 0.0
    %957 = vmatpush1.msra.mxu0 %v926
    %958 = vmatprep.subr.mxu0 0.0
    %959 = vmatpush1.msra.mxu0 %v925
    %960 = vmatprep.subr.mxu0 0.0
    %961 = vmatpush1.msra.mxu0 %v924
    %962 = vmatprep.subr.mxu0 0.0
    %963 = vmatpush1.msra.mxu0 %v923
    %964 = vmatprep.subr.mxu0 0.0
    %965 = vmatpush1.msra.mxu0 %v922
    %966 = vmatprep.subr.mxu0 0.0
    %967 = vmatpush1.msra.mxu0 %v921
    %968 = vmatprep.subr.mxu0 0.0
    %969 = vmatpush1.msra.mxu0 %v920
    %970 = vmatprep.subr.mxu0 0.0
    %971 = vmatpush1.msra.mxu0 %v919
    %972 = vmatprep.subr.mxu0 0.0
    %973 = vmatpush1.msra.mxu0 %v918
    %974 = vmatprep.subr.mxu0 0.0
    %975 = vmatpush1.msra.mxu0 %v917
    %976 = vmatprep.subr.mxu0 0.0
    %977 = vmatpush1.msra.mxu0 %v916
    %978 = vmatprep.subr.mxu0 0.0
    %979 = vmatpush1.msra.mxu0 %v915
    %980 = vmatprep.subr.mxu0 0.0
    %981 = vmatpush1.msra.mxu0 %v914
    %982 = vmatprep.subr.mxu0 0.0
    %983 = vmatpush1.msra.mxu0 %v913
    %984 = vmatprep.subr.mxu0 0.0
    %985 = vmatpush2.msra.mxu0 %v944
    %986 = vmatprep.subr.mxu0 0.0
    %987 = vmatpush2.msra.mxu0 %v943
    %988 = vmatprep.subr.mxu0 0.0
    %989 = vmatpush2.msra.mxu0 %v942
    %990 = vmatprep.subr.mxu0 0.0
    %991 = vmatpush2.msra.mxu0 %v941
    %992 = vmatprep.subr.mxu0 0.0
    %993 = vmatpush2.msra.mxu0 %v940
    %994 = vmatprep.subr.mxu0 0.0
    %995 = vmatpush2.msra.mxu0 %v939
    %996 = vmatprep.subr.mxu0 0.0
    %997 = vmatpush2.msra.mxu0 %v938
    %998 = vmatprep.subr.mxu0 0.0
    %999 = vmatpush2.msra.mxu0 %v937
    %1000 = vmatprep.subr.mxu0 0.0
    %1001 = vmatpush2.msra.mxu0 %v936
    %1002 = vmatprep.subr.mxu0 0.0
    %1003 = vmatpush2.msra.mxu0 %v935
    %1004 = vmatprep.subr.mxu0 0.0
    %1005 = vmatpush2.msra.mxu0 %v934
    %1006 = vmatprep.subr.mxu0 0.0
    %1007 = vmatpush2.msra.mxu0 %v933
    %1008 = vmatprep.subr.mxu0 0.0
    %1009 = vmatpush2.msra.mxu0 %v932
    %1010 = vmatprep.subr.mxu0 0.0
    %1011 = vmatpush2.msra.mxu0 %v931
    %1012 = vmatprep.subr.mxu0 0.0
    %1013 = vmatpush2.msra.mxu0 %v930
    %1014 = vmatprep.subr.mxu0 0.0
    %1015 = vmatpush2.msra.mxu0 %v929
    %1016 = vmatprep.mubr.f32.mxu0 %v900
    %1017 = vmatmul.mubr.f32.gmra.mxu0 %v899
    %v1018 = vpop.f32.mrf.mxu0
    %v1019 = vadd.f32 %v950, %v1018
    %v1020 = vpop.f32.mrf.mxu0
    %1021 = vdwg.mxu0
    %v1022 = vmax.f32 %v1019, 0.0
    %v1023 = vld [vmem:[%s5] sm:$0xff]
    %v1024 = vld [vmem:[%s5 + $0x8] sm:$0xff]
    %v1025 = vld [vmem:[%s5 + $0x10] sm:$0xff]
    %v1026 = vld [vmem:[%s5 + $0x18] sm:$0xff]
    %v1027 = vld [vmem:[%s5 + $0x20] sm:$0xff]
    %v1028 = vld [vmem:[%s5 + $0x28] sm:$0xff]
    %v1029 = vld [vmem:[%s5 + $0x30] sm:$0xff]
    %v1030 = vld [vmem:[%s5 + $0x38] sm:$0xff]
    %v1031 = vld [vmem:[%s5 + $0x40] sm:$0xff]
    %v1032 = vld [vmem:[%s5 + $0x48] sm:$0xff]
    %v1033 = vld [vmem:[%s5 + $0x50] sm:$0xff]
    %v1034 = vld [vmem:[%s5 + $0x58] sm:$0xff]
    %v1035 = vld [vmem:[%s5 + $0x60] sm:$0xff]
    %v1036 = vld [vmem:[%s5 + $0x68] sm:$0xff]
    %v1037 = vld [vmem:[%s5 + $0x70] sm:$0xff]
    %v1038 = vld [vmem:[%s5 + $0x78] sm:$0xff]
    %v1039 = vld [vmem:[%s6] sm:$0x1]
    %v1041 = vlaneseq
    %v1042 = vshrl.u32 %v1041, 7
    %v1043 = vsub.s32 0, %v1042
    %v1044 = vrot.slane %v1039, %v1043
    %1046 = vmatprep.subr.mxu0 0.0
    %1047 = vmatpush1.msra.mxu0 %v1038
    %1048 = vmatprep.subr.mxu0 0.0
    %1049 = vmatpush1.msra.mxu0 %v1037
    %1050 = vmatprep.subr.mxu0 0.0
    %1051 = vmatpush1.msra.mxu0 %v1036
    %1052 = vmatprep.subr.mxu0 0.0
    %1053 = vmatpush1.msra.mxu0 %v1035
    %1054 = vmatprep.subr.mxu0 0.0
    %1055 = vmatpush1.msra.mxu0 %v1034
    %1056 = vmatprep.subr.mxu0 0.0
    %1057 = vmatpush1.msra.mxu0 %v1033
    %1058 = vmatprep.subr.mxu0 0.0
    %1059 = vmatpush1.msra.mxu0 %v1032
    %1060 = vmatprep.subr.mxu0 0.0
    %1061 = vmatpush1.msra.mxu0 %v1031
    %1062 = vmatprep.subr.mxu0 0.0
    %1063 = vmatpush1.msra.mxu0 %v1030
    %1064 = vmatprep.subr.mxu0 0.0
    %1065 = vmatpush1.msra.mxu0 %v1029
    %1066 = vmatprep.subr.mxu0 0.0
    %1067 = vmatpush1.msra.mxu0 %v1028
    %1068 = vmatprep.subr.mxu0 0.0
    %1069 = vmatpush1.msra.mxu0 %v1027
    %1070 = vmatprep.subr.mxu0 0.0
    %1071 = vmatpush1.msra.mxu0 %v1026
    %1072 = vmatprep.subr.mxu0 0.0
    %1073 = vmatpush1.msra.mxu0 %v1025
    %1074 = vmatprep.subr.mxu0 0.0
    %1075 = vmatpush1.msra.mxu0 %v1024
    %1076 = vmatprep.subr.mxu0 0.0
    %1077 = vmatpush1.msra.mxu0 %v1023
    %1078 = vmatprep.subr.mxu0 0.0
    %1079 = vmatpush2.msra.mxu0 0.0
    %1080 = vmatprep.subr.mxu0 0.0
    %1081 = vmatpush2.msra.mxu0 0.0
    %1082 = vmatprep.subr.mxu0 0.0
    %1083 = vmatpush2.msra.mxu0 0.0
    %1084 = vmatprep.subr.mxu0 0.0
    %1085 = vmatpush2.msra.mxu0 0.0
    %1086 = vmatprep.subr.mxu0 0.0
    %1087 = vmatpush2.msra.mxu0 0.0
    %1088 = vmatprep.subr.mxu0 0.0
    %1089 = vmatpush2.msra.mxu0 0.0
    %1090 = vmatprep.subr.mxu0 0.0
    %1091 = vmatpush2.msra.mxu0 0.0
    %1092 = vmatprep.subr.mxu0 0.0
    %1093 = vmatpush2.msra.mxu0 0.0
    %1094 = vmatprep.subr.mxu0 0.0
    %1095 = vmatpush2.msra.mxu0 0.0
    %1096 = vmatprep.subr.mxu0 0.0
    %1097 = vmatpush2.msra.mxu0 0.0
    %1098 = vmatprep.subr.mxu0 0.0
    %1099 = vmatpush2.msra.mxu0 0.0
    %1100 = vmatprep.subr.mxu0 0.0
    %1101 = vmatpush2.msra.mxu0 0.0
    %1102 = vmatprep.subr.mxu0 0.0
    %1103 = vmatpush2.msra.mxu0 0.0
    %1104 = vmatprep.subr.mxu0 0.0
    %1105 = vmatpush2.msra.mxu0 0.0
    %1106 = vmatprep.subr.mxu0 0.0
    %1107 = vmatpush2.msra.mxu0 0.0
    %1108 = vmatprep.subr.mxu0 0.0
    %1109 = vmatpush2.msra.mxu0 0.0
    %1110 = vmatprep.mubr.f32.mxu0 0.0
    %1111 = vmatmul.mubr.f32.gmra.mxu0 %v1022
    %v1112 = vpop.f32.mrf.mxu0
    %v1113 = vadd.f32 %v1044, %v1112
    %v1114 = vpop.f32.mrf.mxu0
    %1115 = vdwg.mxu0
    %v1116 = vmax.f32 %v1113, 0.0
    %v1117 = vld [vmem:[%s7] sm:$0xff]
    %v1118 = vld [vmem:[%s7 + $0x8] sm:$0xff]
    %v1119 = vld [vmem:[%s7 + $0x10] sm:$0xff]
    %v1120 = vld [vmem:[%s7 + $0x18] sm:$0xff]
    %v1121 = vld [vmem:[%s7 + $0x20] sm:$0xff]
    %v1122 = vld [vmem:[%s7 + $0x28] sm:$0xff]
    %v1123 = vld [vmem:[%s7 + $0x30] sm:$0xff]
    %v1124 = vld [vmem:[%s7 + $0x38] sm:$0xff]
    %v1125 = vld [vmem:[%s7 + $0x40] sm:$0xff]
    %v1126 = vld [vmem:[%s7 + $0x48] sm:$0xff]
    %v1127 = vld [vmem:[%s7 + $0x50] sm:$0xff]
    %v1128 = vld [vmem:[%s7 + $0x58] sm:$0xff]
    %v1129 = vld [vmem:[%s7 + $0x60] sm:$0xff]
    %v1130 = vld [vmem:[%s7 + $0x68] sm:$0xff]
    %v1131 = vld [vmem:[%s7 + $0x70] sm:$0xff]
    %v1132 = vld [vmem:[%s7 + $0x78] sm:$0xff]
    %v1133 = vld [vmem:[%s8] sm:$0x1]
    %v1135 = vlaneseq
    %v1136 = vshrl.u32 %v1135, 7
    %v1137 = vsub.s32 0, %v1136
    %v1138 = vrot.slane %v1133, %v1137
    %1140 = vmatprep.subr.mxu0 0.0
    %1141 = vmatpush1.msra.mxu0 %v1132
    %1142 = vmatprep.subr.mxu0 0.0
    %1143 = vmatpush1.msra.mxu0 %v1131
    %1144 = vmatprep.subr.mxu0 0.0
    %1145 = vmatpush1.msra.mxu0 %v1130
    %1146 = vmatprep.subr.mxu0 0.0
    %1147 = vmatpush1.msra.mxu0 %v1129
    %1148 = vmatprep.subr.mxu0 0.0
    %1149 = vmatpush1.msra.mxu0 %v1128
    %1150 = vmatprep.subr.mxu0 0.0
    %1151 = vmatpush1.msra.mxu0 %v1127
    %1152 = vmatprep.subr.mxu0 0.0
    %1153 = vmatpush1.msra.mxu0 %v1126
    %1154 = vmatprep.subr.mxu0 0.0
    %1155 = vmatpush1.msra.mxu0 %v1125
    %1156 = vmatprep.subr.mxu0 0.0
    %1157 = vmatpush1.msra.mxu0 %v1124
    %1158 = vmatprep.subr.mxu0 0.0
    %1159 = vmatpush1.msra.mxu0 %v1123
    %1160 = vmatprep.subr.mxu0 0.0
    %1161 = vmatpush1.msra.mxu0 %v1122
    %1162 = vmatprep.subr.mxu0 0.0
    %1163 = vmatpush1.msra.mxu0 %v1121
    %1164 = vmatprep.subr.mxu0 0.0
    %1165 = vmatpush1.msra.mxu0 %v1120
    %1166 = vmatprep.subr.mxu0 0.0
    %1167 = vmatpush1.msra.mxu0 %v1119
    %1168 = vmatprep.subr.mxu0 0.0
    %1169 = vmatpush1.msra.mxu0 %v1118
    %1170 = vmatprep.subr.mxu0 0.0
    %1171 = vmatpush1.msra.mxu0 %v1117
    %1172 = vmatprep.subr.mxu0 0.0
    %1173 = vmatpush2.msra.mxu0 0.0
    %1174 = vmatprep.subr.mxu0 0.0
    %1175 = vmatpush2.msra.mxu0 0.0
    %1176 = vmatprep.subr.mxu0 0.0
    %1177 = vmatpush2.msra.mxu0 0.0
    %1178 = vmatprep.subr.mxu0 0.0
    %1179 = vmatpush2.msra.mxu0 0.0
    %1180 = vmatprep.subr.mxu0 0.0
    %1181 = vmatpush2.msra.mxu0 0.0
    %1182 = vmatprep.subr.mxu0 0.0
    %1183 = vmatpush2.msra.mxu0 0.0
    %1184 = vmatprep.subr.mxu0 0.0
    %1185 = vmatpush2.msra.mxu0 0.0
    %1186 = vmatprep.subr.mxu0 0.0
    %1187 = vmatpush2.msra.mxu0 0.0
    %1188 = vmatprep.subr.mxu0 0.0
    %1189 = vmatpush2.msra.mxu0 0.0
    %1190 = vmatprep.subr.mxu0 0.0
    %1191 = vmatpush2.msra.mxu0 0.0
    %1192 = vmatprep.subr.mxu0 0.0
    %1193 = vmatpush2.msra.mxu0 0.0
    %1194 = vmatprep.subr.mxu0 0.0
    %1195 = vmatpush2.msra.mxu0 0.0
    %1196 = vmatprep.subr.mxu0 0.0
    %1197 = vmatpush2.msra.mxu0 0.0
    %1198 = vmatprep.subr.mxu0 0.0
    %1199 = vmatpush2.msra.mxu0 0.0
    %1200 = vmatprep.subr.mxu0 0.0
    %1201 = vmatpush2.msra.mxu0 0.0
    %1202 = vmatprep.subr.mxu0 0.0
    %1203 = vmatpush2.msra.mxu0 0.0
    %1204 = vmatprep.mubr.f32.mxu0 0.0
    %1205 = vmatmul.mubr.f32.gmra.mxu0 %v1116
    %v1206 = vpop.f32.mrf.mxu0
    %v1207 = vadd.f32 %v1138, %v1206
    %v1208 = vpop.f32.mrf.mxu0
    %1209 = vdwg.mxu0
    %1210 = vst [vmem:[#allocation2] sm:$0x3] %v1207
    // Predicated region
    $region38: #{lenet_forward.3} parent=1 // pred_check
      _
    $region39: #{lenet_forward.3} parent=1 // pred_check_branch
      %1212 = sbr.rel (0) target = $region41
    $region40: #{lenet_forward.3} parent=1 // pred_region
      %s1214 = ssub.s32 32, 32
      %1215 = vsyncadd [#allocation3], %s1214
      %s1217 = sshll.u32 [#allocation2], 4
      %s1218 = int_to_ptr.vmem [resolvable:$true] %s1217
      %1220 = dma.vmem_to_hbm [thread:$0]  %s1218, 32, %s9, [#allocation3]
    $region41: #{lenet_forward.3} parent=1 // pred_fallthru
      _
    // Predicated region
    $region42: #{lenet_forward.3} parent=1 // pred_check
      _
    $region43: #{lenet_forward.3} parent=1 // pred_check_branch
      %1222 = sbr.rel (0) target = $region45
    $region44: #{lenet_forward.3} parent=1 // pred_region
      %s1224 = ssub.s32 64, 64
      %1225 = vsyncadd [#allocation5], %s1224
      %s1227 = sshll.u32 [#allocation4], 4
      %s1228 = int_to_ptr.vmem [resolvable:$true] %s1227
      %1230 = dma.vmem_to_hbm [thread:$0]  %s1228, 64, %s10, [#allocation5]
    $region45: #{lenet_forward.3} parent=1 // pred_fallthru
      _
    // Predicated region
    $region46: #{lenet_forward.3} parent=1 // pred_check
      _
    $region47: #{lenet_forward.3} parent=1 // pred_check_branch
      %1232 = sbr.rel (0) target = $region49
    $region48: #{lenet_forward.3} parent=1 // pred_region
      %1233 = dma.done [#allocation3], 32
    $region49: #{lenet_forward.3} parent=1 // pred_fallthru
      _
    // Predicated region
    $region50: #{lenet_forward.3} parent=1 // pred_check
      _
    $region51: #{lenet_forward.3} parent=1 // pred_check_branch
      %1235 = sbr.rel (0) target = $region53
    $region52: #{lenet_forward.3} parent=1 // pred_region
      %1236 = dma.done [#allocation5], 64
    $region53: #{lenet_forward.3} parent=1 // pred_fallthru
      _
    %1237 = vsyncpa [#allocation3], 1
    %1238 = vsyncpa [#allocation5], 1

</llo_original>
